<compile_context>
chip_gen: v7x
topology: tpu7x:2x2x1
jax: 0.10.0
libtpu: 0.0.40
codegen_flags: <defaults>
</compile_context>

<pallas_src>
import functools

import jax
import jax.numpy as jnp
from jax.experimental import pallas as pl
from jax.experimental.pallas import tpu as pltpu

EPS = 1e-5                          # BatchNorm2d default eps
LANE = 128                          # lane width (same on v5e/v6e/v7x)
_VMEM_BUDGET = 20 * 1024 * 1024     # per-grid-step block budget used to pick the batch tile


def _padded_block_bytes(shape, dtype):
    """Conservative VMEM bytes of one block (lanes padded to 128, sublanes to the dtype tile)."""
    itemsize = jnp.dtype(dtype).itemsize
    sublane = {4: 8, 2: 16, 1: 32}.get(itemsize, 8)
    dims = list(shape)
    dims[-1] = -(-dims[-1] // LANE) * LANE
    if len(dims) >= 2:
        dims[-2] = -(-dims[-2] // sublane) * sublane
    n = 1
    for d in dims:
        n *= d
    return n * itemsize


def _pick_batch_tile(n, footprint_fn, budget):
    """Largest divisor of n whose (double-buffered) block footprint fits the budget while
    keeping >= 2 grid steps (so the 'parallel' batch axis feeds both v7x TensorCores)."""
    best = 1
    for tb in range(1, n + 1):
        if n % tb:
            continue
        if n > 1 and n // tb < 2:
            continue
        if footprint_fn(tb) <= budget:
            best = tb
    return best


def _vmem_limit(need_bytes):
    # 2x headroom over the estimated need, clamped to values safe on v5e/v6e (128 MiB
    # physical) and v7x (64 MiB physical, 32 MiB scoped default).
    return int(min(max(2 * need_bytes, 16 * 1024 * 1024), 40 * 1024 * 1024))


def conv_stats_kernel(xpad_ref, w_ref, conv_ref, stats_ref):
    # xpad_ref : (TB, H+2, W+2, Cin)  bf16 zero-padded input tile
    # w_ref    : (9, Cin, Cp)         bf16 conv weights, k = kh*3 + kw, Cout zero-padded to Cp
    # conv_ref : (TB, H*W, Cp)        bf16 conv activation (lane-dense, Cp multiple of 128)
    # stats_ref: (1, 2, Cp)           f32 per-tile [sum, sum_sq] over the TB*H*W positions
    TB, Hp, Wp, Cin = xpad_ref.shape
    H, W = Hp - 2, Wp - 2
    Cp = w_ref.shape[-1]
    M = TB * H * W

    x = xpad_ref[...]                                   # (TB, H+2, W+2, Cin)

    acc = None
    for kw in range(3):
        # One sublane-shifted copy of the skinny input per kw; the kh shifts below only slice
        # leading dims (free).  No (M, 9*Cin) im2col materialization, no concat.
        x_kw = x[:, :, kw:kw + W, :]                    # (TB, H+2, W, Cin)
        for kh in range(3):
            lhs = x_kw[:, kh:kh + H].reshape(M, Cin)    # (M, Cin); free reshape when W % 8 == 0
            p = jnp.dot(lhs, w_ref[kh * 3 + kw],
                        preferred_element_type=jnp.float32)   # MXU, f32 accumulation
            acc = p if acc is None else acc + p

    # bf16 intermediate halves the HBM writeback / pass-2 read traffic.
    conv_ref[...] = acc.astype(jnp.bfloat16).reshape(TB, H * W, Cp)

    # Per-tile BN partial statistics (reduced across tiles and folded with gamma/beta in the
    # wrapper).  Conv bias is omitted: it cancels exactly under batch-stat BN.
    s1 = jnp.sum(acc, axis=0, keepdims=True)            # (1, Cp)
    s2 = jnp.sum(acc * acc, axis=0, keepdims=True)      # (1, Cp)
    stats_ref[...] = jnp.concatenate([s1, s2], axis=0)[None]


def bn_relu_pool_kernel(conv_ref, scale_ref, shift_ref, out_ref, *, W):
    # conv_ref : (TB, H*W, Cp) bf16 conv activation
    # scale_ref: (1, Cp) f32  gamma * rsqrt(var + eps)   (zero in padded channels)
    # shift_ref: (1, Cp) f32  beta  - mean * scale       (zero in padded channels)
    # out_ref  : (TB, Ho*Wo, Cp) f32 pooled output
    TB, HW, Cp = conv_ref.shape
    H = HW // W
    Ho, Wo = H // 2, W // 2

    y = conv_ref[...].astype(jnp.float32)
    y = jnp.maximum(y * scale_ref[...] + shift_ref[...], 0.0)    # folded BN + ReLU (VPU)

    # MaxPool2d(2,2): W-pool pairs adjacent sublanes, H-pool pairs leading-dim slabs (VPU only).
    y = y.reshape(TB, H, Wo, 2, Cp)
    y = jnp.max(y, axis=3)                                       # (TB, H, Wo, Cp)
    y = y.reshape(TB, Ho, 2, Wo, Cp)
    y = jnp.max(y, axis=2)                                       # (TB, Ho, Wo, Cp)
    out_ref[...] = y.reshape(TB, Ho * Wo, Cp)


@jax.jit
def conv_block(x_nchw, w_oihw, bias, gamma, beta):
    """Pallas Conv_Block forward. x_nchw: (N, Cin, H, W) -> (N, Cout, H//2, W//2), f32 NCHW."""
    N, Cin, H, W = x_nchw.shape
    Cout = w_oihw.shape[0]
    assert H % 2 == 0 and W % 2 == 0, "MaxPool2d(2,2) path assumes even H and W"
    Ho, Wo = H // 2, W // 2
    Cp = -(-Cout // LANE) * LANE   # pad Cout to a multiple of 128 lanes (128 suffices on v5e;
                                   # 128-lane tiles are also fine on the 256-wide v6e/v7x MXU)

    # NHWC, zero-pad H/W by 1, bf16 for the MXU (accumulation stays f32 in-kernel).
    # TODO(synk): fold the NCHW->NHWC transpose / pad / cast into pass 1 (zeroed VMEM scratch +
    # offset copy, or clamped index_map + boundary mask) to remove this extra HBM round-trip.
    x = jnp.transpose(x_nchw, (0, 2, 3, 1)).astype(jnp.bfloat16)
    xpad = jnp.pad(x, ((0, 0), (1, 1), (1, 1), (0, 0)))

    # OIHW -> (kh*3+kw, Cin, Cout), zero-pad Cout -> Cp.
    w_k = jnp.transpose(w_oihw, (2, 3, 1, 0)).reshape(9, Cin, Cout)
    w_k = jnp.pad(w_k, ((0, 0), (0, 0), (0, Cp - Cout))).astype(jnp.bfloat16)
    del bias   # conv bias cancels exactly under train-mode batch-statistics BN

    # ---- footprint-derived batch tiling / VMEM limits (generation-aware sizing) ----
    def pass1_bytes(tb):
        return (2 * (_padded_block_bytes((tb, H + 2, W + 2, Cin), jnp.bfloat16)
                     + _padded_block_bytes((tb, H * W, Cp), jnp.bfloat16)
                     + _padded_block_bytes((1, 2, Cp), jnp.float32))
                + 2 * _padded_block_bytes((9, Cin, Cp), jnp.bfloat16)
                + 3 * _padded_block_bytes((tb * H * W, Cp), jnp.float32))   # acc + shifted temps

    def pass2_bytes(tb):
        return (2 * (_padded_block_bytes((tb, H * W, Cp), jnp.bfloat16)
                     + _padded_block_bytes((tb, Ho * Wo, Cp), jnp.float32)
                     + 2 * _padded_block_bytes((1, Cp), jnp.float32))
                + 2 * _padded_block_bytes((tb * H * W, Cp), jnp.float32))   # f32 working slab

    tb1 = _pick_batch_tile(N, pass1_bytes, _VMEM_BUDGET)
    tb2 = _pick_batch_tile(N, pass2_bytes, _VMEM_BUDGET)
    # TODO(synk): for shapes where even tb=1 overflows VMEM (large H*W*Cin on v7x's 64 MiB),
    # add a grid axis over H with a 2-row halo instead of whole-image blocks.
    n1, n2 = N // tb1, N // tb2

    pass1_cost = pl.CostEstimate(
        flops=2 * N * H * W * 9 * Cin * Cp,
        transcendentals=0,
        bytes_accessed=(xpad.size * 2 + w_k.size * 2
                        + N * H * W * Cp * 2 + n1 * 2 * Cp * 4))

    conv_out, stats = pl.pallas_call(
        conv_stats_kernel,
        grid=(n1,),
        in_specs=[
            pl.BlockSpec((tb1, H + 2, W + 2, Cin), lambda n: (n, 0, 0, 0)),
            pl.BlockSpec((9, Cin, Cp), lambda n: (0, 0, 0)),
        ],
        out_specs=(
            pl.BlockSpec((tb1, H * W, Cp), lambda n: (n, 0, 0)),
            pl.BlockSpec((1, 2, Cp), lambda n: (n, 0, 0)),
        ),
        out_shape=(
            jax.ShapeDtypeStruct((N, H * W, Cp), jnp.bfloat16),
            jax.ShapeDtypeStruct((n1, 2, Cp), jnp.float32),
        ),
        compiler_params=pltpu.CompilerParams(
            dimension_semantics=("parallel",),
            vmem_limit_bytes=_vmem_limit(pass1_bytes(tb1))),
        cost_estimate=pass1_cost,
    )(xpad, w_k)

    # Global train-mode (biased) batch statistics from the per-tile partials, folded with
    # gamma/beta into a single per-channel scale/shift for pass 2 (tiny host-of-kernel math).
    cnt = jnp.float32(N * H * W)
    totals = jnp.sum(stats, axis=0)                       # (2, Cp)
    mean = totals[0, :Cout] / cnt
    var = totals[1, :Cout] / cnt - mean * mean            # biased variance, f32 partial sums
    scale_c = gamma.astype(jnp.float32) * jax.lax.rsqrt(var + EPS)
    shift_c = beta.astype(jnp.float32) - mean * scale_c
    scale = jnp.pad(scale_c, (0, Cp - Cout)).reshape(1, Cp)
    shift = jnp.pad(shift_c, (0, Cp - Cout)).reshape(1, Cp)

    pass2_cost = pl.CostEstimate(
        flops=N * H * W * Cp * 2 + N * Ho * Wo * Cp * 3,
        transcendentals=0,
        bytes_accessed=(N * H * W * Cp * 2 + 2 * Cp * 4 + N * Ho * Wo * Cp * 4))

    pooled = pl.pallas_call(
        functools.partial(bn_relu_pool_kernel, W=W),
        grid=(n2,),
        in_specs=[
            pl.BlockSpec((tb2, H * W, Cp), lambda n: (n, 0, 0)),
            pl.BlockSpec((1, Cp), lambda n: (0, 0)),
            pl.BlockSpec((1, Cp), lambda n: (0, 0)),
        ],
        out_specs=pl.BlockSpec((tb2, Ho * Wo, Cp), lambda n: (n, 0, 0)),
        out_shape=jax.ShapeDtypeStruct((N, Ho * Wo, Cp), jnp.float32),
        compiler_params=pltpu.CompilerParams(
            dimension_semantics=("parallel",),
            vmem_limit_bytes=_vmem_limit(pass2_bytes(tb2))),
        cost_estimate=pass2_cost,
    )(conv_out, scale, shift)

    out = pooled.reshape(N, Ho, Wo, Cp)[..., :Cout]
    # TODO(synk): if the downstream consumer accepts NHWC, return `out` directly and skip this
    # final relayout back to the PyTorch NCHW convention.
    return jnp.transpose(out, (0, 3, 1, 2))


def conv_block_reference(x_nchw, w_oihw, bias, gamma, beta):
    """Plain-JAX reference matching PyTorch Conv_Block.forward (train-mode BN)."""
    y = jax.lax.conv_general_dilated(
        x_nchw, w_oihw, window_strides=(1, 1), padding=((1, 1), (1, 1)),
        dimension_numbers=("NCHW", "OIHW", "NCHW"))
    y = y + bias.reshape(1, -1, 1, 1)
    mean = jnp.mean(y, axis=(0, 2, 3), keepdims=True)
    var = jnp.mean((y - mean) ** 2, axis=(0, 2, 3), keepdims=True)
    y = (y - mean) * jax.lax.rsqrt(var + EPS)
    y = y * gamma.reshape(1, -1, 1, 1) + beta.reshape(1, -1, 1, 1)
    y = jnp.maximum(y, 0.0)
    y = jax.lax.reduce_window(y, -jnp.inf, jax.lax.max,
                              (1, 1, 2, 2), (1, 1, 2, 2), "VALID")
    return y


if __name__ == "__main__":
    key = jax.random.PRNGKey(0)
    k_x, k_w, k_b, k_g, k_beta = jax.random.split(key, 5)

    N, Cin, H, W = 2, 4, 16, 16
    Cout = 8

    x = jax.random.normal(k_x, (N, Cin, H, W), jnp.float32)
    w = 0.1 * jax.random.normal(k_w, (Cout, Cin, 3, 3), jnp.float32)   # Conv2d weight (OIHW)
    b = 0.1 * jax.random.normal(k_b, (Cout,), jnp.float32)             # Conv2d bias
    gamma = 1.0 + 0.1 * jax.random.normal(k_g, (Cout,), jnp.float32)   # BN weight
    beta = 0.1 * jax.random.normal(k_beta, (Cout,), jnp.float32)       # BN bias

    out = jax.block_until_ready(conv_block(x, w, b, gamma, beta))
    ref = jax.block_until_ready(conv_block_reference(x, w, b, gamma, beta))

    assert out.shape == (N, Cout, H // 2, W // 2), out.shape
    # bf16 MXU inputs + bf16 conv intermediate (f32 accumulation / f32 BN statistics) ->
    # looser tolerance than the pure-f32 reference path.
    assert jnp.allclose(out, ref, atol=5e-2, rtol=5e-2), \
        float(jnp.max(jnp.abs(out - ref)))

    print("KERNEL_OK")
</pallas_src>

<mosaic_0001>
module attributes {stable_mosaic.version = 11 : i64} {
  func.func @bn_relu_pool_kernel(%arg0: i32, %arg1: memref<1x256x128xbf16, #tpu.memory_space<vmem>>, %arg2: memref<1x128xf32, #tpu.memory_space<vmem>>, %arg3: memref<1x128xf32, #tpu.memory_space<vmem>>, %arg4: memref<1x64x128xf32, #tpu.memory_space<vmem>>) attributes {dimension_semantics = [#tpu.dimension_semantics<parallel>], iteration_bounds = array<i64: 2>, scalar_prefetch = 0 : i64, scratch_operands = 0 : i64, tpu.core_type = #tpu.core_type<tc>, window_params = [{transform_indices = @transform_0, window_bounds = array<i64: 1, 256, 128>}, {pipeline_mode = #tpu.pipeline_mode<synchronous>, transform_indices = @transform_1, window_bounds = array<i64: 1, 128>}, {pipeline_mode = #tpu.pipeline_mode<synchronous>, transform_indices = @transform_2, window_bounds = array<i64: 1, 128>}, {transform_indices = @transform_3, window_bounds = array<i64: 1, 64, 128>}]} {
    %c0 = arith.constant 0 : index
    %c0_0 = arith.constant 0 : index
    %c0_1 = arith.constant 0 : index
    %0 = vector.load %arg1[%c0, %c0_0, %c0_1] : memref<1x256x128xbf16, #tpu.memory_space<vmem>>, vector<1x256x128xbf16>
    %1 = arith.extf %0 : vector<1x256x128xbf16> to vector<1x256x128xf32>
    %c0_2 = arith.constant 0 : index
    %c0_3 = arith.constant 0 : index
    %2 = vector.load %arg2[%c0_2, %c0_3] : memref<1x128xf32, #tpu.memory_space<vmem>>, vector<1x128xf32>
    %3 = vector.shape_cast %2 : vector<1x128xf32> to vector<1x1x128xf32>
    %4 = vector.broadcast %3 : vector<1x1x128xf32> to vector<1x256x128xf32>
    %5 = arith.mulf %1, %4 : vector<1x256x128xf32>
    %c0_4 = arith.constant 0 : index
    %c0_5 = arith.constant 0 : index
    %6 = vector.load %arg3[%c0_4, %c0_5] : memref<1x128xf32, #tpu.memory_space<vmem>>, vector<1x128xf32>
    %7 = vector.shape_cast %6 : vector<1x128xf32> to vector<1x1x128xf32>
    %8 = vector.broadcast %7 : vector<1x1x128xf32> to vector<1x256x128xf32>
    %9 = arith.addf %5, %8 : vector<1x256x128xf32>
    %cst = arith.constant 0.000000e+00 : f32
    %10 = vector.broadcast %cst : f32 to vector<1x256x128xf32>
    %11 = arith.maximumf %9, %10 : vector<1x256x128xf32>
    %12 = vector.shape_cast %11 : vector<1x256x128xf32> to vector<1x16x8x2x128xf32>
    %cst_6 = arith.constant dense<0xFF800000> : vector<1x16x8x128xf32>
    %13 = vector.multi_reduction <maximumf>, %12, %cst_6 [3] : vector<1x16x8x2x128xf32> to vector<1x16x8x128xf32>
    %14 = vector.shape_cast %13 : vector<1x16x8x128xf32> to vector<1x8x2x8x128xf32>
    %cst_7 = arith.constant dense<0xFF800000> : vector<1x8x8x128xf32>
    %15 = vector.multi_reduction <maximumf>, %14, %cst_7 [2] : vector<1x8x2x8x128xf32> to vector<1x8x8x128xf32>
    %16 = vector.shape_cast %15 : vector<1x8x8x128xf32> to vector<1x64x128xf32>
    %c0_8 = arith.constant 0 : index
    %c0_9 = arith.constant 0 : index
    %c0_10 = arith.constant 0 : index
    %17 = vector.load %arg4[%c0_8, %c0_9, %c0_10] : memref<1x64x128xf32, #tpu.memory_space<vmem>>, vector<1x64x128xf32>
    tpu.vector_store %arg4[%c0_8, %c0_9, %c0_10], %16 {strides = array<i32>} : memref<1x64x128xf32, #tpu.memory_space<vmem>>, vector<1x64x128xf32>,
    return
  }
  func.func @transform_0(%arg0: i32) -> (i32, i32, i32) {
    %c0_i32 = arith.constant 0 : i32
    %c0_i32_0 = arith.constant 0 : i32
    %c0_i32_1 = arith.constant 0 : i32
    return %arg0, %c0_i32, %c0_i32_0 : i32, i32, i32
  }
  func.func @transform_1(%arg0: i32) -> (i32, i32) {
    %c0_i32 = arith.constant 0 : i32
    %c0_i32_0 = arith.constant 0 : i32
    %c0_i32_1 = arith.constant 0 : i32
    return %c0_i32, %c0_i32_0 : i32, i32
  }
  func.func @transform_2(%arg0: i32) -> (i32, i32) {
    %c0_i32 = arith.constant 0 : i32
    %c0_i32_0 = arith.constant 0 : i32
    %c0_i32_1 = arith.constant 0 : i32
    return %c0_i32, %c0_i32_0 : i32, i32
  }
  func.func @transform_3(%arg0: i32) -> (i32, i32, i32) {
    %c0_i32 = arith.constant 0 : i32
    %c0_i32_0 = arith.constant 0 : i32
    %c0_i32_1 = arith.constant 0 : i32
    return %arg0, %c0_i32, %c0_i32_0 : i32, i32, i32
  }
}

module attributes {stable_mosaic.version = 11 : i64} {
  func.func @conv_stats_kernel(%arg0: i32, %arg1: memref<1x18x18x4xbf16, #tpu.memory_space<vmem>>, %arg2: memref<9x4x128xbf16, #tpu.memory_space<vmem>>, %arg3: memref<1x256x128xbf16, #tpu.memory_space<vmem>>, %arg4: memref<1x2x128xf32, #tpu.memory_space<vmem>>) attributes {dimension_semantics = [#tpu.dimension_semantics<parallel>], iteration_bounds = array<i64: 2>, scalar_prefetch = 0 : i64, scratch_operands = 0 : i64, tpu.core_type = #tpu.core_type<tc>, window_params = [{transform_indices = @transform_0, window_bounds = array<i64: 1, 18, 18, 4>}, {pipeline_mode = #tpu.pipeline_mode<synchronous>, transform_indices = @transform_1, window_bounds = array<i64: 9, 4, 128>}, {transform_indices = @transform_2, window_bounds = array<i64: 1, 256, 128>}, {transform_indices = @transform_3, window_bounds = array<i64: 1, 2, 128>}]} {
    %c0 = arith.constant 0 : index
    %c0_0 = arith.constant 0 : index
    %c0_1 = arith.constant 0 : index
    %c0_2 = arith.constant 0 : index
    %0 = vector.load %arg1[%c0, %c0_0, %c0_1, %c0_2] : memref<1x18x18x4xbf16, #tpu.memory_space<vmem>>, vector<1x18x18x4xbf16>
    %1 = vector.extract_strided_slice %0 {offsets = [0, 0, 0, 0], sizes = [1, 18, 16, 4], strides = [1, 1, 1, 1]} : vector<1x18x18x4xbf16> to vector<1x18x16x4xbf16>
    %2 = vector.extract_strided_slice %1 {offsets = [0, 0, 0, 0], sizes = [1, 16, 16, 4], strides = [1, 1, 1, 1]} : vector<1x18x16x4xbf16> to vector<1x16x16x4xbf16>
    %3 = vector.shape_cast %2 : vector<1x16x16x4xbf16> to vector<256x4xbf16>
    %c0_3 = arith.constant 0 : index
    %c0_4 = arith.constant 0 : index
    %c0_5 = arith.constant 0 : index
    %4 = vector.load %arg2[%c0_3, %c0_4, %c0_5] : memref<9x4x128xbf16, #tpu.memory_space<vmem>>, vector<1x4x128xbf16>
    %5 = vector.shape_cast %4 : vector<1x4x128xbf16> to vector<4x128xbf16>
    %cst = arith.constant dense<0.000000e+00> : vector<256x128xf32>
    %6 = tpu.matmul %3, %5, %cst {dimension_numbers = #tpu.dot_dimension_numbers<[1], [0], [0], [1], [0, 0, 1, 1], [], []>} : vector<256x4xbf16>, vector<4x128xbf16>, vector<256x128xf32> -> vector<256x128xf32>
    %7 = vector.extract_strided_slice %1 {offsets = [0, 1, 0, 0], sizes = [1, 16, 16, 4], strides = [1, 1, 1, 1]} : vector<1x18x16x4xbf16> to vector<1x16x16x4xbf16>
    %8 = vector.shape_cast %7 : vector<1x16x16x4xbf16> to vector<256x4xbf16>
    %c3 = arith.constant 3 : index
    %c0_6 = arith.constant 0 : index
    %c0_7 = arith.constant 0 : index
    %9 = vector.load %arg2[%c3, %c0_6, %c0_7] : memref<9x4x128xbf16, #tpu.memory_space<vmem>>, vector<1x4x128xbf16>
    %10 = vector.shape_cast %9 : vector<1x4x128xbf16> to vector<4x128xbf16>
    %cst_8 = arith.constant dense<0.000000e+00> : vector<256x128xf32>
    %11 = tpu.matmul %8, %10, %cst_8 {dimension_numbers = #tpu.dot_dimension_numbers<[1], [0], [0], [1], [0, 0, 1, 1], [], []>} : vector<256x4xbf16>, vector<4x128xbf16>, vector<256x128xf32> -> vector<256x128xf32>
    %12 = arith.addf %6, %11 : vector<256x128xf32>
    %13 = vector.extract_strided_slice %1 {offsets = [0, 2, 0, 0], sizes = [1, 16, 16, 4], strides = [1, 1, 1, 1]} : vector<1x18x16x4xbf16> to vector<1x16x16x4xbf16>
    %14 = vector.shape_cast %13 : vector<1x16x16x4xbf16> to vector<256x4xbf16>
    %c6 = arith.constant 6 : index
    %c0_9 = arith.constant 0 : index
    %c0_10 = arith.constant 0 : index
    %15 = vector.load %arg2[%c6, %c0_9, %c0_10] : memref<9x4x128xbf16, #tpu.memory_space<vmem>>, vector<1x4x128xbf16>
    %16 = vector.shape_cast %15 : vector<1x4x128xbf16> to vector<4x128xbf16>
    %cst_11 = arith.constant dense<0.000000e+00> : vector<256x128xf32>
    %17 = tpu.matmul %14, %16, %cst_11 {dimension_numbers = #tpu.dot_dimension_numbers<[1], [0], [0], [1], [0, 0, 1, 1], [], []>} : vector<256x4xbf16>, vector<4x128xbf16>, vector<256x128xf32> -> vector<256x128xf32>
    %18 = arith.addf %12, %17 : vector<256x128xf32>
    %19 = vector.extract_strided_slice %0 {offsets = [0, 0, 1, 0], sizes = [1, 18, 16, 4], strides = [1, 1, 1, 1]} : vector<1x18x18x4xbf16> to vector<1x18x16x4xbf16>
    %20 = vector.extract_strided_slice %19 {offsets = [0, 0, 0, 0], sizes = [1, 16, 16, 4], strides = [1, 1, 1, 1]} : vector<1x18x16x4xbf16> to vector<1x16x16x4xbf16>
    %21 = vector.shape_cast %20 : vector<1x16x16x4xbf16> to vector<256x4xbf16>
    %c1 = arith.constant 1 : index
    %c0_12 = arith.constant 0 : index
    %c0_13 = arith.constant 0 : index
    %22 = vector.load %arg2[%c1, %c0_12, %c0_13] : memref<9x4x128xbf16, #tpu.memory_space<vmem>>, vector<1x4x128xbf16>
    %23 = vector.shape_cast %22 : vector<1x4x128xbf16> to vector<4x128xbf16>
    %cst_14 = arith.constant dense<0.000000e+00> : vector<256x128xf32>
    %24 = tpu.matmul %21, %23, %cst_14 {dimension_numbers = #tpu.dot_dimension_numbers<[1], [0], [0], [1], [0, 0, 1, 1], [], []>} : vector<256x4xbf16>, vector<4x128xbf16>, vector<256x128xf32> -> vector<256x128xf32>
    %25 = arith.addf %18, %24 : vector<256x128xf32>
    %26 = vector.extract_strided_slice %19 {offsets = [0, 1, 0, 0], sizes = [1, 16, 16, 4], strides = [1, 1, 1, 1]} : vector<1x18x16x4xbf16> to vector<1x16x16x4xbf16>
    %27 = vector.shape_cast %26 : vector<1x16x16x4xbf16> to vector<256x4xbf16>
    %c4 = arith.constant 4 : index
    %c0_15 = arith.constant 0 : index
    %c0_16 = arith.constant 0 : index
    %28 = vector.load %arg2[%c4, %c0_15, %c0_16] : memref<9x4x128xbf16, #tpu.memory_space<vmem>>, vector<1x4x128xbf16>
    %29 = vector.shape_cast %28 : vector<1x4x128xbf16> to vector<4x128xbf16>
    %cst_17 = arith.constant dense<0.000000e+00> : vector<256x128xf32>
    %30 = tpu.matmul %27, %29, %cst_17 {dimension_numbers = #tpu.dot_dimension_numbers<[1], [0], [0], [1], [0, 0, 1, 1], [], []>} : vector<256x4xbf16>, vector<4x128xbf16>, vector<256x128xf32> -> vector<256x128xf32>
    %31 = arith.addf %25, %30 : vector<256x128xf32>
    %32 = vector.extract_strided_slice %19 {offsets = [0, 2, 0, 0], sizes = [1, 16, 16, 4], strides = [1, 1, 1, 1]} : vector<1x18x16x4xbf16> to vector<1x16x16x4xbf16>
    %33 = vector.shape_cast %32 : vector<1x16x16x4xbf16> to vector<256x4xbf16>
    %c7 = arith.constant 7 : index
    %c0_18 = arith.constant 0 : index
    %c0_19 = arith.constant 0 : index
    %34 = vector.load %arg2[%c7, %c0_18, %c0_19] : memref<9x4x128xbf16, #tpu.memory_space<vmem>>, vector<1x4x128xbf16>
    %35 = vector.shape_cast %34 : vector<1x4x128xbf16> to vector<4x128xbf16>
    %cst_20 = arith.constant dense<0.000000e+00> : vector<256x128xf32>
    %36 = tpu.matmul %33, %35, %cst_20 {dimension_numbers = #tpu.dot_dimension_numbers<[1], [0], [0], [1], [0, 0, 1, 1], [], []>} : vector<256x4xbf16>, vector<4x128xbf16>, vector<256x128xf32> -> vector<256x128xf32>
    %37 = arith.addf %31, %36 : vector<256x128xf32>
    %38 = vector.extract_strided_slice %0 {offsets = [0, 0, 2, 0], sizes = [1, 18, 16, 4], strides = [1, 1, 1, 1]} : vector<1x18x18x4xbf16> to vector<1x18x16x4xbf16>
    %39 = vector.extract_strided_slice %38 {offsets = [0, 0, 0, 0], sizes = [1, 16, 16, 4], strides = [1, 1, 1, 1]} : vector<1x18x16x4xbf16> to vector<1x16x16x4xbf16>
    %40 = vector.shape_cast %39 : vector<1x16x16x4xbf16> to vector<256x4xbf16>
    %c2 = arith.constant 2 : index
    %c0_21 = arith.constant 0 : index
    %c0_22 = arith.constant 0 : index
    %41 = vector.load %arg2[%c2, %c0_21, %c0_22] : memref<9x4x128xbf16, #tpu.memory_space<vmem>>, vector<1x4x128xbf16>
    %42 = vector.shape_cast %41 : vector<1x4x128xbf16> to vector<4x128xbf16>
    %cst_23 = arith.constant dense<0.000000e+00> : vector<256x128xf32>
    %43 = tpu.matmul %40, %42, %cst_23 {dimension_numbers = #tpu.dot_dimension_numbers<[1], [0], [0], [1], [0, 0, 1, 1], [], []>} : vector<256x4xbf16>, vector<4x128xbf16>, vector<256x128xf32> -> vector<256x128xf32>
    %44 = arith.addf %37, %43 : vector<256x128xf32>
    %45 = vector.extract_strided_slice %38 {offsets = [0, 1, 0, 0], sizes = [1, 16, 16, 4], strides = [1, 1, 1, 1]} : vector<1x18x16x4xbf16> to vector<1x16x16x4xbf16>
    %46 = vector.shape_cast %45 : vector<1x16x16x4xbf16> to vector<256x4xbf16>
    %c5 = arith.constant 5 : index
    %c0_24 = arith.constant 0 : index
    %c0_25 = arith.constant 0 : index
    %47 = vector.load %arg2[%c5, %c0_24, %c0_25] : memref<9x4x128xbf16, #tpu.memory_space<vmem>>, vector<1x4x128xbf16>
    %48 = vector.shape_cast %47 : vector<1x4x128xbf16> to vector<4x128xbf16>
    %cst_26 = arith.constant dense<0.000000e+00> : vector<256x128xf32>
    %49 = tpu.matmul %46, %48, %cst_26 {dimension_numbers = #tpu.dot_dimension_numbers<[1], [0], [0], [1], [0, 0, 1, 1], [], []>} : vector<256x4xbf16>, vector<4x128xbf16>, vector<256x128xf32> -> vector<256x128xf32>
    %50 = arith.addf %44, %49 : vector<256x128xf32>
    %51 = vector.extract_strided_slice %38 {offsets = [0, 2, 0, 0], sizes = [1, 16, 16, 4], strides = [1, 1, 1, 1]} : vector<1x18x16x4xbf16> to vector<1x16x16x4xbf16>
    %52 = vector.shape_cast %51 : vector<1x16x16x4xbf16> to vector<256x4xbf16>
    %c8 = arith.constant 8 : index
    %c0_27 = arith.constant 0 : index
    %c0_28 = arith.constant 0 : index
    %53 = vector.load %arg2[%c8, %c0_27, %c0_28] : memref<9x4x128xbf16, #tpu.memory_space<vmem>>, vector<1x4x128xbf16>
    %54 = vector.shape_cast %53 : vector<1x4x128xbf16> to vector<4x128xbf16>
    %cst_29 = arith.constant dense<0.000000e+00> : vector<256x128xf32>
    %55 = tpu.matmul %52, %54, %cst_29 {dimension_numbers = #tpu.dot_dimension_numbers<[1], [0], [0], [1], [0, 0, 1, 1], [], []>} : vector<256x4xbf16>, vector<4x128xbf16>, vector<256x128xf32> -> vector<256x128xf32>
    %56 = arith.addf %50, %55 : vector<256x128xf32>
    %57 = arith.truncf %56 : vector<256x128xf32> to vector<256x128xbf16>
    %58 = vector.shape_cast %57 : vector<256x128xbf16> to vector<1x256x128xbf16>
    %c0_30 = arith.constant 0 : index
    %c0_31 = arith.constant 0 : index
    %c0_32 = arith.constant 0 : index
    %59 = vector.load %arg3[%c0_30, %c0_31, %c0_32] : memref<1x256x128xbf16, #tpu.memory_space<vmem>>, vector<1x256x128xbf16>
    tpu.vector_store %arg3[%c0_30, %c0_31, %c0_32], %58 {strides = array<i32>} : memref<1x256x128xbf16, #tpu.memory_space<vmem>>, vector<1x256x128xbf16>,
    %cst_33 = arith.constant dense<0.000000e+00> : vector<128xf32>
    %60 = vector.multi_reduction <add>, %56, %cst_33 [0] : vector<256x128xf32> to vector<128xf32>
    %61 = vector.shape_cast %60 : vector<128xf32> to vector<1x128xf32>
    %62 = arith.mulf %56, %56 : vector<256x128xf32>
    %cst_34 = arith.constant dense<0.000000e+00> : vector<128xf32>
    %63 = vector.multi_reduction <add>, %62, %cst_34 [0] : vector<256x128xf32> to vector<128xf32>
    %64 = vector.shape_cast %63 : vector<128xf32> to vector<1x128xf32>
    %65 = tpu.concatenate %61, %64 in 0 : vector<1x128xf32>, vector<1x128xf32> -> vector<2x128xf32>
    %66 = vector.shape_cast %65 : vector<2x128xf32> to vector<1x2x128xf32>
    %c0_35 = arith.constant 0 : index
    %c0_36 = arith.constant 0 : index
    %c0_37 = arith.constant 0 : index
    %67 = vector.load %arg4[%c0_35, %c0_36, %c0_37] : memref<1x2x128xf32, #tpu.memory_space<vmem>>, vector<1x2x128xf32>
    tpu.vector_store %arg4[%c0_35, %c0_36, %c0_37], %66 {strides = array<i32>} : memref<1x2x128xf32, #tpu.memory_space<vmem>>, vector<1x2x128xf32>,
    return
  }
  func.func @transform_0(%arg0: i32) -> (i32, i32, i32, i32) {
    %c0_i32 = arith.constant 0 : i32
    %c0_i32_0 = arith.constant 0 : i32
    %c0_i32_1 = arith.constant 0 : i32
    %c0_i32_2 = arith.constant 0 : i32
    return %arg0, %c0_i32, %c0_i32_0, %c0_i32_1 : i32, i32, i32, i32
  }
  func.func @transform_1(%arg0: i32) -> (i32, i32, i32) {
    %c0_i32 = arith.constant 0 : i32
    %c0_i32_0 = arith.constant 0 : i32
    %c0_i32_1 = arith.constant 0 : i32
    %c0_i32_2 = arith.constant 0 : i32
    return %c0_i32, %c0_i32_0, %c0_i32_1 : i32, i32, i32
  }
  func.func @transform_2(%arg0: i32) -> (i32, i32, i32) {
    %c0_i32 = arith.constant 0 : i32
    %c0_i32_0 = arith.constant 0 : i32
    %c0_i32_1 = arith.constant 0 : i32
    return %arg0, %c0_i32, %c0_i32_0 : i32, i32, i32
  }
  func.func @transform_3(%arg0: i32) -> (i32, i32, i32) {
    %c0_i32 = arith.constant 0 : i32
    %c0_i32_0 = arith.constant 0 : i32
    %c0_i32_1 = arith.constant 0 : i32
    return %arg0, %c0_i32, %c0_i32_0 : i32, i32, i32
  }
}

</mosaic_0001>

<llo_original>
// kernel: conv_block.3
$region0: #{conv_block.3}
  #allocation0 [shape = 'u32[]', space=smem, size = 0x4, offset = 0x4, fixed_abs, tag = 'smem constant byte address 0x4 - core index']
  #allocation1 [shape = 'u32[144,128]{1,0:T(1,128)}', space=vmem, size = 0x12000, scoped, tag = 'internal scratch']
  %s0 = inlined_call_operand.vmem [shape: bf16[2,256,128], index: 0, kind: input, shape index: {}]
  %s1 = inlined_call_operand.vmem [shape: f32[1,128], index: 1, kind: input, shape index: {}]
  %s2 = inlined_call_operand.vmem [shape: f32[1,128], index: 2, kind: input, shape index: {}]
  %s3 = inlined_call_operand.vmem [shape: f32[2,64,128], index: 3, kind: output, shape index: {}]
  %s4 = sld [smem:[#allocation0]]
  $region45: #{conv_block.3} parent=0
    _
  %s6 = ssub.s32 1, %s4
  %s7 = scalar_select 0, %s6, %s4
  loop: start=0, step=1, limit=4
  $region2: #{conv_block.3} parent=0 // loop_pre_header
    _
  $region3: #{conv_block.3} parent=0 // loop_header
    %s9 = sphi 0, %s13
    %p10 = scmp.ge.s32.totalorder %s9, 4
    %s19 = sphi 0, %s21
    %s22 = sphi 0, %s19
    %s23 = sphi 0, %s22
    %s39 = sphi 0, %s23
    %s43 = sphi 0, %s43
    %s45 = sphi 0, %s43
    %s46 = sphi 0, %s45
    %s60 = sphi 0, %s46
    %s64 = sphi 0, %s64
    %s66 = sphi 0, %s64
    %s67 = sphi 0, %s66
    %s81 = sphi 0, %s67
    %s87 = sphi 0, %s89
    %s90 = sphi 0, %s87
    %s91 = sphi 0, %s90
    %s107 = sphi 0, %s91
  $region4: #{conv_block.3} parent=0 // loop_header_branch
    %12 = sbr.rel (%p10) target = $region8
  $region5: #{conv_block.3} parent=0 // loop_body
    %s14 = ssub.s32 %s9, 1
    %s15 = ssub.s32 %s9, 2
    %s16 = sadd.s32 %s9, 1
    %s17 = ssub.s32 %s9, %s16
    %p18 = scmp.eq.s32.totalorder %s17, 0
    %s20 = sadd.s32 %s19, 1
    %s21 = scalar_select %p18, %s19, %s20
    %p24 = pneg %p18
    %p25 = scmp.eq.s32.totalorder %s9, 1
    %p26 = por %p24, %p25
    %p27 = scmp.ne.s32.totalorder %s19, %s22
    %p28 = scmp.eq.s32.totalorder %s9, 0
    %p29 = por %p27, %p28
    %p30 = scmp.ne.s32.totalorder %s19, %s22
    %p31 = scmp.eq.s32.totalorder %s14, 1
    %p32 = por %p30, %p31
    %p33 = scmp.ne.s32.totalorder %s22, %s23
    %p34 = scmp.eq.s32.totalorder %s14, 0
    %p35 = por %p33, %p34
    %p36 = scmp.ne.s32.totalorder %s22, %s23
    %p37 = scmp.eq.s32.totalorder %s15, 1
    %p38 = por %p36, %p37
    %p40 = scmp.ne.s32.totalorder %s23, %s39
    %p41 = scmp.eq.s32.totalorder %s15, 0
    %p42 = por %p40, %p41
    %s44 = sadd.s32 %s43, 1
    %p47 = scmp.eq.s32.totalorder %s9, 1
    %p48 = scmp.ne.s32.totalorder %s43, %s45
    %p49 = scmp.eq.s32.totalorder %s9, 0
    %p50 = por %p48, %p49
    %p51 = scmp.ne.s32.totalorder %s43, %s45
    %p52 = scmp.eq.s32.totalorder %s14, 1
    %p53 = por %p51, %p52
    %p54 = scmp.ne.s32.totalorder %s45, %s46
    %p55 = scmp.eq.s32.totalorder %s14, 0
    %p56 = por %p54, %p55
    %p57 = scmp.ne.s32.totalorder %s45, %s46
    %p58 = scmp.eq.s32.totalorder %s15, 1
    %p59 = por %p57, %p58
    %p61 = scmp.ne.s32.totalorder %s46, %s60
    %p62 = scmp.eq.s32.totalorder %s15, 0
    %p63 = por %p61, %p62
    %s65 = sadd.s32 %s64, 1
    %p68 = scmp.eq.s32.totalorder %s9, 1
    %p69 = scmp.ne.s32.totalorder %s64, %s66
    %p70 = scmp.eq.s32.totalorder %s9, 0
    %p71 = por %p69, %p70
    %p72 = scmp.ne.s32.totalorder %s64, %s66
    %p73 = scmp.eq.s32.totalorder %s14, 1
    %p74 = por %p72, %p73
    %p75 = scmp.ne.s32.totalorder %s66, %s67
    %p76 = scmp.eq.s32.totalorder %s14, 0
    %p77 = por %p75, %p76
    %p78 = scmp.ne.s32.totalorder %s66, %s67
    %p79 = scmp.eq.s32.totalorder %s15, 1
    %p80 = por %p78, %p79
    %p82 = scmp.ne.s32.totalorder %s67, %s81
    %p83 = scmp.eq.s32.totalorder %s15, 0
    %p84 = por %p82, %p83
    %s85 = ssub.s32 %s9, %s16
    %p86 = scmp.eq.s32.totalorder %s85, 0
    %s88 = sadd.s32 %s87, 1
    %s89 = scalar_select %p86, %s87, %s88
    %p92 = pneg %p86
    %p93 = scmp.eq.s32.totalorder %s9, 1
    %p94 = por %p92, %p93
    %p95 = scmp.ne.s32.totalorder %s87, %s90
    %p96 = scmp.eq.s32.totalorder %s9, 0
    %p97 = por %p95, %p96
    %p98 = scmp.ne.s32.totalorder %s87, %s90
    %p99 = scmp.eq.s32.totalorder %s14, 1
    %p100 = por %p98, %p99
    %p101 = scmp.ne.s32.totalorder %s90, %s91
    %p102 = scmp.eq.s32.totalorder %s14, 0
    %p103 = por %p101, %p102
    %p104 = scmp.ne.s32.totalorder %s90, %s91
    %p105 = scmp.eq.s32.totalorder %s15, 1
    %p106 = por %p104, %p105
    %p108 = scmp.ne.s32.totalorder %s91, %s107
    %p109 = scmp.eq.s32.totalorder %s15, 0
    %p110 = por %p108, %p109
    %p111 = scmp.le.s32.totalorder 1, %s9
    %p112 = scmp.lt.s32.totalorder %s9, 3
    %p113 = pnand %p111, %p112
    %p114 = pneg %p113
    // Predicated region
    $region9: #{conv_block.3} parent=5 // pred_check
      _
    $region10: #{conv_block.3} parent=5 // pred_check_branch
      %116 = sbr.rel (%p113) target = $region12
    $region11: #{conv_block.3} parent=5 // pred_region
      %s117 = ssub.s32 %s9, 1
      // Predicated region
      $region13: #{conv_block.3} parent=11 // pred_check
        %p118 = pneg %p56
      $region14: #{conv_block.3} parent=11 // pred_check_branch
        %120 = sbr.rel (%p118) target = $region16
      $region15: #{conv_block.3} parent=11 // pred_region
        _
      $region16: #{conv_block.3} parent=11 // pred_fallthru
        _
      // Predicated region
      $region17: #{conv_block.3} parent=11 // pred_check
        %p121 = pneg %p77
      $region18: #{conv_block.3} parent=11 // pred_check_branch
        %123 = sbr.rel (%p121) target = $region20
      $region19: #{conv_block.3} parent=11 // pred_region
        _
      $region20: #{conv_block.3} parent=11 // pred_fallthru
        _
    $region12: #{conv_block.3} parent=5 // pred_fallthru
      _
    %p124 = scmp.lt.s32.totalorder %s9, 2
    // Predicated region
    $region21: #{conv_block.3} parent=5 // pred_check
      %p125 = pneg %p124
    $region22: #{conv_block.3} parent=5 // pred_check_branch
      %127 = sbr.rel (%p125) target = $region24
    $region23: #{conv_block.3} parent=5 // pred_region
      // Predicated region
      $region25: #{conv_block.3} parent=23 // pred_check
        %p128 = pneg %p29
      $region26: #{conv_block.3} parent=23 // pred_check_branch
        %130 = sbr.rel (%p128) target = $region28
      $region27: #{conv_block.3} parent=23 // pred_region
        %p131 = scmp.lt.s32.totalorder %s9, 1
        %s132 = scalar_select %p131, %s9, 1
        %s133 = smul.addr %s132, 32
        %s134 = smul.addr %s133, 4
        %s135 = scalar_lea.vmem %s0, %s134
      $region28: #{conv_block.3} parent=23 // pred_fallthru
        _
    $region24: #{conv_block.3} parent=5 // pred_fallthru
      _
    %p136 = scmp.le.s32.totalorder 1, %s9
    %p137 = scmp.lt.s32.totalorder %s9, 3
    %p138 = pnand %p136, %p137
    %p139 = pneg %p138
    // Predicated region
    $region29: #{conv_block.3} parent=5 // pred_check
      _
    $region30: #{conv_block.3} parent=5 // pred_check_branch
      %141 = sbr.rel (%p138) target = $region32
    $region31: #{conv_block.3} parent=5 // pred_region
      %s142 = ssub.s32 %s9, 1
      %p143 = scmp.lt.s32.totalorder %s14, 1
      %s144 = scalar_select %p143, %s14, 1
      %s145 = smul.addr %s144, 32
      %s146 = smul.addr %s145, 4
      %s147 = scalar_lea.vmem %s0, %s146
      %p148 = pneg %p35
      %p149 = pneg %p32
      %p150 = pneg %p56
      %p151 = pneg %p53
      %p152 = pneg %p77
      %p153 = pneg %p74
      %p154 = pneg %p103
      %p155 = pneg %p100
      %p156 = scmp.lt.s32.totalorder %s14, 1
      %s157 = scalar_select %p156, %s14, 1
      %s158 = smul.addr %s157, 8
      %s159 = smul.addr %s158, 8
      %s160 = scalar_lea.vmem %s3, %s159
      %p161 = scmp.lt.s32.totalorder %s14, 1
      %s162 = scalar_select %p161, %s14, 1
      %s163 = smul.addr %s162, 32
      %s164 = smul.addr %s163, 4
      %s165 = scalar_lea.vmem %s0, %s164
      %p166 = scmp.lt.s32.totalorder %s14, 1
      %s167 = scalar_select %p166, %s14, 1
      %s168 = smul.addr %s167, 8
      %s169 = smul.addr %s168, 8
      %s170 = scalar_lea.vmem %s3, %s169
      %v171 = vld [vmem:[%s165] sm:$0xf]
      %v172 = vld [vmem:[%s165 + $0x4] sm:$0xf]
      %v173 = vld [vmem:[%s165 + $0x8] sm:$0xf]
      %v174 = vld [vmem:[%s165 + $0xc] sm:$0xf]
      %v175 = vld [vmem:[%s165 + $0x10] sm:$0xf]
      %v176 = vld [vmem:[%s165 + $0x14] sm:$0xf]
      %v177 = vld [vmem:[%s165 + $0x18] sm:$0xf]
      %v178 = vld [vmem:[%s165 + $0x1c] sm:$0xf]
      %v179 = vld [vmem:[%s165 + $0x20] sm:$0xf]
      %v180 = vld [vmem:[%s165 + $0x24] sm:$0xf]
      %v181 = vld [vmem:[%s165 + $0x28] sm:$0xf]
      %v182 = vld [vmem:[%s165 + $0x2c] sm:$0xf]
      %v183 = vld [vmem:[%s165 + $0x30] sm:$0xf]
      %v184 = vld [vmem:[%s165 + $0x34] sm:$0xf]
      %v185 = vld [vmem:[%s165 + $0x38] sm:$0xf]
      %v186 = vld [vmem:[%s165 + $0x3c] sm:$0xf]
      %v187 = vld [vmem:[%s165 + $0x40] sm:$0xf]
      %v188 = vld [vmem:[%s165 + $0x44] sm:$0xf]
      %v189 = vld [vmem:[%s165 + $0x48] sm:$0xf]
      %v190 = vld [vmem:[%s165 + $0x4c] sm:$0xf]
      %v191 = vld [vmem:[%s165 + $0x50] sm:$0xf]
      %v192 = vld [vmem:[%s165 + $0x54] sm:$0xf]
      %v193 = vld [vmem:[%s165 + $0x58] sm:$0xf]
      %v194 = vld [vmem:[%s165 + $0x5c] sm:$0xf]
      %v195 = vld [vmem:[%s165 + $0x60] sm:$0xf]
      %v196 = vld [vmem:[%s165 + $0x64] sm:$0xf]
      %v197 = vld [vmem:[%s165 + $0x68] sm:$0xf]
      %v198 = vld [vmem:[%s165 + $0x6c] sm:$0xf]
      %v199 = vld [vmem:[%s165 + $0x70] sm:$0xf]
      %v200 = vld [vmem:[%s165 + $0x74] sm:$0xf]
      %v201 = vld [vmem:[%s165 + $0x78] sm:$0xf]
      %v202 = vld [vmem:[%s165 + $0x7c] sm:$0xf]
      %v203 = vunpack.c.l.bf16 %v171
      %v204 = vunpack.c.l.bf16 %v172
      %v205 = vunpack.c.l.bf16 %v173
      %v206 = vunpack.c.l.bf16 %v174
      %v207 = vunpack.c.l.bf16 %v175
      %v208 = vunpack.c.l.bf16 %v176
      %v209 = vunpack.c.l.bf16 %v177
      %v210 = vunpack.c.l.bf16 %v178
      %v211 = vunpack.c.l.bf16 %v179
      %v212 = vunpack.c.l.bf16 %v180
      %v213 = vunpack.c.l.bf16 %v181
      %v214 = vunpack.c.l.bf16 %v182
      %v215 = vunpack.c.l.bf16 %v183
      %v216 = vunpack.c.l.bf16 %v184
      %v217 = vunpack.c.l.bf16 %v185
      %v218 = vunpack.c.l.bf16 %v186
      %v219 = vunpack.c.l.bf16 %v187
      %v220 = vunpack.c.l.bf16 %v188
      %v221 = vunpack.c.l.bf16 %v189
      %v222 = vunpack.c.l.bf16 %v190
      %v223 = vunpack.c.l.bf16 %v191
      %v224 = vunpack.c.l.bf16 %v192
      %v225 = vunpack.c.l.bf16 %v193
      %v226 = vunpack.c.l.bf16 %v194
      %v227 = vunpack.c.l.bf16 %v195
      %v228 = vunpack.c.l.bf16 %v196
      %v229 = vunpack.c.l.bf16 %v197
      %v230 = vunpack.c.l.bf16 %v198
      %v231 = vunpack.c.l.bf16 %v199
      %v232 = vunpack.c.l.bf16 %v200
      %v233 = vunpack.c.l.bf16 %v201
      %v234 = vunpack.c.l.bf16 %v202
      %v235 = vld [vmem:[%s1] sm:$0x1]
      %v237 = vlaneseq
      %v238 = vshrl.u32 %v237, 7
      %v239 = vsub.s32 0, %v238
      %v240 = vrot.slane %v235, %v239
      %v242 = vmul.f32 %v203, %v240
      %v243 = vmul.f32 %v204, %v240
      %v244 = vmul.f32 %v205, %v240
      %v245 = vmul.f32 %v206, %v240
      %v246 = vmul.f32 %v207, %v240
      %v247 = vmul.f32 %v208, %v240
      %v248 = vmul.f32 %v209, %v240
      %v249 = vmul.f32 %v210, %v240
      %v250 = vmul.f32 %v211, %v240
      %v251 = vmul.f32 %v212, %v240
      %v252 = vmul.f32 %v213, %v240
      %v253 = vmul.f32 %v214, %v240
      %v254 = vmul.f32 %v215, %v240
      %v255 = vmul.f32 %v216, %v240
      %v256 = vmul.f32 %v217, %v240
      %v257 = vmul.f32 %v218, %v240
      %v258 = vmul.f32 %v219, %v240
      %v259 = vmul.f32 %v220, %v240
      %v260 = vmul.f32 %v221, %v240
      %v261 = vmul.f32 %v222, %v240
      %v262 = vmul.f32 %v223, %v240
      %v263 = vmul.f32 %v224, %v240
      %v264 = vmul.f32 %v225, %v240
      %v265 = vmul.f32 %v226, %v240
      %v266 = vmul.f32 %v227, %v240
      %v267 = vmul.f32 %v228, %v240
      %v268 = vmul.f32 %v229, %v240
      %v269 = vmul.f32 %v230, %v240
      %v270 = vmul.f32 %v231, %v240
      %v271 = vmul.f32 %v232, %v240
      %v272 = vmul.f32 %v233, %v240
      %v273 = vmul.f32 %v234, %v240
      %v274 = vld [vmem:[%s2] sm:$0x1]
      %v276 = vlaneseq
      %v277 = vshrl.u32 %v276, 7
      %v278 = vsub.s32 0, %v277
      %v279 = vrot.slane %v274, %v278
      %v281 = vadd.f32 %v242, %v279
      %v282 = vadd.f32 %v243, %v279
      %v283 = vadd.f32 %v244, %v279
      %v284 = vadd.f32 %v245, %v279
      %v285 = vadd.f32 %v246, %v279
      %v286 = vadd.f32 %v247, %v279
      %v287 = vadd.f32 %v248, %v279
      %v288 = vadd.f32 %v249, %v279
      %v289 = vadd.f32 %v250, %v279
      %v290 = vadd.f32 %v251, %v279
      %v291 = vadd.f32 %v252, %v279
      %v292 = vadd.f32 %v253, %v279
      %v293 = vadd.f32 %v254, %v279
      %v294 = vadd.f32 %v255, %v279
      %v295 = vadd.f32 %v256, %v279
      %v296 = vadd.f32 %v257, %v279
      %v297 = vadd.f32 %v258, %v279
      %v298 = vadd.f32 %v259, %v279
      %v299 = vadd.f32 %v260, %v279
      %v300 = vadd.f32 %v261, %v279
      %v301 = vadd.f32 %v262, %v279
      %v302 = vadd.f32 %v263, %v279
      %v303 = vadd.f32 %v264, %v279
      %v304 = vadd.f32 %v265, %v279
      %v305 = vadd.f32 %v266, %v279
      %v306 = vadd.f32 %v267, %v279
      %v307 = vadd.f32 %v268, %v279
      %v308 = vadd.f32 %v269, %v279
      %v309 = vadd.f32 %v270, %v279
      %v310 = vadd.f32 %v271, %v279
      %v311 = vadd.f32 %v272, %v279
      %v312 = vadd.f32 %v273, %v279
      %v313 = vmax.f32 %v281, 0.0
      %v314 = vmax.f32 %v282, 0.0
      %v315 = vmax.f32 %v283, 0.0
      %v316 = vmax.f32 %v284, 0.0
      %v317 = vmax.f32 %v285, 0.0
      %v318 = vmax.f32 %v286, 0.0
      %v319 = vmax.f32 %v287, 0.0
      %v320 = vmax.f32 %v288, 0.0
      %v321 = vmax.f32 %v289, 0.0
      %v322 = vmax.f32 %v290, 0.0
      %v323 = vmax.f32 %v291, 0.0
      %v324 = vmax.f32 %v292, 0.0
      %v325 = vmax.f32 %v293, 0.0
      %v326 = vmax.f32 %v294, 0.0
      %v327 = vmax.f32 %v295, 0.0
      %v328 = vmax.f32 %v296, 0.0
      %v329 = vmax.f32 %v297, 0.0
      %v330 = vmax.f32 %v298, 0.0
      %v331 = vmax.f32 %v299, 0.0
      %v332 = vmax.f32 %v300, 0.0
      %v333 = vmax.f32 %v301, 0.0
      %v334 = vmax.f32 %v302, 0.0
      %v335 = vmax.f32 %v303, 0.0
      %v336 = vmax.f32 %v304, 0.0
      %v337 = vmax.f32 %v305, 0.0
      %v338 = vmax.f32 %v306, 0.0
      %v339 = vmax.f32 %v307, 0.0
      %v340 = vmax.f32 %v308, 0.0
      %v341 = vmax.f32 %v309, 0.0
      %v342 = vmax.f32 %v310, 0.0
      %v343 = vmax.f32 %v311, 0.0
      %v344 = vmax.f32 %v312, 0.0
      %v377 = vcombine.high %v313, %v313
      %v379 = vunpack.c.l.s4 1983009808
      %v380 = vunpack.c.0.s8 %v379
      %v381 = vlaneseq
      %v382 = vshrl.u32 %v381, 7
      %v383 = vsub.s32 %v380, %v382
      %v384 = vrot.slane %v313, %v383
      %v386 = vunpack.c.l.s4 1983009808
      %v387 = vunpack.c.0.s8 %v386
      %v388 = vlaneseq
      %v389 = vshrl.u32 %v388, 7
      %v390 = vsub.s32 %v387, %v389
      %v391 = vrot.slane %v377, %v390
      %v392 = vcombine.high %v384, %v384
      %v393 = vcombine.high %v391, %v391
      %v394 = vcombine.high %v314, %v314
      %v396 = vunpack.c.l.s4 1983009808
      %v397 = vunpack.c.0.s8 %v396
      %v398 = vlaneseq
      %v399 = vshrl.u32 %v398, 7
      %v400 = vsub.s32 %v397, %v399
      %v401 = vrot.slane %v314, %v400
      %v403 = vunpack.c.l.s4 1983009808
      %v404 = vunpack.c.0.s8 %v403
      %v405 = vlaneseq
      %v406 = vshrl.u32 %v405, 7
      %v407 = vsub.s32 %v404, %v406
      %v408 = vrot.slane %v394, %v407
      %v409 = vcombine.high %v401, %v401
      %v410 = vcombine.high %v408, %v408
      %v411 = vcombine.high %v315, %v315
      %v413 = vunpack.c.l.s4 1983009808
      %v414 = vunpack.c.0.s8 %v413
      %v415 = vlaneseq
      %v416 = vshrl.u32 %v415, 7
      %v417 = vsub.s32 %v414, %v416
      %v418 = vrot.slane %v315, %v417
      %v420 = vunpack.c.l.s4 1983009808
      %v421 = vunpack.c.0.s8 %v420
      %v422 = vlaneseq
      %v423 = vshrl.u32 %v422, 7
      %v424 = vsub.s32 %v421, %v423
      %v425 = vrot.slane %v411, %v424
      %v426 = vcombine.high %v418, %v418
      %v427 = vcombine.high %v425, %v425
      %v428 = vcombine.high %v316, %v316
      %v430 = vunpack.c.l.s4 1983009808
      %v431 = vunpack.c.0.s8 %v430
      %v432 = vlaneseq
      %v433 = vshrl.u32 %v432, 7
      %v434 = vsub.s32 %v431, %v433
      %v435 = vrot.slane %v316, %v434
      %v437 = vunpack.c.l.s4 1983009808
      %v438 = vunpack.c.0.s8 %v437
      %v439 = vlaneseq
      %v440 = vshrl.u32 %v439, 7
      %v441 = vsub.s32 %v438, %v440
      %v442 = vrot.slane %v428, %v441
      %v443 = vcombine.high %v435, %v435
      %v444 = vcombine.high %v442, %v442
      %v445 = vcombine.high %v317, %v317
      %v447 = vunpack.c.l.s4 1983009808
      %v448 = vunpack.c.0.s8 %v447
      %v449 = vlaneseq
      %v450 = vshrl.u32 %v449, 7
      %v451 = vsub.s32 %v448, %v450
      %v452 = vrot.slane %v317, %v451
      %v454 = vunpack.c.l.s4 1983009808
      %v455 = vunpack.c.0.s8 %v454
      %v456 = vlaneseq
      %v457 = vshrl.u32 %v456, 7
      %v458 = vsub.s32 %v455, %v457
      %v459 = vrot.slane %v445, %v458
      %v460 = vcombine.high %v452, %v452
      %v461 = vcombine.high %v459, %v459
      %v462 = vcombine.high %v318, %v318
      %v464 = vunpack.c.l.s4 1983009808
      %v465 = vunpack.c.0.s8 %v464
      %v466 = vlaneseq
      %v467 = vshrl.u32 %v466, 7
      %v468 = vsub.s32 %v465, %v467
      %v469 = vrot.slane %v318, %v468
      %v471 = vunpack.c.l.s4 1983009808
      %v472 = vunpack.c.0.s8 %v471
      %v473 = vlaneseq
      %v474 = vshrl.u32 %v473, 7
      %v475 = vsub.s32 %v472, %v474
      %v476 = vrot.slane %v462, %v475
      %v477 = vcombine.high %v469, %v469
      %v478 = vcombine.high %v476, %v476
      %v479 = vcombine.high %v319, %v319
      %v481 = vunpack.c.l.s4 1983009808
      %v482 = vunpack.c.0.s8 %v481
      %v483 = vlaneseq
      %v484 = vshrl.u32 %v483, 7
      %v485 = vsub.s32 %v482, %v484
      %v486 = vrot.slane %v319, %v485
      %v488 = vunpack.c.l.s4 1983009808
      %v489 = vunpack.c.0.s8 %v488
      %v490 = vlaneseq
      %v491 = vshrl.u32 %v490, 7
      %v492 = vsub.s32 %v489, %v491
      %v493 = vrot.slane %v479, %v492
      %v494 = vcombine.high %v486, %v486
      %v495 = vcombine.high %v493, %v493
      %v496 = vcombine.high %v320, %v320
      %v498 = vunpack.c.l.s4 1983009808
      %v499 = vunpack.c.0.s8 %v498
      %v500 = vlaneseq
      %v501 = vshrl.u32 %v500, 7
      %v502 = vsub.s32 %v499, %v501
      %v503 = vrot.slane %v320, %v502
      %v505 = vunpack.c.l.s4 1983009808
      %v506 = vunpack.c.0.s8 %v505
      %v507 = vlaneseq
      %v508 = vshrl.u32 %v507, 7
      %v509 = vsub.s32 %v506, %v508
      %v510 = vrot.slane %v496, %v509
      %v511 = vcombine.high %v503, %v503
      %v512 = vcombine.high %v510, %v510
      %v513 = vcombine.high %v321, %v321
      %v515 = vunpack.c.l.s4 1983009808
      %v516 = vunpack.c.0.s8 %v515
      %v517 = vlaneseq
      %v518 = vshrl.u32 %v517, 7
      %v519 = vsub.s32 %v516, %v518
      %v520 = vrot.slane %v321, %v519
      %v522 = vunpack.c.l.s4 1983009808
      %v523 = vunpack.c.0.s8 %v522
      %v524 = vlaneseq
      %v525 = vshrl.u32 %v524, 7
      %v526 = vsub.s32 %v523, %v525
      %v527 = vrot.slane %v513, %v526
      %v528 = vcombine.high %v520, %v520
      %v529 = vcombine.high %v527, %v527
      %v530 = vcombine.high %v322, %v322
      %v532 = vunpack.c.l.s4 1983009808
      %v533 = vunpack.c.0.s8 %v532
      %v534 = vlaneseq
      %v535 = vshrl.u32 %v534, 7
      %v536 = vsub.s32 %v533, %v535
      %v537 = vrot.slane %v322, %v536
      %v539 = vunpack.c.l.s4 1983009808
      %v540 = vunpack.c.0.s8 %v539
      %v541 = vlaneseq
      %v542 = vshrl.u32 %v541, 7
      %v543 = vsub.s32 %v540, %v542
      %v544 = vrot.slane %v530, %v543
      %v545 = vcombine.high %v537, %v537
      %v546 = vcombine.high %v544, %v544
      %v547 = vcombine.high %v323, %v323
      %v549 = vunpack.c.l.s4 1983009808
      %v550 = vunpack.c.0.s8 %v549
      %v551 = vlaneseq
      %v552 = vshrl.u32 %v551, 7
      %v553 = vsub.s32 %v550, %v552
      %v554 = vrot.slane %v323, %v553
      %v556 = vunpack.c.l.s4 1983009808
      %v557 = vunpack.c.0.s8 %v556
      %v558 = vlaneseq
      %v559 = vshrl.u32 %v558, 7
      %v560 = vsub.s32 %v557, %v559
      %v561 = vrot.slane %v547, %v560
      %v562 = vcombine.high %v554, %v554
      %v563 = vcombine.high %v561, %v561
      %v564 = vcombine.high %v324, %v324
      %v566 = vunpack.c.l.s4 1983009808
      %v567 = vunpack.c.0.s8 %v566
      %v568 = vlaneseq
      %v569 = vshrl.u32 %v568, 7
      %v570 = vsub.s32 %v567, %v569
      %v571 = vrot.slane %v324, %v570
      %v573 = vunpack.c.l.s4 1983009808
      %v574 = vunpack.c.0.s8 %v573
      %v575 = vlaneseq
      %v576 = vshrl.u32 %v575, 7
      %v577 = vsub.s32 %v574, %v576
      %v578 = vrot.slane %v564, %v577
      %v579 = vcombine.high %v571, %v571
      %v580 = vcombine.high %v578, %v578
      %v581 = vcombine.high %v325, %v325
      %v583 = vunpack.c.l.s4 1983009808
      %v584 = vunpack.c.0.s8 %v583
      %v585 = vlaneseq
      %v586 = vshrl.u32 %v585, 7
      %v587 = vsub.s32 %v584, %v586
      %v588 = vrot.slane %v325, %v587
      %v590 = vunpack.c.l.s4 1983009808
      %v591 = vunpack.c.0.s8 %v590
      %v592 = vlaneseq
      %v593 = vshrl.u32 %v592, 7
      %v594 = vsub.s32 %v591, %v593
      %v595 = vrot.slane %v581, %v594
      %v596 = vcombine.high %v588, %v588
      %v597 = vcombine.high %v595, %v595
      %v598 = vcombine.high %v326, %v326
      %v600 = vunpack.c.l.s4 1983009808
      %v601 = vunpack.c.0.s8 %v600
      %v602 = vlaneseq
      %v603 = vshrl.u32 %v602, 7
      %v604 = vsub.s32 %v601, %v603
      %v605 = vrot.slane %v326, %v604
      %v607 = vunpack.c.l.s4 1983009808
      %v608 = vunpack.c.0.s8 %v607
      %v609 = vlaneseq
      %v610 = vshrl.u32 %v609, 7
      %v611 = vsub.s32 %v608, %v610
      %v612 = vrot.slane %v598, %v611
      %v613 = vcombine.high %v605, %v605
      %v614 = vcombine.high %v612, %v612
      %v615 = vcombine.high %v327, %v327
      %v617 = vunpack.c.l.s4 1983009808
      %v618 = vunpack.c.0.s8 %v617
      %v619 = vlaneseq
      %v620 = vshrl.u32 %v619, 7
      %v621 = vsub.s32 %v618, %v620
      %v622 = vrot.slane %v327, %v621
      %v624 = vunpack.c.l.s4 1983009808
      %v625 = vunpack.c.0.s8 %v624
      %v626 = vlaneseq
      %v627 = vshrl.u32 %v626, 7
      %v628 = vsub.s32 %v625, %v627
      %v629 = vrot.slane %v615, %v628
      %v630 = vcombine.high %v622, %v622
      %v631 = vcombine.high %v629, %v629
      %v632 = vcombine.high %v328, %v328
      %v634 = vunpack.c.l.s4 1983009808
      %v635 = vunpack.c.0.s8 %v634
      %v636 = vlaneseq
      %v637 = vshrl.u32 %v636, 7
      %v638 = vsub.s32 %v635, %v637
      %v639 = vrot.slane %v328, %v638
      %v641 = vunpack.c.l.s4 1983009808
      %v642 = vunpack.c.0.s8 %v641
      %v643 = vlaneseq
      %v644 = vshrl.u32 %v643, 7
      %v645 = vsub.s32 %v642, %v644
      %v646 = vrot.slane %v632, %v645
      %v647 = vcombine.high %v639, %v639
      %v648 = vcombine.high %v646, %v646
      %v649 = vcombine.high %v329, %v329
      %v651 = vunpack.c.l.s4 1983009808
      %v652 = vunpack.c.0.s8 %v651
      %v653 = vlaneseq
      %v654 = vshrl.u32 %v653, 7
      %v655 = vsub.s32 %v652, %v654
      %v656 = vrot.slane %v329, %v655
      %v658 = vunpack.c.l.s4 1983009808
      %v659 = vunpack.c.0.s8 %v658
      %v660 = vlaneseq
      %v661 = vshrl.u32 %v660, 7
      %v662 = vsub.s32 %v659, %v661
      %v663 = vrot.slane %v649, %v662
      %v664 = vcombine.high %v656, %v656
      %v665 = vcombine.high %v663, %v663
      %v666 = vcombine.high %v330, %v330
      %v668 = vunpack.c.l.s4 1983009808
      %v669 = vunpack.c.0.s8 %v668
      %v670 = vlaneseq
      %v671 = vshrl.u32 %v670, 7
      %v672 = vsub.s32 %v669, %v671
      %v673 = vrot.slane %v330, %v672
      %v675 = vunpack.c.l.s4 1983009808
      %v676 = vunpack.c.0.s8 %v675
      %v677 = vlaneseq
      %v678 = vshrl.u32 %v677, 7
      %v679 = vsub.s32 %v676, %v678
      %v680 = vrot.slane %v666, %v679
      %v681 = vcombine.high %v673, %v673
      %v682 = vcombine.high %v680, %v680
      %v683 = vcombine.high %v331, %v331
      %v685 = vunpack.c.l.s4 1983009808
      %v686 = vunpack.c.0.s8 %v685
      %v687 = vlaneseq
      %v688 = vshrl.u32 %v687, 7
      %v689 = vsub.s32 %v686, %v688
      %v690 = vrot.slane %v331, %v689
      %v692 = vunpack.c.l.s4 1983009808
      %v693 = vunpack.c.0.s8 %v692
      %v694 = vlaneseq
      %v695 = vshrl.u32 %v694, 7
      %v696 = vsub.s32 %v693, %v695
      %v697 = vrot.slane %v683, %v696
      %v698 = vcombine.high %v690, %v690
      %v699 = vcombine.high %v697, %v697
      %v700 = vcombine.high %v332, %v332
      %v702 = vunpack.c.l.s4 1983009808
      %v703 = vunpack.c.0.s8 %v702
      %v704 = vlaneseq
      %v705 = vshrl.u32 %v704, 7
      %v706 = vsub.s32 %v703, %v705
      %v707 = vrot.slane %v332, %v706
      %v709 = vunpack.c.l.s4 1983009808
      %v710 = vunpack.c.0.s8 %v709
      %v711 = vlaneseq
      %v712 = vshrl.u32 %v711, 7
      %v713 = vsub.s32 %v710, %v712
      %v714 = vrot.slane %v700, %v713
      %v715 = vcombine.high %v707, %v707
      %v716 = vcombine.high %v714, %v714
      %v717 = vcombine.high %v333, %v333
      %v719 = vunpack.c.l.s4 1983009808
      %v720 = vunpack.c.0.s8 %v719
      %v721 = vlaneseq
      %v722 = vshrl.u32 %v721, 7
      %v723 = vsub.s32 %v720, %v722
      %v724 = vrot.slane %v333, %v723
      %v726 = vunpack.c.l.s4 1983009808
      %v727 = vunpack.c.0.s8 %v726
      %v728 = vlaneseq
      %v729 = vshrl.u32 %v728, 7
      %v730 = vsub.s32 %v727, %v729
      %v731 = vrot.slane %v717, %v730
      %v732 = vcombine.high %v724, %v724
      %v733 = vcombine.high %v731, %v731
      %v734 = vcombine.high %v334, %v334
      %v736 = vunpack.c.l.s4 1983009808
      %v737 = vunpack.c.0.s8 %v736
      %v738 = vlaneseq
      %v739 = vshrl.u32 %v738, 7
      %v740 = vsub.s32 %v737, %v739
      %v741 = vrot.slane %v334, %v740
      %v743 = vunpack.c.l.s4 1983009808
      %v744 = vunpack.c.0.s8 %v743
      %v745 = vlaneseq
      %v746 = vshrl.u32 %v745, 7
      %v747 = vsub.s32 %v744, %v746
      %v748 = vrot.slane %v734, %v747
      %v749 = vcombine.high %v741, %v741
      %v750 = vcombine.high %v748, %v748
      %v751 = vcombine.high %v335, %v335
      %v753 = vunpack.c.l.s4 1983009808
      %v754 = vunpack.c.0.s8 %v753
      %v755 = vlaneseq
      %v756 = vshrl.u32 %v755, 7
      %v757 = vsub.s32 %v754, %v756
      %v758 = vrot.slane %v335, %v757
      %v760 = vunpack.c.l.s4 1983009808
      %v761 = vunpack.c.0.s8 %v760
      %v762 = vlaneseq
      %v763 = vshrl.u32 %v762, 7
      %v764 = vsub.s32 %v761, %v763
      %v765 = vrot.slane %v751, %v764
      %v766 = vcombine.high %v758, %v758
      %v767 = vcombine.high %v765, %v765
      %v768 = vcombine.high %v336, %v336
      %v770 = vunpack.c.l.s4 1983009808
      %v771 = vunpack.c.0.s8 %v770
      %v772 = vlaneseq
      %v773 = vshrl.u32 %v772, 7
      %v774 = vsub.s32 %v771, %v773
      %v775 = vrot.slane %v336, %v774
      %v777 = vunpack.c.l.s4 1983009808
      %v778 = vunpack.c.0.s8 %v777
      %v779 = vlaneseq
      %v780 = vshrl.u32 %v779, 7
      %v781 = vsub.s32 %v778, %v780
      %v782 = vrot.slane %v768, %v781
      %v783 = vcombine.high %v775, %v775
      %v784 = vcombine.high %v782, %v782
      %v785 = vcombine.high %v337, %v337
      %v787 = vunpack.c.l.s4 1983009808
      %v788 = vunpack.c.0.s8 %v787
      %v789 = vlaneseq
      %v790 = vshrl.u32 %v789, 7
      %v791 = vsub.s32 %v788, %v790
      %v792 = vrot.slane %v337, %v791
      %v794 = vunpack.c.l.s4 1983009808
      %v795 = vunpack.c.0.s8 %v794
      %v796 = vlaneseq
      %v797 = vshrl.u32 %v796, 7
      %v798 = vsub.s32 %v795, %v797
      %v799 = vrot.slane %v785, %v798
      %v800 = vcombine.high %v792, %v792
      %v801 = vcombine.high %v799, %v799
      %v802 = vcombine.high %v338, %v338
      %v804 = vunpack.c.l.s4 1983009808
      %v805 = vunpack.c.0.s8 %v804
      %v806 = vlaneseq
      %v807 = vshrl.u32 %v806, 7
      %v808 = vsub.s32 %v805, %v807
      %v809 = vrot.slane %v338, %v808
      %v811 = vunpack.c.l.s4 1983009808
      %v812 = vunpack.c.0.s8 %v811
      %v813 = vlaneseq
      %v814 = vshrl.u32 %v813, 7
      %v815 = vsub.s32 %v812, %v814
      %v816 = vrot.slane %v802, %v815
      %v817 = vcombine.high %v809, %v809
      %v818 = vcombine.high %v816, %v816
      %v819 = vcombine.high %v339, %v339
      %v821 = vunpack.c.l.s4 1983009808
      %v822 = vunpack.c.0.s8 %v821
      %v823 = vlaneseq
      %v824 = vshrl.u32 %v823, 7
      %v825 = vsub.s32 %v822, %v824
      %v826 = vrot.slane %v339, %v825
      %v828 = vunpack.c.l.s4 1983009808
      %v829 = vunpack.c.0.s8 %v828
      %v830 = vlaneseq
      %v831 = vshrl.u32 %v830, 7
      %v832 = vsub.s32 %v829, %v831
      %v833 = vrot.slane %v819, %v832
      %v834 = vcombine.high %v826, %v826
      %v835 = vcombine.high %v833, %v833
      %v836 = vcombine.high %v340, %v340
      %v838 = vunpack.c.l.s4 1983009808
      %v839 = vunpack.c.0.s8 %v838
      %v840 = vlaneseq
      %v841 = vshrl.u32 %v840, 7
      %v842 = vsub.s32 %v839, %v841
      %v843 = vrot.slane %v340, %v842
      %v845 = vunpack.c.l.s4 1983009808
      %v846 = vunpack.c.0.s8 %v845
      %v847 = vlaneseq
      %v848 = vshrl.u32 %v847, 7
      %v849 = vsub.s32 %v846, %v848
      %v850 = vrot.slane %v836, %v849
      %v851 = vcombine.high %v843, %v843
      %v852 = vcombine.high %v850, %v850
      %v853 = vcombine.high %v341, %v341
      %v855 = vunpack.c.l.s4 1983009808
      %v856 = vunpack.c.0.s8 %v855
      %v857 = vlaneseq
      %v858 = vshrl.u32 %v857, 7
      %v859 = vsub.s32 %v856, %v858
      %v860 = vrot.slane %v341, %v859
      %v862 = vunpack.c.l.s4 1983009808
      %v863 = vunpack.c.0.s8 %v862
      %v864 = vlaneseq
      %v865 = vshrl.u32 %v864, 7
      %v866 = vsub.s32 %v863, %v865
      %v867 = vrot.slane %v853, %v866
      %v868 = vcombine.high %v860, %v860
      %v869 = vcombine.high %v867, %v867
      %v870 = vcombine.high %v342, %v342
      %v872 = vunpack.c.l.s4 1983009808
      %v873 = vunpack.c.0.s8 %v872
      %v874 = vlaneseq
      %v875 = vshrl.u32 %v874, 7
      %v876 = vsub.s32 %v873, %v875
      %v877 = vrot.slane %v342, %v876
      %v879 = vunpack.c.l.s4 1983009808
      %v880 = vunpack.c.0.s8 %v879
      %v881 = vlaneseq
      %v882 = vshrl.u32 %v881, 7
      %v883 = vsub.s32 %v880, %v882
      %v884 = vrot.slane %v870, %v883
      %v885 = vcombine.high %v877, %v877
      %v886 = vcombine.high %v884, %v884
      %v887 = vcombine.high %v343, %v343
      %v889 = vunpack.c.l.s4 1983009808
      %v890 = vunpack.c.0.s8 %v889
      %v891 = vlaneseq
      %v892 = vshrl.u32 %v891, 7
      %v893 = vsub.s32 %v890, %v892
      %v894 = vrot.slane %v343, %v893
      %v896 = vunpack.c.l.s4 1983009808
      %v897 = vunpack.c.0.s8 %v896
      %v898 = vlaneseq
      %v899 = vshrl.u32 %v898, 7
      %v900 = vsub.s32 %v897, %v899
      %v901 = vrot.slane %v887, %v900
      %v902 = vcombine.high %v894, %v894
      %v903 = vcombine.high %v901, %v901
      %v904 = vcombine.high %v344, %v344
      %v906 = vunpack.c.l.s4 1983009808
      %v907 = vunpack.c.0.s8 %v906
      %v908 = vlaneseq
      %v909 = vshrl.u32 %v908, 7
      %v910 = vsub.s32 %v907, %v909
      %v911 = vrot.slane %v344, %v910
      %v913 = vunpack.c.l.s4 1983009808
      %v914 = vunpack.c.0.s8 %v913
      %v915 = vlaneseq
      %v916 = vshrl.u32 %v915, 7
      %v917 = vsub.s32 %v914, %v916
      %v918 = vrot.slane %v904, %v917
      %v919 = vcombine.high %v911, %v911
      %v920 = vcombine.high %v918, %v918
      %vm1049 = vcmask 1041408
      %v1050 = vsel %vm1049, %v384, -inf
      %v1051 = vrot.slane %v1050, 4
      %v1052 = vmax.f32 %v1050, %v1051
      %v1053 = vrot.slane %v1052, 2
      %v1054 = vmax.f32 %v1052, %v1053
      %v1055 = vrot.slane %v1054, 1
      %v1056 = vmax.f32 %v1054, %v1055
      %v1057 = vsel %vm1049, %v392, -inf
      %v1058 = vrot.slane %v1057, 4
      %v1059 = vmax.f32 %v1057, %v1058
      %v1060 = vrot.slane %v1059, 2
      %v1061 = vmax.f32 %v1059, %v1060
      %v1062 = vrot.slane %v1061, 1
      %v1063 = vmax.f32 %v1061, %v1062
      %v1064 = vsel %vm1049, %v391, -inf
      %v1065 = vrot.slane %v1064, 4
      %v1066 = vmax.f32 %v1064, %v1065
      %v1067 = vrot.slane %v1066, 2
      %v1068 = vmax.f32 %v1066, %v1067
      %v1069 = vrot.slane %v1068, 1
      %v1070 = vmax.f32 %v1068, %v1069
      %v1071 = vsel %vm1049, %v393, -inf
      %v1072 = vrot.slane %v1071, 4
      %v1073 = vmax.f32 %v1071, %v1072
      %v1074 = vrot.slane %v1073, 2
      %v1075 = vmax.f32 %v1073, %v1074
      %v1076 = vrot.slane %v1075, 1
      %v1077 = vmax.f32 %v1075, %v1076
      %v1078 = vsel %vm1049, %v401, -inf
      %v1079 = vrot.slane %v1078, 4
      %v1080 = vmax.f32 %v1078, %v1079
      %v1081 = vrot.slane %v1080, 2
      %v1082 = vmax.f32 %v1080, %v1081
      %v1083 = vrot.slane %v1082, 1
      %v1084 = vmax.f32 %v1082, %v1083
      %v1085 = vsel %vm1049, %v409, -inf
      %v1086 = vrot.slane %v1085, 4
      %v1087 = vmax.f32 %v1085, %v1086
      %v1088 = vrot.slane %v1087, 2
      %v1089 = vmax.f32 %v1087, %v1088
      %v1090 = vrot.slane %v1089, 1
      %v1091 = vmax.f32 %v1089, %v1090
      %v1092 = vsel %vm1049, %v408, -inf
      %v1093 = vrot.slane %v1092, 4
      %v1094 = vmax.f32 %v1092, %v1093
      %v1095 = vrot.slane %v1094, 2
      %v1096 = vmax.f32 %v1094, %v1095
      %v1097 = vrot.slane %v1096, 1
      %v1098 = vmax.f32 %v1096, %v1097
      %v1099 = vsel %vm1049, %v410, -inf
      %v1100 = vrot.slane %v1099, 4
      %v1101 = vmax.f32 %v1099, %v1100
      %v1102 = vrot.slane %v1101, 2
      %v1103 = vmax.f32 %v1101, %v1102
      %v1104 = vrot.slane %v1103, 1
      %v1105 = vmax.f32 %v1103, %v1104
      %v1106 = vsel %vm1049, %v418, -inf
      %v1107 = vrot.slane %v1106, 4
      %v1108 = vmax.f32 %v1106, %v1107
      %v1109 = vrot.slane %v1108, 2
      %v1110 = vmax.f32 %v1108, %v1109
      %v1111 = vrot.slane %v1110, 1
      %v1112 = vmax.f32 %v1110, %v1111
      %v1113 = vsel %vm1049, %v426, -inf
      %v1114 = vrot.slane %v1113, 4
      %v1115 = vmax.f32 %v1113, %v1114
      %v1116 = vrot.slane %v1115, 2
      %v1117 = vmax.f32 %v1115, %v1116
      %v1118 = vrot.slane %v1117, 1
      %v1119 = vmax.f32 %v1117, %v1118
      %v1120 = vsel %vm1049, %v425, -inf
      %v1121 = vrot.slane %v1120, 4
      %v1122 = vmax.f32 %v1120, %v1121
      %v1123 = vrot.slane %v1122, 2
      %v1124 = vmax.f32 %v1122, %v1123
      %v1125 = vrot.slane %v1124, 1
      %v1126 = vmax.f32 %v1124, %v1125
      %v1127 = vsel %vm1049, %v427, -inf
      %v1128 = vrot.slane %v1127, 4
      %v1129 = vmax.f32 %v1127, %v1128
      %v1130 = vrot.slane %v1129, 2
      %v1131 = vmax.f32 %v1129, %v1130
      %v1132 = vrot.slane %v1131, 1
      %v1133 = vmax.f32 %v1131, %v1132
      %v1134 = vsel %vm1049, %v435, -inf
      %v1135 = vrot.slane %v1134, 4
      %v1136 = vmax.f32 %v1134, %v1135
      %v1137 = vrot.slane %v1136, 2
      %v1138 = vmax.f32 %v1136, %v1137
      %v1139 = vrot.slane %v1138, 1
      %v1140 = vmax.f32 %v1138, %v1139
      %v1141 = vsel %vm1049, %v443, -inf
      %v1142 = vrot.slane %v1141, 4
      %v1143 = vmax.f32 %v1141, %v1142
      %v1144 = vrot.slane %v1143, 2
      %v1145 = vmax.f32 %v1143, %v1144
      %v1146 = vrot.slane %v1145, 1
      %v1147 = vmax.f32 %v1145, %v1146
      %v1148 = vsel %vm1049, %v442, -inf
      %v1149 = vrot.slane %v1148, 4
      %v1150 = vmax.f32 %v1148, %v1149
      %v1151 = vrot.slane %v1150, 2
      %v1152 = vmax.f32 %v1150, %v1151
      %v1153 = vrot.slane %v1152, 1
      %v1154 = vmax.f32 %v1152, %v1153
      %v1155 = vsel %vm1049, %v444, -inf
      %v1156 = vrot.slane %v1155, 4
      %v1157 = vmax.f32 %v1155, %v1156
      %v1158 = vrot.slane %v1157, 2
      %v1159 = vmax.f32 %v1157, %v1158
      %v1160 = vrot.slane %v1159, 1
      %v1161 = vmax.f32 %v1159, %v1160
      %v1162 = vsel %vm1049, %v452, -inf
      %v1163 = vrot.slane %v1162, 4
      %v1164 = vmax.f32 %v1162, %v1163
      %v1165 = vrot.slane %v1164, 2
      %v1166 = vmax.f32 %v1164, %v1165
      %v1167 = vrot.slane %v1166, 1
      %v1168 = vmax.f32 %v1166, %v1167
      %v1169 = vsel %vm1049, %v460, -inf
      %v1170 = vrot.slane %v1169, 4
      %v1171 = vmax.f32 %v1169, %v1170
      %v1172 = vrot.slane %v1171, 2
      %v1173 = vmax.f32 %v1171, %v1172
      %v1174 = vrot.slane %v1173, 1
      %v1175 = vmax.f32 %v1173, %v1174
      %v1176 = vsel %vm1049, %v459, -inf
      %v1177 = vrot.slane %v1176, 4
      %v1178 = vmax.f32 %v1176, %v1177
      %v1179 = vrot.slane %v1178, 2
      %v1180 = vmax.f32 %v1178, %v1179
      %v1181 = vrot.slane %v1180, 1
      %v1182 = vmax.f32 %v1180, %v1181
      %v1183 = vsel %vm1049, %v461, -inf
      %v1184 = vrot.slane %v1183, 4
      %v1185 = vmax.f32 %v1183, %v1184
      %v1186 = vrot.slane %v1185, 2
      %v1187 = vmax.f32 %v1185, %v1186
      %v1188 = vrot.slane %v1187, 1
      %v1189 = vmax.f32 %v1187, %v1188
      %v1190 = vsel %vm1049, %v469, -inf
      %v1191 = vrot.slane %v1190, 4
      %v1192 = vmax.f32 %v1190, %v1191
      %v1193 = vrot.slane %v1192, 2
      %v1194 = vmax.f32 %v1192, %v1193
      %v1195 = vrot.slane %v1194, 1
      %v1196 = vmax.f32 %v1194, %v1195
      %v1197 = vsel %vm1049, %v477, -inf
      %v1198 = vrot.slane %v1197, 4
      %v1199 = vmax.f32 %v1197, %v1198
      %v1200 = vrot.slane %v1199, 2
      %v1201 = vmax.f32 %v1199, %v1200
      %v1202 = vrot.slane %v1201, 1
      %v1203 = vmax.f32 %v1201, %v1202
      %v1204 = vsel %vm1049, %v476, -inf
      %v1205 = vrot.slane %v1204, 4
      %v1206 = vmax.f32 %v1204, %v1205
      %v1207 = vrot.slane %v1206, 2
      %v1208 = vmax.f32 %v1206, %v1207
      %v1209 = vrot.slane %v1208, 1
      %v1210 = vmax.f32 %v1208, %v1209
      %v1211 = vsel %vm1049, %v478, -inf
      %v1212 = vrot.slane %v1211, 4
      %v1213 = vmax.f32 %v1211, %v1212
      %v1214 = vrot.slane %v1213, 2
      %v1215 = vmax.f32 %v1213, %v1214
      %v1216 = vrot.slane %v1215, 1
      %v1217 = vmax.f32 %v1215, %v1216
      %v1218 = vsel %vm1049, %v486, -inf
      %v1219 = vrot.slane %v1218, 4
      %v1220 = vmax.f32 %v1218, %v1219
      %v1221 = vrot.slane %v1220, 2
      %v1222 = vmax.f32 %v1220, %v1221
      %v1223 = vrot.slane %v1222, 1
      %v1224 = vmax.f32 %v1222, %v1223
      %v1225 = vsel %vm1049, %v494, -inf
      %v1226 = vrot.slane %v1225, 4
      %v1227 = vmax.f32 %v1225, %v1226
      %v1228 = vrot.slane %v1227, 2
      %v1229 = vmax.f32 %v1227, %v1228
      %v1230 = vrot.slane %v1229, 1
      %v1231 = vmax.f32 %v1229, %v1230
      %v1232 = vsel %vm1049, %v493, -inf
      %v1233 = vrot.slane %v1232, 4
      %v1234 = vmax.f32 %v1232, %v1233
      %v1235 = vrot.slane %v1234, 2
      %v1236 = vmax.f32 %v1234, %v1235
      %v1237 = vrot.slane %v1236, 1
      %v1238 = vmax.f32 %v1236, %v1237
      %v1239 = vsel %vm1049, %v495, -inf
      %v1240 = vrot.slane %v1239, 4
      %v1241 = vmax.f32 %v1239, %v1240
      %v1242 = vrot.slane %v1241, 2
      %v1243 = vmax.f32 %v1241, %v1242
      %v1244 = vrot.slane %v1243, 1
      %v1245 = vmax.f32 %v1243, %v1244
      %v1246 = vsel %vm1049, %v503, -inf
      %v1247 = vrot.slane %v1246, 4
      %v1248 = vmax.f32 %v1246, %v1247
      %v1249 = vrot.slane %v1248, 2
      %v1250 = vmax.f32 %v1248, %v1249
      %v1251 = vrot.slane %v1250, 1
      %v1252 = vmax.f32 %v1250, %v1251
      %v1253 = vsel %vm1049, %v511, -inf
      %v1254 = vrot.slane %v1253, 4
      %v1255 = vmax.f32 %v1253, %v1254
      %v1256 = vrot.slane %v1255, 2
      %v1257 = vmax.f32 %v1255, %v1256
      %v1258 = vrot.slane %v1257, 1
      %v1259 = vmax.f32 %v1257, %v1258
      %v1260 = vsel %vm1049, %v510, -inf
      %v1261 = vrot.slane %v1260, 4
      %v1262 = vmax.f32 %v1260, %v1261
      %v1263 = vrot.slane %v1262, 2
      %v1264 = vmax.f32 %v1262, %v1263
      %v1265 = vrot.slane %v1264, 1
      %v1266 = vmax.f32 %v1264, %v1265
      %v1267 = vsel %vm1049, %v512, -inf
      %v1268 = vrot.slane %v1267, 4
      %v1269 = vmax.f32 %v1267, %v1268
      %v1270 = vrot.slane %v1269, 2
      %v1271 = vmax.f32 %v1269, %v1270
      %v1272 = vrot.slane %v1271, 1
      %v1273 = vmax.f32 %v1271, %v1272
      %v1274 = vsel %vm1049, %v520, -inf
      %v1275 = vrot.slane %v1274, 4
      %v1276 = vmax.f32 %v1274, %v1275
      %v1277 = vrot.slane %v1276, 2
      %v1278 = vmax.f32 %v1276, %v1277
      %v1279 = vrot.slane %v1278, 1
      %v1280 = vmax.f32 %v1278, %v1279
      %v1281 = vsel %vm1049, %v528, -inf
      %v1282 = vrot.slane %v1281, 4
      %v1283 = vmax.f32 %v1281, %v1282
      %v1284 = vrot.slane %v1283, 2
      %v1285 = vmax.f32 %v1283, %v1284
      %v1286 = vrot.slane %v1285, 1
      %v1287 = vmax.f32 %v1285, %v1286
      %v1288 = vsel %vm1049, %v527, -inf
      %v1289 = vrot.slane %v1288, 4
      %v1290 = vmax.f32 %v1288, %v1289
      %v1291 = vrot.slane %v1290, 2
      %v1292 = vmax.f32 %v1290, %v1291
      %v1293 = vrot.slane %v1292, 1
      %v1294 = vmax.f32 %v1292, %v1293
      %v1295 = vsel %vm1049, %v529, -inf
      %v1296 = vrot.slane %v1295, 4
      %v1297 = vmax.f32 %v1295, %v1296
      %v1298 = vrot.slane %v1297, 2
      %v1299 = vmax.f32 %v1297, %v1298
      %v1300 = vrot.slane %v1299, 1
      %v1301 = vmax.f32 %v1299, %v1300
      %v1302 = vsel %vm1049, %v537, -inf
      %v1303 = vrot.slane %v1302, 4
      %v1304 = vmax.f32 %v1302, %v1303
      %v1305 = vrot.slane %v1304, 2
      %v1306 = vmax.f32 %v1304, %v1305
      %v1307 = vrot.slane %v1306, 1
      %v1308 = vmax.f32 %v1306, %v1307
      %v1309 = vsel %vm1049, %v545, -inf
      %v1310 = vrot.slane %v1309, 4
      %v1311 = vmax.f32 %v1309, %v1310
      %v1312 = vrot.slane %v1311, 2
      %v1313 = vmax.f32 %v1311, %v1312
      %v1314 = vrot.slane %v1313, 1
      %v1315 = vmax.f32 %v1313, %v1314
      %v1316 = vsel %vm1049, %v544, -inf
      %v1317 = vrot.slane %v1316, 4
      %v1318 = vmax.f32 %v1316, %v1317
      %v1319 = vrot.slane %v1318, 2
      %v1320 = vmax.f32 %v1318, %v1319
      %v1321 = vrot.slane %v1320, 1
      %v1322 = vmax.f32 %v1320, %v1321
      %v1323 = vsel %vm1049, %v546, -inf
      %v1324 = vrot.slane %v1323, 4
      %v1325 = vmax.f32 %v1323, %v1324
      %v1326 = vrot.slane %v1325, 2
      %v1327 = vmax.f32 %v1325, %v1326
      %v1328 = vrot.slane %v1327, 1
      %v1329 = vmax.f32 %v1327, %v1328
      %v1330 = vsel %vm1049, %v554, -inf
      %v1331 = vrot.slane %v1330, 4
      %v1332 = vmax.f32 %v1330, %v1331
      %v1333 = vrot.slane %v1332, 2
      %v1334 = vmax.f32 %v1332, %v1333
      %v1335 = vrot.slane %v1334, 1
      %v1336 = vmax.f32 %v1334, %v1335
      %v1337 = vsel %vm1049, %v562, -inf
      %v1338 = vrot.slane %v1337, 4
      %v1339 = vmax.f32 %v1337, %v1338
      %v1340 = vrot.slane %v1339, 2
      %v1341 = vmax.f32 %v1339, %v1340
      %v1342 = vrot.slane %v1341, 1
      %v1343 = vmax.f32 %v1341, %v1342
      %v1344 = vsel %vm1049, %v561, -inf
      %v1345 = vrot.slane %v1344, 4
      %v1346 = vmax.f32 %v1344, %v1345
      %v1347 = vrot.slane %v1346, 2
      %v1348 = vmax.f32 %v1346, %v1347
      %v1349 = vrot.slane %v1348, 1
      %v1350 = vmax.f32 %v1348, %v1349
      %v1351 = vsel %vm1049, %v563, -inf
      %v1352 = vrot.slane %v1351, 4
      %v1353 = vmax.f32 %v1351, %v1352
      %v1354 = vrot.slane %v1353, 2
      %v1355 = vmax.f32 %v1353, %v1354
      %v1356 = vrot.slane %v1355, 1
      %v1357 = vmax.f32 %v1355, %v1356
      %v1358 = vsel %vm1049, %v571, -inf
      %v1359 = vrot.slane %v1358, 4
      %v1360 = vmax.f32 %v1358, %v1359
      %v1361 = vrot.slane %v1360, 2
      %v1362 = vmax.f32 %v1360, %v1361
      %v1363 = vrot.slane %v1362, 1
      %v1364 = vmax.f32 %v1362, %v1363
      %v1365 = vsel %vm1049, %v579, -inf
      %v1366 = vrot.slane %v1365, 4
      %v1367 = vmax.f32 %v1365, %v1366
      %v1368 = vrot.slane %v1367, 2
      %v1369 = vmax.f32 %v1367, %v1368
      %v1370 = vrot.slane %v1369, 1
      %v1371 = vmax.f32 %v1369, %v1370
      %v1372 = vsel %vm1049, %v578, -inf
      %v1373 = vrot.slane %v1372, 4
      %v1374 = vmax.f32 %v1372, %v1373
      %v1375 = vrot.slane %v1374, 2
      %v1376 = vmax.f32 %v1374, %v1375
      %v1377 = vrot.slane %v1376, 1
      %v1378 = vmax.f32 %v1376, %v1377
      %v1379 = vsel %vm1049, %v580, -inf
      %v1380 = vrot.slane %v1379, 4
      %v1381 = vmax.f32 %v1379, %v1380
      %v1382 = vrot.slane %v1381, 2
      %v1383 = vmax.f32 %v1381, %v1382
      %v1384 = vrot.slane %v1383, 1
      %v1385 = vmax.f32 %v1383, %v1384
      %v1386 = vsel %vm1049, %v588, -inf
      %v1387 = vrot.slane %v1386, 4
      %v1388 = vmax.f32 %v1386, %v1387
      %v1389 = vrot.slane %v1388, 2
      %v1390 = vmax.f32 %v1388, %v1389
      %v1391 = vrot.slane %v1390, 1
      %v1392 = vmax.f32 %v1390, %v1391
      %v1393 = vsel %vm1049, %v596, -inf
      %v1394 = vrot.slane %v1393, 4
      %v1395 = vmax.f32 %v1393, %v1394
      %v1396 = vrot.slane %v1395, 2
      %v1397 = vmax.f32 %v1395, %v1396
      %v1398 = vrot.slane %v1397, 1
      %v1399 = vmax.f32 %v1397, %v1398
      %v1400 = vsel %vm1049, %v595, -inf
      %v1401 = vrot.slane %v1400, 4
      %v1402 = vmax.f32 %v1400, %v1401
      %v1403 = vrot.slane %v1402, 2
      %v1404 = vmax.f32 %v1402, %v1403
      %v1405 = vrot.slane %v1404, 1
      %v1406 = vmax.f32 %v1404, %v1405
      %v1407 = vsel %vm1049, %v597, -inf
      %v1408 = vrot.slane %v1407, 4
      %v1409 = vmax.f32 %v1407, %v1408
      %v1410 = vrot.slane %v1409, 2
      %v1411 = vmax.f32 %v1409, %v1410
      %v1412 = vrot.slane %v1411, 1
      %v1413 = vmax.f32 %v1411, %v1412
      %v1414 = vsel %vm1049, %v605, -inf
      %v1415 = vrot.slane %v1414, 4
      %v1416 = vmax.f32 %v1414, %v1415
      %v1417 = vrot.slane %v1416, 2
      %v1418 = vmax.f32 %v1416, %v1417
      %v1419 = vrot.slane %v1418, 1
      %v1420 = vmax.f32 %v1418, %v1419
      %v1421 = vsel %vm1049, %v613, -inf
      %v1422 = vrot.slane %v1421, 4
      %v1423 = vmax.f32 %v1421, %v1422
      %v1424 = vrot.slane %v1423, 2
      %v1425 = vmax.f32 %v1423, %v1424
      %v1426 = vrot.slane %v1425, 1
      %v1427 = vmax.f32 %v1425, %v1426
      %v1428 = vsel %vm1049, %v612, -inf
      %v1429 = vrot.slane %v1428, 4
      %v1430 = vmax.f32 %v1428, %v1429
      %v1431 = vrot.slane %v1430, 2
      %v1432 = vmax.f32 %v1430, %v1431
      %v1433 = vrot.slane %v1432, 1
      %v1434 = vmax.f32 %v1432, %v1433
      %v1435 = vsel %vm1049, %v614, -inf
      %v1436 = vrot.slane %v1435, 4
      %v1437 = vmax.f32 %v1435, %v1436
      %v1438 = vrot.slane %v1437, 2
      %v1439 = vmax.f32 %v1437, %v1438
      %v1440 = vrot.slane %v1439, 1
      %v1441 = vmax.f32 %v1439, %v1440
      %v1442 = vsel %vm1049, %v622, -inf
      %v1443 = vrot.slane %v1442, 4
      %v1444 = vmax.f32 %v1442, %v1443
      %v1445 = vrot.slane %v1444, 2
      %v1446 = vmax.f32 %v1444, %v1445
      %v1447 = vrot.slane %v1446, 1
      %v1448 = vmax.f32 %v1446, %v1447
      %v1449 = vsel %vm1049, %v630, -inf
      %v1450 = vrot.slane %v1449, 4
      %v1451 = vmax.f32 %v1449, %v1450
      %v1452 = vrot.slane %v1451, 2
      %v1453 = vmax.f32 %v1451, %v1452
      %v1454 = vrot.slane %v1453, 1
      %v1455 = vmax.f32 %v1453, %v1454
      %v1456 = vsel %vm1049, %v629, -inf
      %v1457 = vrot.slane %v1456, 4
      %v1458 = vmax.f32 %v1456, %v1457
      %v1459 = vrot.slane %v1458, 2
      %v1460 = vmax.f32 %v1458, %v1459
      %v1461 = vrot.slane %v1460, 1
      %v1462 = vmax.f32 %v1460, %v1461
      %v1463 = vsel %vm1049, %v631, -inf
      %v1464 = vrot.slane %v1463, 4
      %v1465 = vmax.f32 %v1463, %v1464
      %v1466 = vrot.slane %v1465, 2
      %v1467 = vmax.f32 %v1465, %v1466
      %v1468 = vrot.slane %v1467, 1
      %v1469 = vmax.f32 %v1467, %v1468
      %v1470 = vsel %vm1049, %v639, -inf
      %v1471 = vrot.slane %v1470, 4
      %v1472 = vmax.f32 %v1470, %v1471
      %v1473 = vrot.slane %v1472, 2
      %v1474 = vmax.f32 %v1472, %v1473
      %v1475 = vrot.slane %v1474, 1
      %v1476 = vmax.f32 %v1474, %v1475
      %v1477 = vsel %vm1049, %v647, -inf
      %v1478 = vrot.slane %v1477, 4
      %v1479 = vmax.f32 %v1477, %v1478
      %v1480 = vrot.slane %v1479, 2
      %v1481 = vmax.f32 %v1479, %v1480
      %v1482 = vrot.slane %v1481, 1
      %v1483 = vmax.f32 %v1481, %v1482
      %v1484 = vsel %vm1049, %v646, -inf
      %v1485 = vrot.slane %v1484, 4
      %v1486 = vmax.f32 %v1484, %v1485
      %v1487 = vrot.slane %v1486, 2
      %v1488 = vmax.f32 %v1486, %v1487
      %v1489 = vrot.slane %v1488, 1
      %v1490 = vmax.f32 %v1488, %v1489
      %v1491 = vsel %vm1049, %v648, -inf
      %v1492 = vrot.slane %v1491, 4
      %v1493 = vmax.f32 %v1491, %v1492
      %v1494 = vrot.slane %v1493, 2
      %v1495 = vmax.f32 %v1493, %v1494
      %v1496 = vrot.slane %v1495, 1
      %v1497 = vmax.f32 %v1495, %v1496
      %v1498 = vsel %vm1049, %v656, -inf
      %v1499 = vrot.slane %v1498, 4
      %v1500 = vmax.f32 %v1498, %v1499
      %v1501 = vrot.slane %v1500, 2
      %v1502 = vmax.f32 %v1500, %v1501
      %v1503 = vrot.slane %v1502, 1
      %v1504 = vmax.f32 %v1502, %v1503
      %v1505 = vsel %vm1049, %v664, -inf
      %v1506 = vrot.slane %v1505, 4
      %v1507 = vmax.f32 %v1505, %v1506
      %v1508 = vrot.slane %v1507, 2
      %v1509 = vmax.f32 %v1507, %v1508
      %v1510 = vrot.slane %v1509, 1
      %v1511 = vmax.f32 %v1509, %v1510
      %v1512 = vsel %vm1049, %v663, -inf
      %v1513 = vrot.slane %v1512, 4
      %v1514 = vmax.f32 %v1512, %v1513
      %v1515 = vrot.slane %v1514, 2
      %v1516 = vmax.f32 %v1514, %v1515
      %v1517 = vrot.slane %v1516, 1
      %v1518 = vmax.f32 %v1516, %v1517
      %v1519 = vsel %vm1049, %v665, -inf
      %v1520 = vrot.slane %v1519, 4
      %v1521 = vmax.f32 %v1519, %v1520
      %v1522 = vrot.slane %v1521, 2
      %v1523 = vmax.f32 %v1521, %v1522
      %v1524 = vrot.slane %v1523, 1
      %v1525 = vmax.f32 %v1523, %v1524
      %v1526 = vsel %vm1049, %v673, -inf
      %v1527 = vrot.slane %v1526, 4
      %v1528 = vmax.f32 %v1526, %v1527
      %v1529 = vrot.slane %v1528, 2
      %v1530 = vmax.f32 %v1528, %v1529
      %v1531 = vrot.slane %v1530, 1
      %v1532 = vmax.f32 %v1530, %v1531
      %v1533 = vsel %vm1049, %v681, -inf
      %v1534 = vrot.slane %v1533, 4
      %v1535 = vmax.f32 %v1533, %v1534
      %v1536 = vrot.slane %v1535, 2
      %v1537 = vmax.f32 %v1535, %v1536
      %v1538 = vrot.slane %v1537, 1
      %v1539 = vmax.f32 %v1537, %v1538
      %v1540 = vsel %vm1049, %v680, -inf
      %v1541 = vrot.slane %v1540, 4
      %v1542 = vmax.f32 %v1540, %v1541
      %v1543 = vrot.slane %v1542, 2
      %v1544 = vmax.f32 %v1542, %v1543
      %v1545 = vrot.slane %v1544, 1
      %v1546 = vmax.f32 %v1544, %v1545
      %v1547 = vsel %vm1049, %v682, -inf
      %v1548 = vrot.slane %v1547, 4
      %v1549 = vmax.f32 %v1547, %v1548
      %v1550 = vrot.slane %v1549, 2
      %v1551 = vmax.f32 %v1549, %v1550
      %v1552 = vrot.slane %v1551, 1
      %v1553 = vmax.f32 %v1551, %v1552
      %v1554 = vsel %vm1049, %v690, -inf
      %v1555 = vrot.slane %v1554, 4
      %v1556 = vmax.f32 %v1554, %v1555
      %v1557 = vrot.slane %v1556, 2
      %v1558 = vmax.f32 %v1556, %v1557
      %v1559 = vrot.slane %v1558, 1
      %v1560 = vmax.f32 %v1558, %v1559
      %v1561 = vsel %vm1049, %v698, -inf
      %v1562 = vrot.slane %v1561, 4
      %v1563 = vmax.f32 %v1561, %v1562
      %v1564 = vrot.slane %v1563, 2
      %v1565 = vmax.f32 %v1563, %v1564
      %v1566 = vrot.slane %v1565, 1
      %v1567 = vmax.f32 %v1565, %v1566
      %v1568 = vsel %vm1049, %v697, -inf
      %v1569 = vrot.slane %v1568, 4
      %v1570 = vmax.f32 %v1568, %v1569
      %v1571 = vrot.slane %v1570, 2
      %v1572 = vmax.f32 %v1570, %v1571
      %v1573 = vrot.slane %v1572, 1
      %v1574 = vmax.f32 %v1572, %v1573
      %v1575 = vsel %vm1049, %v699, -inf
      %v1576 = vrot.slane %v1575, 4
      %v1577 = vmax.f32 %v1575, %v1576
      %v1578 = vrot.slane %v1577, 2
      %v1579 = vmax.f32 %v1577, %v1578
      %v1580 = vrot.slane %v1579, 1
      %v1581 = vmax.f32 %v1579, %v1580
      %v1582 = vsel %vm1049, %v707, -inf
      %v1583 = vrot.slane %v1582, 4
      %v1584 = vmax.f32 %v1582, %v1583
      %v1585 = vrot.slane %v1584, 2
      %v1586 = vmax.f32 %v1584, %v1585
      %v1587 = vrot.slane %v1586, 1
      %v1588 = vmax.f32 %v1586, %v1587
      %v1589 = vsel %vm1049, %v715, -inf
      %v1590 = vrot.slane %v1589, 4
      %v1591 = vmax.f32 %v1589, %v1590
      %v1592 = vrot.slane %v1591, 2
      %v1593 = vmax.f32 %v1591, %v1592
      %v1594 = vrot.slane %v1593, 1
      %v1595 = vmax.f32 %v1593, %v1594
      %v1596 = vsel %vm1049, %v714, -inf
      %v1597 = vrot.slane %v1596, 4
      %v1598 = vmax.f32 %v1596, %v1597
      %v1599 = vrot.slane %v1598, 2
      %v1600 = vmax.f32 %v1598, %v1599
      %v1601 = vrot.slane %v1600, 1
      %v1602 = vmax.f32 %v1600, %v1601
      %v1603 = vsel %vm1049, %v716, -inf
      %v1604 = vrot.slane %v1603, 4
      %v1605 = vmax.f32 %v1603, %v1604
      %v1606 = vrot.slane %v1605, 2
      %v1607 = vmax.f32 %v1605, %v1606
      %v1608 = vrot.slane %v1607, 1
      %v1609 = vmax.f32 %v1607, %v1608
      %v1610 = vsel %vm1049, %v724, -inf
      %v1611 = vrot.slane %v1610, 4
      %v1612 = vmax.f32 %v1610, %v1611
      %v1613 = vrot.slane %v1612, 2
      %v1614 = vmax.f32 %v1612, %v1613
      %v1615 = vrot.slane %v1614, 1
      %v1616 = vmax.f32 %v1614, %v1615
      %v1617 = vsel %vm1049, %v732, -inf
      %v1618 = vrot.slane %v1617, 4
      %v1619 = vmax.f32 %v1617, %v1618
      %v1620 = vrot.slane %v1619, 2
      %v1621 = vmax.f32 %v1619, %v1620
      %v1622 = vrot.slane %v1621, 1
      %v1623 = vmax.f32 %v1621, %v1622
      %v1624 = vsel %vm1049, %v731, -inf
      %v1625 = vrot.slane %v1624, 4
      %v1626 = vmax.f32 %v1624, %v1625
      %v1627 = vrot.slane %v1626, 2
      %v1628 = vmax.f32 %v1626, %v1627
      %v1629 = vrot.slane %v1628, 1
      %v1630 = vmax.f32 %v1628, %v1629
      %v1631 = vsel %vm1049, %v733, -inf
      %v1632 = vrot.slane %v1631, 4
      %v1633 = vmax.f32 %v1631, %v1632
      %v1634 = vrot.slane %v1633, 2
      %v1635 = vmax.f32 %v1633, %v1634
      %v1636 = vrot.slane %v1635, 1
      %v1637 = vmax.f32 %v1635, %v1636
      %v1638 = vsel %vm1049, %v741, -inf
      %v1639 = vrot.slane %v1638, 4
      %v1640 = vmax.f32 %v1638, %v1639
      %v1641 = vrot.slane %v1640, 2
      %v1642 = vmax.f32 %v1640, %v1641
      %v1643 = vrot.slane %v1642, 1
      %v1644 = vmax.f32 %v1642, %v1643
      %v1645 = vsel %vm1049, %v749, -inf
      %v1646 = vrot.slane %v1645, 4
      %v1647 = vmax.f32 %v1645, %v1646
      %v1648 = vrot.slane %v1647, 2
      %v1649 = vmax.f32 %v1647, %v1648
      %v1650 = vrot.slane %v1649, 1
      %v1651 = vmax.f32 %v1649, %v1650
      %v1652 = vsel %vm1049, %v748, -inf
      %v1653 = vrot.slane %v1652, 4
      %v1654 = vmax.f32 %v1652, %v1653
      %v1655 = vrot.slane %v1654, 2
      %v1656 = vmax.f32 %v1654, %v1655
      %v1657 = vrot.slane %v1656, 1
      %v1658 = vmax.f32 %v1656, %v1657
      %v1659 = vsel %vm1049, %v750, -inf
      %v1660 = vrot.slane %v1659, 4
      %v1661 = vmax.f32 %v1659, %v1660
      %v1662 = vrot.slane %v1661, 2
      %v1663 = vmax.f32 %v1661, %v1662
      %v1664 = vrot.slane %v1663, 1
      %v1665 = vmax.f32 %v1663, %v1664
      %v1666 = vsel %vm1049, %v758, -inf
      %v1667 = vrot.slane %v1666, 4
      %v1668 = vmax.f32 %v1666, %v1667
      %v1669 = vrot.slane %v1668, 2
      %v1670 = vmax.f32 %v1668, %v1669
      %v1671 = vrot.slane %v1670, 1
      %v1672 = vmax.f32 %v1670, %v1671
      %v1673 = vsel %vm1049, %v766, -inf
      %v1674 = vrot.slane %v1673, 4
      %v1675 = vmax.f32 %v1673, %v1674
      %v1676 = vrot.slane %v1675, 2
      %v1677 = vmax.f32 %v1675, %v1676
      %v1678 = vrot.slane %v1677, 1
      %v1679 = vmax.f32 %v1677, %v1678
      %v1680 = vsel %vm1049, %v765, -inf
      %v1681 = vrot.slane %v1680, 4
      %v1682 = vmax.f32 %v1680, %v1681
      %v1683 = vrot.slane %v1682, 2
      %v1684 = vmax.f32 %v1682, %v1683
      %v1685 = vrot.slane %v1684, 1
      %v1686 = vmax.f32 %v1684, %v1685
      %v1687 = vsel %vm1049, %v767, -inf
      %v1688 = vrot.slane %v1687, 4
      %v1689 = vmax.f32 %v1687, %v1688
      %v1690 = vrot.slane %v1689, 2
      %v1691 = vmax.f32 %v1689, %v1690
      %v1692 = vrot.slane %v1691, 1
      %v1693 = vmax.f32 %v1691, %v1692
      %v1694 = vsel %vm1049, %v775, -inf
      %v1695 = vrot.slane %v1694, 4
      %v1696 = vmax.f32 %v1694, %v1695
      %v1697 = vrot.slane %v1696, 2
      %v1698 = vmax.f32 %v1696, %v1697
      %v1699 = vrot.slane %v1698, 1
      %v1700 = vmax.f32 %v1698, %v1699
      %v1701 = vsel %vm1049, %v783, -inf
      %v1702 = vrot.slane %v1701, 4
      %v1703 = vmax.f32 %v1701, %v1702
      %v1704 = vrot.slane %v1703, 2
      %v1705 = vmax.f32 %v1703, %v1704
      %v1706 = vrot.slane %v1705, 1
      %v1707 = vmax.f32 %v1705, %v1706
      %v1708 = vsel %vm1049, %v782, -inf
      %v1709 = vrot.slane %v1708, 4
      %v1710 = vmax.f32 %v1708, %v1709
      %v1711 = vrot.slane %v1710, 2
      %v1712 = vmax.f32 %v1710, %v1711
      %v1713 = vrot.slane %v1712, 1
      %v1714 = vmax.f32 %v1712, %v1713
      %v1715 = vsel %vm1049, %v784, -inf
      %v1716 = vrot.slane %v1715, 4
      %v1717 = vmax.f32 %v1715, %v1716
      %v1718 = vrot.slane %v1717, 2
      %v1719 = vmax.f32 %v1717, %v1718
      %v1720 = vrot.slane %v1719, 1
      %v1721 = vmax.f32 %v1719, %v1720
      %v1722 = vsel %vm1049, %v792, -inf
      %v1723 = vrot.slane %v1722, 4
      %v1724 = vmax.f32 %v1722, %v1723
      %v1725 = vrot.slane %v1724, 2
      %v1726 = vmax.f32 %v1724, %v1725
      %v1727 = vrot.slane %v1726, 1
      %v1728 = vmax.f32 %v1726, %v1727
      %v1729 = vsel %vm1049, %v800, -inf
      %v1730 = vrot.slane %v1729, 4
      %v1731 = vmax.f32 %v1729, %v1730
      %v1732 = vrot.slane %v1731, 2
      %v1733 = vmax.f32 %v1731, %v1732
      %v1734 = vrot.slane %v1733, 1
      %v1735 = vmax.f32 %v1733, %v1734
      %v1736 = vsel %vm1049, %v799, -inf
      %v1737 = vrot.slane %v1736, 4
      %v1738 = vmax.f32 %v1736, %v1737
      %v1739 = vrot.slane %v1738, 2
      %v1740 = vmax.f32 %v1738, %v1739
      %v1741 = vrot.slane %v1740, 1
      %v1742 = vmax.f32 %v1740, %v1741
      %v1743 = vsel %vm1049, %v801, -inf
      %v1744 = vrot.slane %v1743, 4
      %v1745 = vmax.f32 %v1743, %v1744
      %v1746 = vrot.slane %v1745, 2
      %v1747 = vmax.f32 %v1745, %v1746
      %v1748 = vrot.slane %v1747, 1
      %v1749 = vmax.f32 %v1747, %v1748
      %v1750 = vsel %vm1049, %v809, -inf
      %v1751 = vrot.slane %v1750, 4
      %v1752 = vmax.f32 %v1750, %v1751
      %v1753 = vrot.slane %v1752, 2
      %v1754 = vmax.f32 %v1752, %v1753
      %v1755 = vrot.slane %v1754, 1
      %v1756 = vmax.f32 %v1754, %v1755
      %v1757 = vsel %vm1049, %v817, -inf
      %v1758 = vrot.slane %v1757, 4
      %v1759 = vmax.f32 %v1757, %v1758
      %v1760 = vrot.slane %v1759, 2
      %v1761 = vmax.f32 %v1759, %v1760
      %v1762 = vrot.slane %v1761, 1
      %v1763 = vmax.f32 %v1761, %v1762
      %v1764 = vsel %vm1049, %v816, -inf
      %v1765 = vrot.slane %v1764, 4
      %v1766 = vmax.f32 %v1764, %v1765
      %v1767 = vrot.slane %v1766, 2
      %v1768 = vmax.f32 %v1766, %v1767
      %v1769 = vrot.slane %v1768, 1
      %v1770 = vmax.f32 %v1768, %v1769
      %v1771 = vsel %vm1049, %v818, -inf
      %v1772 = vrot.slane %v1771, 4
      %v1773 = vmax.f32 %v1771, %v1772
      %v1774 = vrot.slane %v1773, 2
      %v1775 = vmax.f32 %v1773, %v1774
      %v1776 = vrot.slane %v1775, 1
      %v1777 = vmax.f32 %v1775, %v1776
      %v1778 = vsel %vm1049, %v826, -inf
      %v1779 = vrot.slane %v1778, 4
      %v1780 = vmax.f32 %v1778, %v1779
      %v1781 = vrot.slane %v1780, 2
      %v1782 = vmax.f32 %v1780, %v1781
      %v1783 = vrot.slane %v1782, 1
      %v1784 = vmax.f32 %v1782, %v1783
      %v1785 = vsel %vm1049, %v834, -inf
      %v1786 = vrot.slane %v1785, 4
      %v1787 = vmax.f32 %v1785, %v1786
      %v1788 = vrot.slane %v1787, 2
      %v1789 = vmax.f32 %v1787, %v1788
      %v1790 = vrot.slane %v1789, 1
      %v1791 = vmax.f32 %v1789, %v1790
      %v1792 = vsel %vm1049, %v833, -inf
      %v1793 = vrot.slane %v1792, 4
      %v1794 = vmax.f32 %v1792, %v1793
      %v1795 = vrot.slane %v1794, 2
      %v1796 = vmax.f32 %v1794, %v1795
      %v1797 = vrot.slane %v1796, 1
      %v1798 = vmax.f32 %v1796, %v1797
      %v1799 = vsel %vm1049, %v835, -inf
      %v1800 = vrot.slane %v1799, 4
      %v1801 = vmax.f32 %v1799, %v1800
      %v1802 = vrot.slane %v1801, 2
      %v1803 = vmax.f32 %v1801, %v1802
      %v1804 = vrot.slane %v1803, 1
      %v1805 = vmax.f32 %v1803, %v1804
      %v1806 = vsel %vm1049, %v843, -inf
      %v1807 = vrot.slane %v1806, 4
      %v1808 = vmax.f32 %v1806, %v1807
      %v1809 = vrot.slane %v1808, 2
      %v1810 = vmax.f32 %v1808, %v1809
      %v1811 = vrot.slane %v1810, 1
      %v1812 = vmax.f32 %v1810, %v1811
      %v1813 = vsel %vm1049, %v851, -inf
      %v1814 = vrot.slane %v1813, 4
      %v1815 = vmax.f32 %v1813, %v1814
      %v1816 = vrot.slane %v1815, 2
      %v1817 = vmax.f32 %v1815, %v1816
      %v1818 = vrot.slane %v1817, 1
      %v1819 = vmax.f32 %v1817, %v1818
      %v1820 = vsel %vm1049, %v850, -inf
      %v1821 = vrot.slane %v1820, 4
      %v1822 = vmax.f32 %v1820, %v1821
      %v1823 = vrot.slane %v1822, 2
      %v1824 = vmax.f32 %v1822, %v1823
      %v1825 = vrot.slane %v1824, 1
      %v1826 = vmax.f32 %v1824, %v1825
      %v1827 = vsel %vm1049, %v852, -inf
      %v1828 = vrot.slane %v1827, 4
      %v1829 = vmax.f32 %v1827, %v1828
      %v1830 = vrot.slane %v1829, 2
      %v1831 = vmax.f32 %v1829, %v1830
      %v1832 = vrot.slane %v1831, 1
      %v1833 = vmax.f32 %v1831, %v1832
      %v1834 = vsel %vm1049, %v860, -inf
      %v1835 = vrot.slane %v1834, 4
      %v1836 = vmax.f32 %v1834, %v1835
      %v1837 = vrot.slane %v1836, 2
      %v1838 = vmax.f32 %v1836, %v1837
      %v1839 = vrot.slane %v1838, 1
      %v1840 = vmax.f32 %v1838, %v1839
      %v1841 = vsel %vm1049, %v868, -inf
      %v1842 = vrot.slane %v1841, 4
      %v1843 = vmax.f32 %v1841, %v1842
      %v1844 = vrot.slane %v1843, 2
      %v1845 = vmax.f32 %v1843, %v1844
      %v1846 = vrot.slane %v1845, 1
      %v1847 = vmax.f32 %v1845, %v1846
      %v1848 = vsel %vm1049, %v867, -inf
      %v1849 = vrot.slane %v1848, 4
      %v1850 = vmax.f32 %v1848, %v1849
      %v1851 = vrot.slane %v1850, 2
      %v1852 = vmax.f32 %v1850, %v1851
      %v1853 = vrot.slane %v1852, 1
      %v1854 = vmax.f32 %v1852, %v1853
      %v1855 = vsel %vm1049, %v869, -inf
      %v1856 = vrot.slane %v1855, 4
      %v1857 = vmax.f32 %v1855, %v1856
      %v1858 = vrot.slane %v1857, 2
      %v1859 = vmax.f32 %v1857, %v1858
      %v1860 = vrot.slane %v1859, 1
      %v1861 = vmax.f32 %v1859, %v1860
      %v1862 = vsel %vm1049, %v877, -inf
      %v1863 = vrot.slane %v1862, 4
      %v1864 = vmax.f32 %v1862, %v1863
      %v1865 = vrot.slane %v1864, 2
      %v1866 = vmax.f32 %v1864, %v1865
      %v1867 = vrot.slane %v1866, 1
      %v1868 = vmax.f32 %v1866, %v1867
      %v1869 = vsel %vm1049, %v885, -inf
      %v1870 = vrot.slane %v1869, 4
      %v1871 = vmax.f32 %v1869, %v1870
      %v1872 = vrot.slane %v1871, 2
      %v1873 = vmax.f32 %v1871, %v1872
      %v1874 = vrot.slane %v1873, 1
      %v1875 = vmax.f32 %v1873, %v1874
      %v1876 = vsel %vm1049, %v884, -inf
      %v1877 = vrot.slane %v1876, 4
      %v1878 = vmax.f32 %v1876, %v1877
      %v1879 = vrot.slane %v1878, 2
      %v1880 = vmax.f32 %v1878, %v1879
      %v1881 = vrot.slane %v1880, 1
      %v1882 = vmax.f32 %v1880, %v1881
      %v1883 = vsel %vm1049, %v886, -inf
      %v1884 = vrot.slane %v1883, 4
      %v1885 = vmax.f32 %v1883, %v1884
      %v1886 = vrot.slane %v1885, 2
      %v1887 = vmax.f32 %v1885, %v1886
      %v1888 = vrot.slane %v1887, 1
      %v1889 = vmax.f32 %v1887, %v1888
      %v1890 = vsel %vm1049, %v894, -inf
      %v1891 = vrot.slane %v1890, 4
      %v1892 = vmax.f32 %v1890, %v1891
      %v1893 = vrot.slane %v1892, 2
      %v1894 = vmax.f32 %v1892, %v1893
      %v1895 = vrot.slane %v1894, 1
      %v1896 = vmax.f32 %v1894, %v1895
      %v1897 = vsel %vm1049, %v902, -inf
      %v1898 = vrot.slane %v1897, 4
      %v1899 = vmax.f32 %v1897, %v1898
      %v1900 = vrot.slane %v1899, 2
      %v1901 = vmax.f32 %v1899, %v1900
      %v1902 = vrot.slane %v1901, 1
      %v1903 = vmax.f32 %v1901, %v1902
      %v1904 = vsel %vm1049, %v901, -inf
      %v1905 = vrot.slane %v1904, 4
      %v1906 = vmax.f32 %v1904, %v1905
      %v1907 = vrot.slane %v1906, 2
      %v1908 = vmax.f32 %v1906, %v1907
      %v1909 = vrot.slane %v1908, 1
      %v1910 = vmax.f32 %v1908, %v1909
      %v1911 = vsel %vm1049, %v903, -inf
      %v1912 = vrot.slane %v1911, 4
      %v1913 = vmax.f32 %v1911, %v1912
      %v1914 = vrot.slane %v1913, 2
      %v1915 = vmax.f32 %v1913, %v1914
      %v1916 = vrot.slane %v1915, 1
      %v1917 = vmax.f32 %v1915, %v1916
      %v1918 = vsel %vm1049, %v911, -inf
      %v1919 = vrot.slane %v1918, 4
      %v1920 = vmax.f32 %v1918, %v1919
      %v1921 = vrot.slane %v1920, 2
      %v1922 = vmax.f32 %v1920, %v1921
      %v1923 = vrot.slane %v1922, 1
      %v1924 = vmax.f32 %v1922, %v1923
      %v1925 = vsel %vm1049, %v919, -inf
      %v1926 = vrot.slane %v1925, 4
      %v1927 = vmax.f32 %v1925, %v1926
      %v1928 = vrot.slane %v1927, 2
      %v1929 = vmax.f32 %v1927, %v1928
      %v1930 = vrot.slane %v1929, 1
      %v1931 = vmax.f32 %v1929, %v1930
      %v1932 = vsel %vm1049, %v918, -inf
      %v1933 = vrot.slane %v1932, 4
      %v1934 = vmax.f32 %v1932, %v1933
      %v1935 = vrot.slane %v1934, 2
      %v1936 = vmax.f32 %v1934, %v1935
      %v1937 = vrot.slane %v1936, 1
      %v1938 = vmax.f32 %v1936, %v1937
      %v1939 = vsel %vm1049, %v920, -inf
      %v1940 = vrot.slane %v1939, 4
      %v1941 = vmax.f32 %v1939, %v1940
      %v1942 = vrot.slane %v1941, 2
      %v1943 = vmax.f32 %v1941, %v1942
      %v1944 = vrot.slane %v1943, 1
      %v1945 = vmax.f32 %v1943, %v1944
      %v1946 = vmax.f32 %v1056, %v1112
      %v1947 = vmax.f32 %v1063, %v1119
      %v1948 = vmax.f32 %v1070, %v1126
      %v1949 = vmax.f32 %v1077, %v1133
      %v1950 = vmax.f32 %v1084, %v1140
      %v1951 = vmax.f32 %v1091, %v1147
      %v1952 = vmax.f32 %v1098, %v1154
      %v1953 = vmax.f32 %v1105, %v1161
      %v1954 = vmax.f32 %v1168, %v1224
      %v1955 = vmax.f32 %v1175, %v1231
      %v1956 = vmax.f32 %v1182, %v1238
      %v1957 = vmax.f32 %v1189, %v1245
      %v1958 = vmax.f32 %v1196, %v1252
      %v1959 = vmax.f32 %v1203, %v1259
      %v1960 = vmax.f32 %v1210, %v1266
      %v1961 = vmax.f32 %v1217, %v1273
      %v1962 = vmax.f32 %v1280, %v1336
      %v1963 = vmax.f32 %v1287, %v1343
      %v1964 = vmax.f32 %v1294, %v1350
      %v1965 = vmax.f32 %v1301, %v1357
      %v1966 = vmax.f32 %v1308, %v1364
      %v1967 = vmax.f32 %v1315, %v1371
      %v1968 = vmax.f32 %v1322, %v1378
      %v1969 = vmax.f32 %v1329, %v1385
      %v1970 = vmax.f32 %v1392, %v1448
      %v1971 = vmax.f32 %v1399, %v1455
      %v1972 = vmax.f32 %v1406, %v1462
      %v1973 = vmax.f32 %v1413, %v1469
      %v1974 = vmax.f32 %v1420, %v1476
      %v1975 = vmax.f32 %v1427, %v1483
      %v1976 = vmax.f32 %v1434, %v1490
      %v1977 = vmax.f32 %v1441, %v1497
      %v1978 = vmax.f32 %v1504, %v1560
      %v1979 = vmax.f32 %v1511, %v1567
      %v1980 = vmax.f32 %v1518, %v1574
      %v1981 = vmax.f32 %v1525, %v1581
      %v1982 = vmax.f32 %v1532, %v1588
      %v1983 = vmax.f32 %v1539, %v1595
      %v1984 = vmax.f32 %v1546, %v1602
      %v1985 = vmax.f32 %v1553, %v1609
      %v1986 = vmax.f32 %v1616, %v1672
      %v1987 = vmax.f32 %v1623, %v1679
      %v1988 = vmax.f32 %v1630, %v1686
      %v1989 = vmax.f32 %v1637, %v1693
      %v1990 = vmax.f32 %v1644, %v1700
      %v1991 = vmax.f32 %v1651, %v1707
      %v1992 = vmax.f32 %v1658, %v1714
      %v1993 = vmax.f32 %v1665, %v1721
      %v1994 = vmax.f32 %v1728, %v1784
      %v1995 = vmax.f32 %v1735, %v1791
      %v1996 = vmax.f32 %v1742, %v1798
      %v1997 = vmax.f32 %v1749, %v1805
      %v1998 = vmax.f32 %v1756, %v1812
      %v1999 = vmax.f32 %v1763, %v1819
      %v2000 = vmax.f32 %v1770, %v1826
      %v2001 = vmax.f32 %v1777, %v1833
      %v2002 = vmax.f32 %v1840, %v1896
      %v2003 = vmax.f32 %v1847, %v1903
      %v2004 = vmax.f32 %v1854, %v1910
      %v2005 = vmax.f32 %v1861, %v1917
      %v2006 = vmax.f32 %v1868, %v1924
      %v2007 = vmax.f32 %v1875, %v1931
      %v2008 = vmax.f32 %v1882, %v1938
      %v2009 = vmax.f32 %v1889, %v1945
      %vm2074 = vcmask 1041409
      %v2075 = vsel %vm2074, %v1947, %v1946
      %vm2076 = vcmask 1042434
      %v2077 = vsel %vm2076, %v1948, %v2075
      %vm2078 = vcmask 1043459
      %v2079 = vsel %vm2078, %v1949, %v2077
      %vm2080 = vcmask 1044484
      %v2081 = vsel %vm2080, %v1950, %v2079
      %vm2082 = vcmask 1045509
      %v2083 = vsel %vm2082, %v1951, %v2081
      %vm2084 = vcmask 1046534
      %v2085 = vsel %vm2084, %v1952, %v2083
      %vm2086 = vcmask 1047559
      %v2087 = vsel %vm2086, %v1953, %v2085
      %v2088 = vsel %vm2074, %v1955, %v1954
      %v2089 = vsel %vm2076, %v1956, %v2088
      %v2090 = vsel %vm2078, %v1957, %v2089
      %v2091 = vsel %vm2080, %v1958, %v2090
      %v2092 = vsel %vm2082, %v1959, %v2091
      %v2093 = vsel %vm2084, %v1960, %v2092
      %v2094 = vsel %vm2086, %v1961, %v2093
      %v2095 = vsel %vm2074, %v1963, %v1962
      %v2096 = vsel %vm2076, %v1964, %v2095
      %v2097 = vsel %vm2078, %v1965, %v2096
      %v2098 = vsel %vm2080, %v1966, %v2097
      %v2099 = vsel %vm2082, %v1967, %v2098
      %v2100 = vsel %vm2084, %v1968, %v2099
      %v2101 = vsel %vm2086, %v1969, %v2100
      %v2102 = vsel %vm2074, %v1971, %v1970
      %v2103 = vsel %vm2076, %v1972, %v2102
      %v2104 = vsel %vm2078, %v1973, %v2103
      %v2105 = vsel %vm2080, %v1974, %v2104
      %v2106 = vsel %vm2082, %v1975, %v2105
      %v2107 = vsel %vm2084, %v1976, %v2106
      %v2108 = vsel %vm2086, %v1977, %v2107
      %v2109 = vsel %vm2074, %v1979, %v1978
      %v2110 = vsel %vm2076, %v1980, %v2109
      %v2111 = vsel %vm2078, %v1981, %v2110
      %v2112 = vsel %vm2080, %v1982, %v2111
      %v2113 = vsel %vm2082, %v1983, %v2112
      %v2114 = vsel %vm2084, %v1984, %v2113
      %v2115 = vsel %vm2086, %v1985, %v2114
      %v2116 = vsel %vm2074, %v1987, %v1986
      %v2117 = vsel %vm2076, %v1988, %v2116
      %v2118 = vsel %vm2078, %v1989, %v2117
      %v2119 = vsel %vm2080, %v1990, %v2118
      %v2120 = vsel %vm2082, %v1991, %v2119
      %v2121 = vsel %vm2084, %v1992, %v2120
      %v2122 = vsel %vm2086, %v1993, %v2121
      %v2123 = vsel %vm2074, %v1995, %v1994
      %v2124 = vsel %vm2076, %v1996, %v2123
      %v2125 = vsel %vm2078, %v1997, %v2124
      %v2126 = vsel %vm2080, %v1998, %v2125
      %v2127 = vsel %vm2082, %v1999, %v2126
      %v2128 = vsel %vm2084, %v2000, %v2127
      %v2129 = vsel %vm2086, %v2001, %v2128
      %v2130 = vsel %vm2074, %v2003, %v2002
      %v2131 = vsel %vm2076, %v2004, %v2130
      %v2132 = vsel %vm2078, %v2005, %v2131
      %v2133 = vsel %vm2080, %v2006, %v2132
      %v2134 = vsel %vm2082, %v2007, %v2133
      %v2135 = vsel %vm2084, %v2008, %v2134
      %v2136 = vsel %vm2086, %v2009, %v2135
      %2145 = vst [vmem:[%s170] sm:$0xff] %v2087
      %2146 = vst [vmem:[%s170 + $0x8] sm:$0xff] %v2094
      %2147 = vst [vmem:[%s170 + $0x10] sm:$0xff] %v2101
      %2148 = vst [vmem:[%s170 + $0x18] sm:$0xff] %v2108
      %2149 = vst [vmem:[%s170 + $0x20] sm:$0xff] %v2115
      %2150 = vst [vmem:[%s170 + $0x28] sm:$0xff] %v2122
      %2151 = vst [vmem:[%s170 + $0x30] sm:$0xff] %v2129
      %2152 = vst [vmem:[%s170 + $0x38] sm:$0xff] %v2136
      %p2153 = scmp.lt.s32.totalorder %s14, 1
      %s2154 = scalar_select %p2153, %s14, 1
      %s2155 = smul.addr %s2154, 8
      %s2156 = smul.addr %s2155, 8
      %s2157 = scalar_lea.vmem %s3, %s2156
      // Predicated region
      $region33: #{conv_block.3} parent=31 // pred_check
        %p2158 = pneg %p100
      $region34: #{conv_block.3} parent=31 // pred_check_branch
        %2160 = sbr.rel (%p2158) target = $region36
      $region35: #{conv_block.3} parent=31 // pred_region
        _
      $region36: #{conv_block.3} parent=31 // pred_fallthru
        _
    $region32: #{conv_block.3} parent=5 // pred_fallthru
      _
    %p2161 = scmp.le.s32.totalorder 2, %s9
    // Predicated region
    $region37: #{conv_block.3} parent=5 // pred_check
      %p2162 = pneg %p2161
    $region38: #{conv_block.3} parent=5 // pred_check_branch
      %2164 = sbr.rel (%p2162) target = $region40
    $region39: #{conv_block.3} parent=5 // pred_region
      %s2165 = ssub.s32 %s9, 2
      // Predicated region
      $region41: #{conv_block.3} parent=39 // pred_check
        %p2166 = pneg %p106
      $region42: #{conv_block.3} parent=39 // pred_check_branch
        %2168 = sbr.rel (%p2166) target = $region44
      $region43: #{conv_block.3} parent=39 // pred_region
        %p2169 = scmp.lt.s32.totalorder %s15, 1
        %s2170 = scalar_select %p2169, %s15, 1
        %s2171 = smul.addr %s2170, 8
        %s2172 = smul.addr %s2171, 8
        %s2173 = scalar_lea.vmem %s3, %s2172
      $region44: #{conv_block.3} parent=39 // pred_fallthru
        _
    $region40: #{conv_block.3} parent=5 // pred_fallthru
      _
  $region6: #{conv_block.3} parent=0 // loop_footer
    %s13 = sadd.s32 1, %s9
  $region7: #{conv_block.3} parent=0 // loop_footer_branch
    %8 = sbr.rel target = $region3
  $region8: #{conv_block.3} parent=0 // loop_exit
    _

// kernel: conv_block.2
$region0: #{conv_block.2}
  #allocation0 [shape = 'u32[]', space=smem, size = 0x4, offset = 0x4, fixed_abs, tag = 'smem constant byte address 0x4 - core index']
  #allocation1 [shape = 'u32[144,128]{1,0:T(1,128)}', space=vmem, size = 0x12000, scoped, tag = 'internal scratch']
  %s0 = inlined_call_operand.vmem [shape: bf16[2,18,18,4], index: 0, kind: input, shape index: {}]
  %s1 = inlined_call_operand.vmem [shape: bf16[9,4,128], index: 1, kind: input, shape index: {}]
  %s2 = inlined_call_operand.vmem [shape: bf16[2,256,128], index: 2, kind: output, shape index: {0}]
  %s3 = inlined_call_operand.vmem [shape: f32[2,2,128], index: 3, kind: output, shape index: {1}]
  %4 = xla_tuple %s2, %s3
  %s5 = sld [smem:[#allocation0]]
  $region49: #{conv_block.2} parent=0
    _
  %s7 = ssub.s32 1, %s5
  %s8 = scalar_select 0, %s7, %s5
  loop: start=0, step=1, limit=4
  $region2: #{conv_block.2} parent=0 // loop_pre_header
    _
  $region3: #{conv_block.2} parent=0 // loop_header
    %s10 = sphi 0, %s14
    %p11 = scmp.ge.s32.totalorder %s10, 4
    %s20 = sphi 0, %s22
    %s23 = sphi 0, %s20
    %s24 = sphi 0, %s23
    %s40 = sphi 0, %s24
    %s44 = sphi 0, %s44
    %s46 = sphi 0, %s44
    %s47 = sphi 0, %s46
    %s61 = sphi 0, %s47
    %s67 = sphi 0, %s69
    %s70 = sphi 0, %s67
    %s71 = sphi 0, %s70
    %s87 = sphi 0, %s71
    %s93 = sphi 0, %s95
    %s96 = sphi 0, %s93
    %s97 = sphi 0, %s96
    %s113 = sphi 0, %s97
  $region4: #{conv_block.2} parent=0 // loop_header_branch
    %13 = sbr.rel (%p11) target = $region8
  $region5: #{conv_block.2} parent=0 // loop_body
    %s15 = ssub.s32 %s10, 1
    %s16 = ssub.s32 %s10, 2
    %s17 = sadd.s32 %s10, 1
    %s18 = ssub.s32 %s10, %s17
    %p19 = scmp.eq.s32.totalorder %s18, 0
    %s21 = sadd.s32 %s20, 1
    %s22 = scalar_select %p19, %s20, %s21
    %p25 = pneg %p19
    %p26 = scmp.eq.s32.totalorder %s10, 1
    %p27 = por %p25, %p26
    %p28 = scmp.ne.s32.totalorder %s20, %s23
    %p29 = scmp.eq.s32.totalorder %s10, 0
    %p30 = por %p28, %p29
    %p31 = scmp.ne.s32.totalorder %s20, %s23
    %p32 = scmp.eq.s32.totalorder %s15, 1
    %p33 = por %p31, %p32
    %p34 = scmp.ne.s32.totalorder %s23, %s24
    %p35 = scmp.eq.s32.totalorder %s15, 0
    %p36 = por %p34, %p35
    %p37 = scmp.ne.s32.totalorder %s23, %s24
    %p38 = scmp.eq.s32.totalorder %s16, 1
    %p39 = por %p37, %p38
    %p41 = scmp.ne.s32.totalorder %s24, %s40
    %p42 = scmp.eq.s32.totalorder %s16, 0
    %p43 = por %p41, %p42
    %s45 = sadd.s32 %s44, 1
    %p48 = scmp.eq.s32.totalorder %s10, 1
    %p49 = scmp.ne.s32.totalorder %s44, %s46
    %p50 = scmp.eq.s32.totalorder %s10, 0
    %p51 = por %p49, %p50
    %p52 = scmp.ne.s32.totalorder %s44, %s46
    %p53 = scmp.eq.s32.totalorder %s15, 1
    %p54 = por %p52, %p53
    %p55 = scmp.ne.s32.totalorder %s46, %s47
    %p56 = scmp.eq.s32.totalorder %s15, 0
    %p57 = por %p55, %p56
    %p58 = scmp.ne.s32.totalorder %s46, %s47
    %p59 = scmp.eq.s32.totalorder %s16, 1
    %p60 = por %p58, %p59
    %p62 = scmp.ne.s32.totalorder %s47, %s61
    %p63 = scmp.eq.s32.totalorder %s16, 0
    %p64 = por %p62, %p63
    %s65 = ssub.s32 %s10, %s17
    %p66 = scmp.eq.s32.totalorder %s65, 0
    %s68 = sadd.s32 %s67, 1
    %s69 = scalar_select %p66, %s67, %s68
    %p72 = pneg %p66
    %p73 = scmp.eq.s32.totalorder %s10, 1
    %p74 = por %p72, %p73
    %p75 = scmp.ne.s32.totalorder %s67, %s70
    %p76 = scmp.eq.s32.totalorder %s10, 0
    %p77 = por %p75, %p76
    %p78 = scmp.ne.s32.totalorder %s67, %s70
    %p79 = scmp.eq.s32.totalorder %s15, 1
    %p80 = por %p78, %p79
    %p81 = scmp.ne.s32.totalorder %s70, %s71
    %p82 = scmp.eq.s32.totalorder %s15, 0
    %p83 = por %p81, %p82
    %p84 = scmp.ne.s32.totalorder %s70, %s71
    %p85 = scmp.eq.s32.totalorder %s16, 1
    %p86 = por %p84, %p85
    %p88 = scmp.ne.s32.totalorder %s71, %s87
    %p89 = scmp.eq.s32.totalorder %s16, 0
    %p90 = por %p88, %p89
    %s91 = ssub.s32 %s10, %s17
    %p92 = scmp.eq.s32.totalorder %s91, 0
    %s94 = sadd.s32 %s93, 1
    %s95 = scalar_select %p92, %s93, %s94
    %p98 = pneg %p92
    %p99 = scmp.eq.s32.totalorder %s10, 1
    %p100 = por %p98, %p99
    %p101 = scmp.ne.s32.totalorder %s93, %s96
    %p102 = scmp.eq.s32.totalorder %s10, 0
    %p103 = por %p101, %p102
    %p104 = scmp.ne.s32.totalorder %s93, %s96
    %p105 = scmp.eq.s32.totalorder %s15, 1
    %p106 = por %p104, %p105
    %p107 = scmp.ne.s32.totalorder %s96, %s97
    %p108 = scmp.eq.s32.totalorder %s15, 0
    %p109 = por %p107, %p108
    %p110 = scmp.ne.s32.totalorder %s96, %s97
    %p111 = scmp.eq.s32.totalorder %s16, 1
    %p112 = por %p110, %p111
    %p114 = scmp.ne.s32.totalorder %s97, %s113
    %p115 = scmp.eq.s32.totalorder %s16, 0
    %p116 = por %p114, %p115
    %p117 = scmp.le.s32.totalorder 1, %s10
    %p118 = scmp.lt.s32.totalorder %s10, 3
    %p119 = pnand %p117, %p118
    %p120 = pneg %p119
    // Predicated region
    $region9: #{conv_block.2} parent=5 // pred_check
      _
    $region10: #{conv_block.2} parent=5 // pred_check_branch
      %122 = sbr.rel (%p119) target = $region12
    $region11: #{conv_block.2} parent=5 // pred_region
      %s123 = ssub.s32 %s10, 1
      // Predicated region
      $region13: #{conv_block.2} parent=11 // pred_check
        %p124 = pneg %p57
      $region14: #{conv_block.2} parent=11 // pred_check_branch
        %126 = sbr.rel (%p124) target = $region16
      $region15: #{conv_block.2} parent=11 // pred_region
        _
      $region16: #{conv_block.2} parent=11 // pred_fallthru
        _
    $region12: #{conv_block.2} parent=5 // pred_fallthru
      _
    %p127 = scmp.lt.s32.totalorder %s10, 2
    // Predicated region
    $region17: #{conv_block.2} parent=5 // pred_check
      %p128 = pneg %p127
    $region18: #{conv_block.2} parent=5 // pred_check_branch
      %130 = sbr.rel (%p128) target = $region20
    $region19: #{conv_block.2} parent=5 // pred_region
      // Predicated region
      $region21: #{conv_block.2} parent=19 // pred_check
        %p131 = pneg %p30
      $region22: #{conv_block.2} parent=19 // pred_check_branch
        %133 = sbr.rel (%p131) target = $region24
      $region23: #{conv_block.2} parent=19 // pred_region
        %p134 = scmp.lt.s32.totalorder %s10, 1
        %s135 = scalar_select %p134, %s10, 1
        %s136 = smul.addr %s135, 54
        %s137 = smul.addr %s136, 4
        %s138 = scalar_lea.vmem %s0, %s137
      $region24: #{conv_block.2} parent=19 // pred_fallthru
        _
    $region20: #{conv_block.2} parent=5 // pred_fallthru
      _
    %p139 = scmp.le.s32.totalorder 1, %s10
    %p140 = scmp.lt.s32.totalorder %s10, 3
    %p141 = pnand %p139, %p140
    %p142 = pneg %p141
    // Predicated region
    $region25: #{conv_block.2} parent=5 // pred_check
      _
    $region26: #{conv_block.2} parent=5 // pred_check_branch
      %144 = sbr.rel (%p141) target = $region28
    $region27: #{conv_block.2} parent=5 // pred_region
      %s145 = ssub.s32 %s10, 1
      %p146 = scmp.lt.s32.totalorder %s15, 1
      %s147 = scalar_select %p146, %s15, 1
      %s148 = smul.addr %s147, 54
      %s149 = smul.addr %s148, 4
      %s150 = scalar_lea.vmem %s0, %s149
      %p151 = pneg %p36
      %p152 = pneg %p33
      %p153 = pneg %p57
      %p154 = pneg %p54
      %p155 = pneg %p83
      %p156 = pneg %p80
      %p157 = scmp.lt.s32.totalorder %s15, 1
      %s158 = scalar_select %p157, %s15, 1
      %s159 = smul.addr %s158, 32
      %s160 = smul.addr %s159, 4
      %s161 = scalar_lea.vmem %s2, %s160
      %p162 = pneg %p109
      %p163 = pneg %p106
      %p164 = scmp.lt.s32.totalorder %s15, 1
      %s165 = scalar_select %p164, %s15, 1
      %s166 = smul.addr %s165, 2
      %s167 = scalar_lea.vmem %s3, %s166
      %p168 = scmp.lt.s32.totalorder %s15, 1
      %s169 = scalar_select %p168, %s15, 1
      %s170 = smul.addr %s169, 54
      %s171 = smul.addr %s170, 4
      %s172 = scalar_lea.vmem %s0, %s171
      %p173 = scmp.lt.s32.totalorder %s15, 1
      %s174 = scalar_select %p173, %s15, 1
      %s175 = smul.addr %s174, 32
      %s176 = smul.addr %s175, 4
      %s177 = scalar_lea.vmem %s2, %s176
      %p178 = scmp.lt.s32.totalorder %s15, 1
      %s179 = scalar_select %p178, %s15, 1
      %s180 = smul.addr %s179, 2
      %s181 = scalar_lea.vmem %s3, %s180
      %v183 = vld [vmem:[%s172] sm:$0xf]
      %v184 = vld [vmem:[%s172 + $0x4] sm:$0xf]
      %v185 = vld [vmem:[%s172 + $0x8] sm:$0x1]
      %v186 = vld [vmem:[%s172 + $0xc] sm:$0xf]
      %v187 = vld [vmem:[%s172 + $0x10] sm:$0xf]
      %v188 = vld [vmem:[%s172 + $0x14] sm:$0x1]
      %v189 = vld [vmem:[%s172 + $0x18] sm:$0xf]
      %v190 = vld [vmem:[%s172 + $0x1c] sm:$0xf]
      %v191 = vld [vmem:[%s172 + $0x20] sm:$0x1]
      %v192 = vld [vmem:[%s172 + $0x24] sm:$0xf]
      %v193 = vld [vmem:[%s172 + $0x28] sm:$0xf]
      %v194 = vld [vmem:[%s172 + $0x2c] sm:$0x1]
      %v195 = vld [vmem:[%s172 + $0x30] sm:$0xf]
      %v196 = vld [vmem:[%s172 + $0x34] sm:$0xf]
      %v197 = vld [vmem:[%s172 + $0x38] sm:$0x1]
      %v198 = vld [vmem:[%s172 + $0x3c] sm:$0xf]
      %v199 = vld [vmem:[%s172 + $0x40] sm:$0xf]
      %v200 = vld [vmem:[%s172 + $0x44] sm:$0x1]
      %v201 = vld [vmem:[%s172 + $0x48] sm:$0xf]
      %v202 = vld [vmem:[%s172 + $0x4c] sm:$0xf]
      %v203 = vld [vmem:[%s172 + $0x50] sm:$0x1]
      %v204 = vld [vmem:[%s172 + $0x54] sm:$0xf]
      %v205 = vld [vmem:[%s172 + $0x58] sm:$0xf]
      %v206 = vld [vmem:[%s172 + $0x5c] sm:$0x1]
      %v207 = vld [vmem:[%s172 + $0x60] sm:$0xf]
      %v208 = vld [vmem:[%s172 + $0x64] sm:$0xf]
      %v209 = vld [vmem:[%s172 + $0x68] sm:$0x1]
      %v210 = vld [vmem:[%s172 + $0x6c] sm:$0xf]
      %v211 = vld [vmem:[%s172 + $0x70] sm:$0xf]
      %v212 = vld [vmem:[%s172 + $0x74] sm:$0x1]
      %v213 = vld [vmem:[%s172 + $0x78] sm:$0xf]
      %v214 = vld [vmem:[%s172 + $0x7c] sm:$0xf]
      %v215 = vld [vmem:[%s172 + $0x80] sm:$0x1]
      %v216 = vld [vmem:[%s172 + $0x84] sm:$0xf]
      %v217 = vld [vmem:[%s172 + $0x88] sm:$0xf]
      %v218 = vld [vmem:[%s172 + $0x8c] sm:$0x1]
      %v219 = vld [vmem:[%s172 + $0x90] sm:$0xf]
      %v220 = vld [vmem:[%s172 + $0x94] sm:$0xf]
      %v221 = vld [vmem:[%s172 + $0x98] sm:$0x1]
      %v222 = vld [vmem:[%s172 + $0x9c] sm:$0xf]
      %v223 = vld [vmem:[%s172 + $0xa0] sm:$0xf]
      %v224 = vld [vmem:[%s172 + $0xa4] sm:$0x1]
      %v225 = vld [vmem:[%s172 + $0xa8] sm:$0xf]
      %v226 = vld [vmem:[%s172 + $0xac] sm:$0xf]
      %v227 = vld [vmem:[%s172 + $0xb0] sm:$0x1]
      %v228 = vld [vmem:[%s172 + $0xb4] sm:$0xf]
      %v229 = vld [vmem:[%s172 + $0xb8] sm:$0xf]
      %v230 = vld [vmem:[%s172 + $0xbc] sm:$0x1]
      %v231 = vld [vmem:[%s172 + $0xc0] sm:$0xf]
      %v232 = vld [vmem:[%s172 + $0xc4] sm:$0xf]
      %v233 = vld [vmem:[%s172 + $0xc8] sm:$0x1]
      %v234 = vld [vmem:[%s172 + $0xcc] sm:$0xf]
      %v235 = vld [vmem:[%s172 + $0xd0] sm:$0xf]
      %v236 = vld [vmem:[%s172 + $0xd4] sm:$0x1]
      %v237 = vld [vmem:[%s1] sm:$0x3]
      %s238 = scalar_lea.vmem %s1, 6
      %v239 = vld [vmem:[%s238] sm:$0x3]
      %v272 = vunpack.c.l.b16 %v186
      %v273 = vunpack.c.l.b16 %v187
      %v274 = vunpack.c.l.b16 %v189
      %v275 = vunpack.c.l.b16 %v190
      %v276 = vunpack.c.l.b16 %v192
      %v277 = vunpack.c.l.b16 %v193
      %v278 = vunpack.c.l.b16 %v195
      %v279 = vunpack.c.l.b16 %v196
      %v280 = vunpack.c.l.b16 %v198
      %v281 = vunpack.c.l.b16 %v199
      %v282 = vunpack.c.l.b16 %v201
      %v283 = vunpack.c.l.b16 %v202
      %v284 = vunpack.c.l.b16 %v204
      %v285 = vunpack.c.l.b16 %v205
      %v286 = vunpack.c.l.b16 %v207
      %v287 = vunpack.c.l.b16 %v208
      %v288 = vunpack.c.l.b16 %v210
      %v289 = vunpack.c.l.b16 %v211
      %v290 = vunpack.c.l.b16 %v213
      %v291 = vunpack.c.l.b16 %v214
      %v292 = vunpack.c.l.b16 %v216
      %v293 = vunpack.c.l.b16 %v217
      %v294 = vunpack.c.l.b16 %v219
      %v295 = vunpack.c.l.b16 %v220
      %v296 = vunpack.c.l.b16 %v222
      %v297 = vunpack.c.l.b16 %v223
      %v298 = vunpack.c.l.b16 %v225
      %v299 = vunpack.c.l.b16 %v226
      %v300 = vunpack.c.l.b16 %v228
      %v301 = vunpack.c.l.b16 %v229
      %v302 = vunpack.c.l.b16 %v231
      %v303 = vunpack.c.l.b16 %v232
      %v304 = vpack.c.b16 %v273, %v272
      %v305 = vpack.c.b16 %v275, %v274
      %v306 = vpack.c.b16 %v277, %v276
      %v307 = vpack.c.b16 %v279, %v278
      %v308 = vpack.c.b16 %v281, %v280
      %v309 = vpack.c.b16 %v283, %v282
      %v310 = vpack.c.b16 %v285, %v284
      %v311 = vpack.c.b16 %v287, %v286
      %v312 = vpack.c.b16 %v289, %v288
      %v313 = vpack.c.b16 %v291, %v290
      %v314 = vpack.c.b16 %v293, %v292
      %v315 = vpack.c.b16 %v295, %v294
      %v316 = vpack.c.b16 %v297, %v296
      %v317 = vpack.c.b16 %v299, %v298
      %v318 = vpack.c.b16 %v301, %v300
      %v319 = vpack.c.b16 %v303, %v302
      %vm320 = vcmask 31744
      %v322 = vsel %vm320, %v304, 0
      %v325 = vsel %vm320, %v305, 0
      %v328 = vsel %vm320, %v306, 0
      %v331 = vsel %vm320, %v307, 0
      %v334 = vsel %vm320, %v308, 0
      %v337 = vsel %vm320, %v309, 0
      %v340 = vsel %vm320, %v310, 0
      %v343 = vsel %vm320, %v311, 0
      %v346 = vsel %vm320, %v312, 0
      %v349 = vsel %vm320, %v313, 0
      %v352 = vsel %vm320, %v314, 0
      %v355 = vsel %vm320, %v315, 0
      %v358 = vsel %vm320, %v316, 0
      %v361 = vsel %vm320, %v317, 0
      %v364 = vsel %vm320, %v318, 0
      %v367 = vsel %vm320, %v319, 0
      %vm369 = vcmask 1041408
      %v371 = vsel %vm369, %v239, 0
      %373 = vmatprep.subr.bf16.mxu0 0
      %374 = vmatpush1.bf16.msra.mxu0 %v371
      %375 = vmatprep.subr.bf16.mxu0 0
      %376 = vmatpush1.bf16.msra.mxu0 0
      %377 = vmatprep.subr.bf16.mxu0 0
      %378 = vmatpush1.bf16.msra.mxu0 0
      %379 = vmatprep.subr.bf16.mxu0 0
      %380 = vmatpush1.bf16.msra.mxu0 0
      %381 = vmatprep.subr.bf16.mxu0 0
      %382 = vmatpush1.bf16.msra.mxu0 0
      %383 = vmatprep.subr.bf16.mxu0 0
      %384 = vmatpush1.bf16.msra.mxu0 0
      %385 = vmatprep.subr.bf16.mxu0 0
      %386 = vmatpush1.bf16.msra.mxu0 0
      %387 = vmatprep.subr.bf16.mxu0 0
      %388 = vmatpush1.bf16.msra.mxu0 0
      %389 = vmatprep.subr.bf16.mxu0 0
      %390 = vmatpush1.bf16.msra.mxu0 0
      %391 = vmatprep.subr.bf16.mxu0 0
      %392 = vmatpush1.bf16.msra.mxu0 0
      %393 = vmatprep.subr.bf16.mxu0 0
      %394 = vmatpush1.bf16.msra.mxu0 0
      %395 = vmatprep.subr.bf16.mxu0 0
      %396 = vmatpush1.bf16.msra.mxu0 0
      %397 = vmatprep.subr.bf16.mxu0 0
      %398 = vmatpush1.bf16.msra.mxu0 0
      %399 = vmatprep.subr.bf16.mxu0 0
      %400 = vmatpush1.bf16.msra.mxu0 0
      %401 = vmatprep.subr.bf16.mxu0 0
      %402 = vmatpush1.bf16.msra.mxu0 0
      %403 = vmatprep.subr.bf16.mxu0 0
      %404 = vmatpush1.bf16.msra.mxu0 0
      %405 = vmatprep.mubr.bf16.mxu0 0
      %406 = vmatmul.mubr.bf16.gmra.mrb[0].mxu0 %v322
      %v407 = vpop.f32.mrb[0].mxu0
      %v408 = vadd.f32 0.0, %v407
      %v409 = vpop.f32.mrb[0].mxu0
      %v410 = vpop.f32.mrb[0].mxu0
      %v411 = vadd.f32 0.0, %v410
      %v412 = vpop.f32.mrb[0].mxu0
      %413 = vmatprep.mubr.bf16.mxu0 0
      %414 = vmatmul.mubr.bf16.gmra.mrb[0].mxu0 %v325
      %v415 = vpop.f32.mrb[0].mxu0
      %v416 = vadd.f32 0.0, %v415
      %v417 = vpop.f32.mrb[0].mxu0
      %v418 = vpop.f32.mrb[0].mxu0
      %v419 = vadd.f32 0.0, %v418
      %v420 = vpop.f32.mrb[0].mxu0
      %421 = vmatprep.mubr.bf16.mxu0 0
      %422 = vmatmul.mubr.bf16.gmra.mrb[0].mxu0 %v328
      %v423 = vpop.f32.mrb[0].mxu0
      %v424 = vadd.f32 0.0, %v423
      %v425 = vpop.f32.mrb[0].mxu0
      %v426 = vpop.f32.mrb[0].mxu0
      %v427 = vadd.f32 0.0, %v426
      %v428 = vpop.f32.mrb[0].mxu0
      %429 = vmatprep.mubr.bf16.mxu0 0
      %430 = vmatmul.mubr.bf16.gmra.mrb[0].mxu0 %v331
      %v431 = vpop.f32.mrb[0].mxu0
      %v432 = vadd.f32 0.0, %v431
      %v433 = vpop.f32.mrb[0].mxu0
      %v434 = vpop.f32.mrb[0].mxu0
      %v435 = vadd.f32 0.0, %v434
      %v436 = vpop.f32.mrb[0].mxu0
      %437 = vmatprep.mubr.bf16.mxu0 0
      %438 = vmatmul.mubr.bf16.gmra.mrb[0].mxu0 %v334
      %v439 = vpop.f32.mrb[0].mxu0
      %v440 = vadd.f32 0.0, %v439
      %v441 = vpop.f32.mrb[0].mxu0
      %v442 = vpop.f32.mrb[0].mxu0
      %v443 = vadd.f32 0.0, %v442
      %v444 = vpop.f32.mrb[0].mxu0
      %445 = vmatprep.mubr.bf16.mxu0 0
      %446 = vmatmul.mubr.bf16.gmra.mrb[0].mxu0 %v337
      %v447 = vpop.f32.mrb[0].mxu0
      %v448 = vadd.f32 0.0, %v447
      %v449 = vpop.f32.mrb[0].mxu0
      %v450 = vpop.f32.mrb[0].mxu0
      %v451 = vadd.f32 0.0, %v450
      %v452 = vpop.f32.mrb[0].mxu0
      %453 = vmatprep.mubr.bf16.mxu0 0
      %454 = vmatmul.mubr.bf16.gmra.mrb[0].mxu0 %v340
      %v455 = vpop.f32.mrb[0].mxu0
      %v456 = vadd.f32 0.0, %v455
      %v457 = vpop.f32.mrb[0].mxu0
      %v458 = vpop.f32.mrb[0].mxu0
      %v459 = vadd.f32 0.0, %v458
      %v460 = vpop.f32.mrb[0].mxu0
      %461 = vmatprep.mubr.bf16.mxu0 0
      %462 = vmatmul.mubr.bf16.gmra.mrb[0].mxu0 %v343
      %v463 = vpop.f32.mrb[0].mxu0
      %v464 = vadd.f32 0.0, %v463
      %v465 = vpop.f32.mrb[0].mxu0
      %v466 = vpop.f32.mrb[0].mxu0
      %v467 = vadd.f32 0.0, %v466
      %v468 = vpop.f32.mrb[0].mxu0
      %469 = vmatprep.mubr.bf16.mxu0 0
      %470 = vmatmul.mubr.bf16.gmra.mrb[0].mxu0 %v346
      %v471 = vpop.f32.mrb[0].mxu0
      %v472 = vadd.f32 0.0, %v471
      %v473 = vpop.f32.mrb[0].mxu0
      %v474 = vpop.f32.mrb[0].mxu0
      %v475 = vadd.f32 0.0, %v474
      %v476 = vpop.f32.mrb[0].mxu0
      %477 = vmatprep.mubr.bf16.mxu0 0
      %478 = vmatmul.mubr.bf16.gmra.mrb[0].mxu0 %v349
      %v479 = vpop.f32.mrb[0].mxu0
      %v480 = vadd.f32 0.0, %v479
      %v481 = vpop.f32.mrb[0].mxu0
      %v482 = vpop.f32.mrb[0].mxu0
      %v483 = vadd.f32 0.0, %v482
      %v484 = vpop.f32.mrb[0].mxu0
      %485 = vmatprep.mubr.bf16.mxu0 0
      %486 = vmatmul.mubr.bf16.gmra.mrb[0].mxu0 %v352
      %v487 = vpop.f32.mrb[0].mxu0
      %v488 = vadd.f32 0.0, %v487
      %v489 = vpop.f32.mrb[0].mxu0
      %v490 = vpop.f32.mrb[0].mxu0
      %v491 = vadd.f32 0.0, %v490
      %v492 = vpop.f32.mrb[0].mxu0
      %493 = vmatprep.mubr.bf16.mxu0 0
      %494 = vmatmul.mubr.bf16.gmra.mrb[0].mxu0 %v355
      %v495 = vpop.f32.mrb[0].mxu0
      %v496 = vadd.f32 0.0, %v495
      %v497 = vpop.f32.mrb[0].mxu0
      %v498 = vpop.f32.mrb[0].mxu0
      %v499 = vadd.f32 0.0, %v498
      %v500 = vpop.f32.mrb[0].mxu0
      %501 = vmatprep.mubr.bf16.mxu0 0
      %502 = vmatmul.mubr.bf16.gmra.mrb[0].mxu0 %v358
      %v503 = vpop.f32.mrb[0].mxu0
      %v504 = vadd.f32 0.0, %v503
      %v505 = vpop.f32.mrb[0].mxu0
      %v506 = vpop.f32.mrb[0].mxu0
      %v507 = vadd.f32 0.0, %v506
      %v508 = vpop.f32.mrb[0].mxu0
      %509 = vmatprep.mubr.bf16.mxu0 0
      %510 = vmatmul.mubr.bf16.gmra.mrb[0].mxu0 %v361
      %v511 = vpop.f32.mrb[0].mxu0
      %v512 = vadd.f32 0.0, %v511
      %v513 = vpop.f32.mrb[0].mxu0
      %v514 = vpop.f32.mrb[0].mxu0
      %v515 = vadd.f32 0.0, %v514
      %v516 = vpop.f32.mrb[0].mxu0
      %517 = vmatprep.mubr.bf16.mxu0 0
      %518 = vmatmul.mubr.bf16.gmra.mrb[0].mxu0 %v364
      %v519 = vpop.f32.mrb[0].mxu0
      %v520 = vadd.f32 0.0, %v519
      %v521 = vpop.f32.mrb[0].mxu0
      %v522 = vpop.f32.mrb[0].mxu0
      %v523 = vadd.f32 0.0, %v522
      %v524 = vpop.f32.mrb[0].mxu0
      %525 = vmatprep.mubr.bf16.mxu0 0
      %526 = vmatmul.mubr.bf16.gmra.mrb[0].mxu0 %v367
      %v527 = vpop.f32.mrb[0].mxu0
      %v528 = vadd.f32 0.0, %v527
      %v529 = vpop.f32.mrb[0].mxu0
      %v530 = vpop.f32.mrb[0].mxu0
      %v531 = vadd.f32 0.0, %v530
      %v532 = vpop.f32.mrb[0].mxu0
      %533 = vdwg.mxu0
      %v536 = vunpack.c.l.b16 %v183
      %v537 = vunpack.c.l.b16 %v184
      %v538 = vpack.c.b16 %v537, %v536
      %v540 = vsel %vm320, %v538, 0
      %v543 = vsel %vm369, %v237, 0
      %545 = vmatprep.subr.bf16.mxu0 0
      %546 = vmatpush1.bf16.msra.mxu0 %v543
      %547 = vmatprep.subr.bf16.mxu0 0
      %548 = vmatpush1.bf16.msra.mxu0 0
      %549 = vmatprep.subr.bf16.mxu0 0
      %550 = vmatpush1.bf16.msra.mxu0 0
      %551 = vmatprep.subr.bf16.mxu0 0
      %552 = vmatpush1.bf16.msra.mxu0 0
      %553 = vmatprep.subr.bf16.mxu0 0
      %554 = vmatpush1.bf16.msra.mxu0 0
      %555 = vmatprep.subr.bf16.mxu0 0
      %556 = vmatpush1.bf16.msra.mxu0 0
      %557 = vmatprep.subr.bf16.mxu0 0
      %558 = vmatpush1.bf16.msra.mxu0 0
      %559 = vmatprep.subr.bf16.mxu0 0
      %560 = vmatpush1.bf16.msra.mxu0 0
      %561 = vmatprep.subr.bf16.mxu0 0
      %562 = vmatpush1.bf16.msra.mxu0 0
      %563 = vmatprep.subr.bf16.mxu0 0
      %564 = vmatpush1.bf16.msra.mxu0 0
      %565 = vmatprep.subr.bf16.mxu0 0
      %566 = vmatpush1.bf16.msra.mxu0 0
      %567 = vmatprep.subr.bf16.mxu0 0
      %568 = vmatpush1.bf16.msra.mxu0 0
      %569 = vmatprep.subr.bf16.mxu0 0
      %570 = vmatpush1.bf16.msra.mxu0 0
      %571 = vmatprep.subr.bf16.mxu0 0
      %572 = vmatpush1.bf16.msra.mxu0 0
      %573 = vmatprep.subr.bf16.mxu0 0
      %574 = vmatpush1.bf16.msra.mxu0 0
      %575 = vmatprep.subr.bf16.mxu0 0
      %576 = vmatpush1.bf16.msra.mxu0 0
      %577 = vmatprep.mubr.bf16.mxu0 0
      %578 = vmatmul.mubr.bf16.gmra.mrb[0].mxu0 %v540
      %v579 = vpop.f32.mrb[0].mxu0
      %v580 = vadd.f32 %v408, %v579
      %v581 = vpop.f32.mrb[0].mxu0
      %v582 = vpop.f32.mrb[0].mxu0
      %v583 = vadd.f32 %v411, %v582
      %v584 = vpop.f32.mrb[0].mxu0
      %585 = vmatprep.mubr.bf16.mxu0 0
      %586 = vmatmul.mubr.bf16.gmra.mrb[0].mxu0 %v322
      %v587 = vpop.f32.mrb[0].mxu0
      %v588 = vadd.f32 %v416, %v587
      %v589 = vpop.f32.mrb[0].mxu0
      %v590 = vpop.f32.mrb[0].mxu0
      %v591 = vadd.f32 %v419, %v590
      %v592 = vpop.f32.mrb[0].mxu0
      %593 = vmatprep.mubr.bf16.mxu0 0
      %594 = vmatmul.mubr.bf16.gmra.mrb[0].mxu0 %v325
      %v595 = vpop.f32.mrb[0].mxu0
      %v596 = vadd.f32 %v424, %v595
      %v597 = vpop.f32.mrb[0].mxu0
      %v598 = vpop.f32.mrb[0].mxu0
      %v599 = vadd.f32 %v427, %v598
      %v600 = vpop.f32.mrb[0].mxu0
      %601 = vmatprep.mubr.bf16.mxu0 0
      %602 = vmatmul.mubr.bf16.gmra.mrb[0].mxu0 %v328
      %v603 = vpop.f32.mrb[0].mxu0
      %v604 = vadd.f32 %v432, %v603
      %v605 = vpop.f32.mrb[0].mxu0
      %v606 = vpop.f32.mrb[0].mxu0
      %v607 = vadd.f32 %v435, %v606
      %v608 = vpop.f32.mrb[0].mxu0
      %609 = vmatprep.mubr.bf16.mxu0 0
      %610 = vmatmul.mubr.bf16.gmra.mrb[0].mxu0 %v331
      %v611 = vpop.f32.mrb[0].mxu0
      %v612 = vadd.f32 %v440, %v611
      %v613 = vpop.f32.mrb[0].mxu0
      %v614 = vpop.f32.mrb[0].mxu0
      %v615 = vadd.f32 %v443, %v614
      %v616 = vpop.f32.mrb[0].mxu0
      %617 = vmatprep.mubr.bf16.mxu0 0
      %618 = vmatmul.mubr.bf16.gmra.mrb[0].mxu0 %v334
      %v619 = vpop.f32.mrb[0].mxu0
      %v620 = vadd.f32 %v448, %v619
      %v621 = vpop.f32.mrb[0].mxu0
      %v622 = vpop.f32.mrb[0].mxu0
      %v623 = vadd.f32 %v451, %v622
      %v624 = vpop.f32.mrb[0].mxu0
      %625 = vmatprep.mubr.bf16.mxu0 0
      %626 = vmatmul.mubr.bf16.gmra.mrb[0].mxu0 %v337
      %v627 = vpop.f32.mrb[0].mxu0
      %v628 = vadd.f32 %v456, %v627
      %v629 = vpop.f32.mrb[0].mxu0
      %v630 = vpop.f32.mrb[0].mxu0
      %v631 = vadd.f32 %v459, %v630
      %v632 = vpop.f32.mrb[0].mxu0
      %633 = vmatprep.mubr.bf16.mxu0 0
      %634 = vmatmul.mubr.bf16.gmra.mrb[0].mxu0 %v340
      %v635 = vpop.f32.mrb[0].mxu0
      %v636 = vadd.f32 %v464, %v635
      %v637 = vpop.f32.mrb[0].mxu0
      %v638 = vpop.f32.mrb[0].mxu0
      %v639 = vadd.f32 %v467, %v638
      %v640 = vpop.f32.mrb[0].mxu0
      %641 = vmatprep.mubr.bf16.mxu0 0
      %642 = vmatmul.mubr.bf16.gmra.mrb[0].mxu0 %v343
      %v643 = vpop.f32.mrb[0].mxu0
      %v644 = vadd.f32 %v472, %v643
      %v645 = vpop.f32.mrb[0].mxu0
      %v646 = vpop.f32.mrb[0].mxu0
      %v647 = vadd.f32 %v475, %v646
      %v648 = vpop.f32.mrb[0].mxu0
      %649 = vmatprep.mubr.bf16.mxu0 0
      %650 = vmatmul.mubr.bf16.gmra.mrb[0].mxu0 %v346
      %v651 = vpop.f32.mrb[0].mxu0
      %v652 = vadd.f32 %v480, %v651
      %v653 = vpop.f32.mrb[0].mxu0
      %v654 = vpop.f32.mrb[0].mxu0
      %v655 = vadd.f32 %v483, %v654
      %v656 = vpop.f32.mrb[0].mxu0
      %657 = vmatprep.mubr.bf16.mxu0 0
      %658 = vmatmul.mubr.bf16.gmra.mrb[0].mxu0 %v349
      %v659 = vpop.f32.mrb[0].mxu0
      %v660 = vadd.f32 %v488, %v659
      %v661 = vpop.f32.mrb[0].mxu0
      %v662 = vpop.f32.mrb[0].mxu0
      %v663 = vadd.f32 %v491, %v662
      %v664 = vpop.f32.mrb[0].mxu0
      %665 = vmatprep.mubr.bf16.mxu0 0
      %666 = vmatmul.mubr.bf16.gmra.mrb[0].mxu0 %v352
      %v667 = vpop.f32.mrb[0].mxu0
      %v668 = vadd.f32 %v496, %v667
      %v669 = vpop.f32.mrb[0].mxu0
      %v670 = vpop.f32.mrb[0].mxu0
      %v671 = vadd.f32 %v499, %v670
      %v672 = vpop.f32.mrb[0].mxu0
      %673 = vmatprep.mubr.bf16.mxu0 0
      %674 = vmatmul.mubr.bf16.gmra.mrb[0].mxu0 %v355
      %v675 = vpop.f32.mrb[0].mxu0
      %v676 = vadd.f32 %v504, %v675
      %v677 = vpop.f32.mrb[0].mxu0
      %v678 = vpop.f32.mrb[0].mxu0
      %v679 = vadd.f32 %v507, %v678
      %v680 = vpop.f32.mrb[0].mxu0
      %681 = vmatprep.mubr.bf16.mxu0 0
      %682 = vmatmul.mubr.bf16.gmra.mrb[0].mxu0 %v358
      %v683 = vpop.f32.mrb[0].mxu0
      %v684 = vadd.f32 %v512, %v683
      %v685 = vpop.f32.mrb[0].mxu0
      %v686 = vpop.f32.mrb[0].mxu0
      %v687 = vadd.f32 %v515, %v686
      %v688 = vpop.f32.mrb[0].mxu0
      %689 = vmatprep.mubr.bf16.mxu0 0
      %690 = vmatmul.mubr.bf16.gmra.mrb[0].mxu0 %v361
      %v691 = vpop.f32.mrb[0].mxu0
      %v692 = vadd.f32 %v520, %v691
      %v693 = vpop.f32.mrb[0].mxu0
      %v694 = vpop.f32.mrb[0].mxu0
      %v695 = vadd.f32 %v523, %v694
      %v696 = vpop.f32.mrb[0].mxu0
      %697 = vmatprep.mubr.bf16.mxu0 0
      %698 = vmatmul.mubr.bf16.gmra.mrb[0].mxu0 %v364
      %v699 = vpop.f32.mrb[0].mxu0
      %v700 = vadd.f32 %v528, %v699
      %v701 = vpop.f32.mrb[0].mxu0
      %v702 = vpop.f32.mrb[0].mxu0
      %v703 = vadd.f32 %v531, %v702
      %v704 = vpop.f32.mrb[0].mxu0
      %705 = vdwg.mxu0
      %s706 = scalar_lea.vmem %s1, 12
      %v707 = vld [vmem:[%s706] sm:$0x3]
      %v710 = vunpack.c.l.b16 %v234
      %v711 = vunpack.c.l.b16 %v235
      %v712 = vpack.c.b16 %v711, %v710
      %v714 = vsel %vm320, %v712, 0
      %v717 = vsel %vm369, %v707, 0
      %719 = vmatprep.subr.bf16.mxu0 0
      %720 = vmatpush1.bf16.msra.mxu0 %v717
      %721 = vmatprep.subr.bf16.mxu0 0
      %722 = vmatpush1.bf16.msra.mxu0 0
      %723 = vmatprep.subr.bf16.mxu0 0
      %724 = vmatpush1.bf16.msra.mxu0 0
      %725 = vmatprep.subr.bf16.mxu0 0
      %726 = vmatpush1.bf16.msra.mxu0 0
      %727 = vmatprep.subr.bf16.mxu0 0
      %728 = vmatpush1.bf16.msra.mxu0 0
      %729 = vmatprep.subr.bf16.mxu0 0
      %730 = vmatpush1.bf16.msra.mxu0 0
      %731 = vmatprep.subr.bf16.mxu0 0
      %732 = vmatpush1.bf16.msra.mxu0 0
      %733 = vmatprep.subr.bf16.mxu0 0
      %734 = vmatpush1.bf16.msra.mxu0 0
      %735 = vmatprep.subr.bf16.mxu0 0
      %736 = vmatpush1.bf16.msra.mxu0 0
      %737 = vmatprep.subr.bf16.mxu0 0
      %738 = vmatpush1.bf16.msra.mxu0 0
      %739 = vmatprep.subr.bf16.mxu0 0
      %740 = vmatpush1.bf16.msra.mxu0 0
      %741 = vmatprep.subr.bf16.mxu0 0
      %742 = vmatpush1.bf16.msra.mxu0 0
      %743 = vmatprep.subr.bf16.mxu0 0
      %744 = vmatpush1.bf16.msra.mxu0 0
      %745 = vmatprep.subr.bf16.mxu0 0
      %746 = vmatpush1.bf16.msra.mxu0 0
      %747 = vmatprep.subr.bf16.mxu0 0
      %748 = vmatpush1.bf16.msra.mxu0 0
      %749 = vmatprep.subr.bf16.mxu0 0
      %750 = vmatpush1.bf16.msra.mxu0 0
      %751 = vmatprep.mubr.bf16.mxu0 0
      %752 = vmatmul.mubr.bf16.gmra.mrb[0].mxu0 %v325
      %v753 = vpop.f32.mrb[0].mxu0
      %v754 = vadd.f32 0.0, %v753
      %v755 = vpop.f32.mrb[0].mxu0
      %v756 = vpop.f32.mrb[0].mxu0
      %v757 = vadd.f32 0.0, %v756
      %v758 = vpop.f32.mrb[0].mxu0
      %759 = vmatprep.mubr.bf16.mxu0 0
      %760 = vmatmul.mubr.bf16.gmra.mrb[0].mxu0 %v328
      %v761 = vpop.f32.mrb[0].mxu0
      %v762 = vadd.f32 0.0, %v761
      %v763 = vpop.f32.mrb[0].mxu0
      %v764 = vpop.f32.mrb[0].mxu0
      %v765 = vadd.f32 0.0, %v764
      %v766 = vpop.f32.mrb[0].mxu0
      %767 = vmatprep.mubr.bf16.mxu0 0
      %768 = vmatmul.mubr.bf16.gmra.mrb[0].mxu0 %v331
      %v769 = vpop.f32.mrb[0].mxu0
      %v770 = vadd.f32 0.0, %v769
      %v771 = vpop.f32.mrb[0].mxu0
      %v772 = vpop.f32.mrb[0].mxu0
      %v773 = vadd.f32 0.0, %v772
      %v774 = vpop.f32.mrb[0].mxu0
      %775 = vmatprep.mubr.bf16.mxu0 0
      %776 = vmatmul.mubr.bf16.gmra.mrb[0].mxu0 %v334
      %v777 = vpop.f32.mrb[0].mxu0
      %v778 = vadd.f32 0.0, %v777
      %v779 = vpop.f32.mrb[0].mxu0
      %v780 = vpop.f32.mrb[0].mxu0
      %v781 = vadd.f32 0.0, %v780
      %v782 = vpop.f32.mrb[0].mxu0
      %783 = vmatprep.mubr.bf16.mxu0 0
      %784 = vmatmul.mubr.bf16.gmra.mrb[0].mxu0 %v337
      %v785 = vpop.f32.mrb[0].mxu0
      %v786 = vadd.f32 0.0, %v785
      %v787 = vpop.f32.mrb[0].mxu0
      %v788 = vpop.f32.mrb[0].mxu0
      %v789 = vadd.f32 0.0, %v788
      %v790 = vpop.f32.mrb[0].mxu0
      %791 = vmatprep.mubr.bf16.mxu0 0
      %792 = vmatmul.mubr.bf16.gmra.mrb[0].mxu0 %v340
      %v793 = vpop.f32.mrb[0].mxu0
      %v794 = vadd.f32 0.0, %v793
      %v795 = vpop.f32.mrb[0].mxu0
      %v796 = vpop.f32.mrb[0].mxu0
      %v797 = vadd.f32 0.0, %v796
      %v798 = vpop.f32.mrb[0].mxu0
      %799 = vmatprep.mubr.bf16.mxu0 0
      %800 = vmatmul.mubr.bf16.gmra.mrb[0].mxu0 %v343
      %v801 = vpop.f32.mrb[0].mxu0
      %v802 = vadd.f32 0.0, %v801
      %v803 = vpop.f32.mrb[0].mxu0
      %v804 = vpop.f32.mrb[0].mxu0
      %v805 = vadd.f32 0.0, %v804
      %v806 = vpop.f32.mrb[0].mxu0
      %807 = vmatprep.mubr.bf16.mxu0 0
      %808 = vmatmul.mubr.bf16.gmra.mrb[0].mxu0 %v346
      %v809 = vpop.f32.mrb[0].mxu0
      %v810 = vadd.f32 0.0, %v809
      %v811 = vpop.f32.mrb[0].mxu0
      %v812 = vpop.f32.mrb[0].mxu0
      %v813 = vadd.f32 0.0, %v812
      %v814 = vpop.f32.mrb[0].mxu0
      %815 = vmatprep.mubr.bf16.mxu0 0
      %816 = vmatmul.mubr.bf16.gmra.mrb[0].mxu0 %v349
      %v817 = vpop.f32.mrb[0].mxu0
      %v818 = vadd.f32 0.0, %v817
      %v819 = vpop.f32.mrb[0].mxu0
      %v820 = vpop.f32.mrb[0].mxu0
      %v821 = vadd.f32 0.0, %v820
      %v822 = vpop.f32.mrb[0].mxu0
      %823 = vmatprep.mubr.bf16.mxu0 0
      %824 = vmatmul.mubr.bf16.gmra.mrb[0].mxu0 %v352
      %v825 = vpop.f32.mrb[0].mxu0
      %v826 = vadd.f32 0.0, %v825
      %v827 = vpop.f32.mrb[0].mxu0
      %v828 = vpop.f32.mrb[0].mxu0
      %v829 = vadd.f32 0.0, %v828
      %v830 = vpop.f32.mrb[0].mxu0
      %831 = vmatprep.mubr.bf16.mxu0 0
      %832 = vmatmul.mubr.bf16.gmra.mrb[0].mxu0 %v355
      %v833 = vpop.f32.mrb[0].mxu0
      %v834 = vadd.f32 0.0, %v833
      %v835 = vpop.f32.mrb[0].mxu0
      %v836 = vpop.f32.mrb[0].mxu0
      %v837 = vadd.f32 0.0, %v836
      %v838 = vpop.f32.mrb[0].mxu0
      %839 = vmatprep.mubr.bf16.mxu0 0
      %840 = vmatmul.mubr.bf16.gmra.mrb[0].mxu0 %v358
      %v841 = vpop.f32.mrb[0].mxu0
      %v842 = vadd.f32 0.0, %v841
      %v843 = vpop.f32.mrb[0].mxu0
      %v844 = vpop.f32.mrb[0].mxu0
      %v845 = vadd.f32 0.0, %v844
      %v846 = vpop.f32.mrb[0].mxu0
      %847 = vmatprep.mubr.bf16.mxu0 0
      %848 = vmatmul.mubr.bf16.gmra.mrb[0].mxu0 %v361
      %v849 = vpop.f32.mrb[0].mxu0
      %v850 = vadd.f32 0.0, %v849
      %v851 = vpop.f32.mrb[0].mxu0
      %v852 = vpop.f32.mrb[0].mxu0
      %v853 = vadd.f32 0.0, %v852
      %v854 = vpop.f32.mrb[0].mxu0
      %855 = vmatprep.mubr.bf16.mxu0 0
      %856 = vmatmul.mubr.bf16.gmra.mrb[0].mxu0 %v364
      %v857 = vpop.f32.mrb[0].mxu0
      %v858 = vadd.f32 0.0, %v857
      %v859 = vpop.f32.mrb[0].mxu0
      %v860 = vpop.f32.mrb[0].mxu0
      %v861 = vadd.f32 0.0, %v860
      %v862 = vpop.f32.mrb[0].mxu0
      %863 = vmatprep.mubr.bf16.mxu0 0
      %864 = vmatmul.mubr.bf16.gmra.mrb[0].mxu0 %v367
      %v865 = vpop.f32.mrb[0].mxu0
      %v866 = vadd.f32 0.0, %v865
      %v867 = vpop.f32.mrb[0].mxu0
      %v868 = vpop.f32.mrb[0].mxu0
      %v869 = vadd.f32 0.0, %v868
      %v870 = vpop.f32.mrb[0].mxu0
      %871 = vmatprep.mubr.bf16.mxu0 0
      %872 = vmatmul.mubr.bf16.gmra.mrb[0].mxu0 %v714
      %v873 = vpop.f32.mrb[0].mxu0
      %v874 = vadd.f32 0.0, %v873
      %v875 = vpop.f32.mrb[0].mxu0
      %v876 = vpop.f32.mrb[0].mxu0
      %v877 = vadd.f32 0.0, %v876
      %v878 = vpop.f32.mrb[0].mxu0
      %879 = vdwg.mxu0
      %v880 = vadd.f32 %v580, %v754
      %v881 = vadd.f32 %v583, %v757
      %v882 = vadd.f32 %v588, %v762
      %v883 = vadd.f32 %v591, %v765
      %v884 = vadd.f32 %v596, %v770
      %v885 = vadd.f32 %v599, %v773
      %v886 = vadd.f32 %v604, %v778
      %v887 = vadd.f32 %v607, %v781
      %v888 = vadd.f32 %v612, %v786
      %v889 = vadd.f32 %v615, %v789
      %v890 = vadd.f32 %v620, %v794
      %v891 = vadd.f32 %v623, %v797
      %v892 = vadd.f32 %v628, %v802
      %v893 = vadd.f32 %v631, %v805
      %v894 = vadd.f32 %v636, %v810
      %v895 = vadd.f32 %v639, %v813
      %v896 = vadd.f32 %v644, %v818
      %v897 = vadd.f32 %v647, %v821
      %v898 = vadd.f32 %v652, %v826
      %v899 = vadd.f32 %v655, %v829
      %v900 = vadd.f32 %v660, %v834
      %v901 = vadd.f32 %v663, %v837
      %v902 = vadd.f32 %v668, %v842
      %v903 = vadd.f32 %v671, %v845
      %v904 = vadd.f32 %v676, %v850
      %v905 = vadd.f32 %v679, %v853
      %v906 = vadd.f32 %v684, %v858
      %v907 = vadd.f32 %v687, %v861
      %v908 = vadd.f32 %v692, %v866
      %v909 = vadd.f32 %v695, %v869
      %v910 = vadd.f32 %v700, %v874
      %v911 = vadd.f32 %v703, %v877
      %vm912 = vsmask.f32 3328
      %vm913 = vsmask.f32 7440
      %vm914 = vmor %vm912, %vm913
      %v916 = vshrl.u32 %v183, 16
      %v918 = vrot.slane %v916, 4
      %v919 = vshll.u32 %v183, 16
      %v921 = vrot.slane %v919, 5
      %v922 = vor.u32 %v918, %v921
      %v923 = vrot.slane %v922, 4
      %v925 = vshll.u32 %v184, 16
      %v927 = vrot.slane %v925, 5
      %v928 = vsel %vm914, %v923, %v927
      %v929 = vshrl.u32 %v184, 16
      %v931 = vrot.slane %v929, 4
      %v932 = vor.u32 %v931, %v927
      %v933 = vrot.slane %v932, 4
      %v935 = vshll.u32 %v185, 16
      %v937 = vrot.slane %v935, 5
      %v938 = vsel %vm914, %v933, %v937
      %v940 = vshrl.u32 %v186, 16
      %v942 = vrot.slane %v940, 4
      %v943 = vshll.u32 %v186, 16
      %v945 = vrot.slane %v943, 5
      %v946 = vor.u32 %v942, %v945
      %v947 = vrot.slane %v946, 4
      %v949 = vshll.u32 %v187, 16
      %v951 = vrot.slane %v949, 5
      %v952 = vsel %vm914, %v947, %v951
      %v953 = vshrl.u32 %v187, 16
      %v955 = vrot.slane %v953, 4
      %v956 = vor.u32 %v955, %v951
      %v957 = vrot.slane %v956, 4
      %v959 = vshll.u32 %v188, 16
      %v961 = vrot.slane %v959, 5
      %v962 = vsel %vm914, %v957, %v961
      %v964 = vshrl.u32 %v189, 16
      %v966 = vrot.slane %v964, 4
      %v967 = vshll.u32 %v189, 16
      %v969 = vrot.slane %v967, 5
      %v970 = vor.u32 %v966, %v969
      %v971 = vrot.slane %v970, 4
      %v973 = vshll.u32 %v190, 16
      %v975 = vrot.slane %v973, 5
      %v976 = vsel %vm914, %v971, %v975
      %v977 = vshrl.u32 %v190, 16
      %v979 = vrot.slane %v977, 4
      %v980 = vor.u32 %v979, %v975
      %v981 = vrot.slane %v980, 4
      %v983 = vshll.u32 %v191, 16
      %v985 = vrot.slane %v983, 5
      %v986 = vsel %vm914, %v981, %v985
      %v988 = vshrl.u32 %v192, 16
      %v990 = vrot.slane %v988, 4
      %v991 = vshll.u32 %v192, 16
      %v993 = vrot.slane %v991, 5
      %v994 = vor.u32 %v990, %v993
      %v995 = vrot.slane %v994, 4
      %v997 = vshll.u32 %v193, 16
      %v999 = vrot.slane %v997, 5
      %v1000 = vsel %vm914, %v995, %v999
      %v1001 = vshrl.u32 %v193, 16
      %v1003 = vrot.slane %v1001, 4
      %v1004 = vor.u32 %v1003, %v999
      %v1005 = vrot.slane %v1004, 4
      %v1007 = vshll.u32 %v194, 16
      %v1009 = vrot.slane %v1007, 5
      %v1010 = vsel %vm914, %v1005, %v1009
      %v1012 = vshrl.u32 %v195, 16
      %v1014 = vrot.slane %v1012, 4
      %v1015 = vshll.u32 %v195, 16
      %v1017 = vrot.slane %v1015, 5
      %v1018 = vor.u32 %v1014, %v1017
      %v1019 = vrot.slane %v1018, 4
      %v1021 = vshll.u32 %v196, 16
      %v1023 = vrot.slane %v1021, 5
      %v1024 = vsel %vm914, %v1019, %v1023
      %v1025 = vshrl.u32 %v196, 16
      %v1027 = vrot.slane %v1025, 4
      %v1028 = vor.u32 %v1027, %v1023
      %v1029 = vrot.slane %v1028, 4
      %v1031 = vshll.u32 %v197, 16
      %v1033 = vrot.slane %v1031, 5
      %v1034 = vsel %vm914, %v1029, %v1033
      %v1036 = vshrl.u32 %v198, 16
      %v1038 = vrot.slane %v1036, 4
      %v1039 = vshll.u32 %v198, 16
      %v1041 = vrot.slane %v1039, 5
      %v1042 = vor.u32 %v1038, %v1041
      %v1043 = vrot.slane %v1042, 4
      %v1045 = vshll.u32 %v199, 16
      %v1047 = vrot.slane %v1045, 5
      %v1048 = vsel %vm914, %v1043, %v1047
      %v1049 = vshrl.u32 %v199, 16
      %v1051 = vrot.slane %v1049, 4
      %v1052 = vor.u32 %v1051, %v1047
      %v1053 = vrot.slane %v1052, 4
      %v1055 = vshll.u32 %v200, 16
      %v1057 = vrot.slane %v1055, 5
      %v1058 = vsel %vm914, %v1053, %v1057
      %v1060 = vshrl.u32 %v201, 16
      %v1062 = vrot.slane %v1060, 4
      %v1063 = vshll.u32 %v201, 16
      %v1065 = vrot.slane %v1063, 5
      %v1066 = vor.u32 %v1062, %v1065
      %v1067 = vrot.slane %v1066, 4
      %v1069 = vshll.u32 %v202, 16
      %v1071 = vrot.slane %v1069, 5
      %v1072 = vsel %vm914, %v1067, %v1071
      %v1073 = vshrl.u32 %v202, 16
      %v1075 = vrot.slane %v1073, 4
      %v1076 = vor.u32 %v1075, %v1071
      %v1077 = vrot.slane %v1076, 4
      %v1079 = vshll.u32 %v203, 16
      %v1081 = vrot.slane %v1079, 5
      %v1082 = vsel %vm914, %v1077, %v1081
      %v1084 = vshrl.u32 %v204, 16
      %v1086 = vrot.slane %v1084, 4
      %v1087 = vshll.u32 %v204, 16
      %v1089 = vrot.slane %v1087, 5
      %v1090 = vor.u32 %v1086, %v1089
      %v1091 = vrot.slane %v1090, 4
      %v1093 = vshll.u32 %v205, 16
      %v1095 = vrot.slane %v1093, 5
      %v1096 = vsel %vm914, %v1091, %v1095
      %v1097 = vshrl.u32 %v205, 16
      %v1099 = vrot.slane %v1097, 4
      %v1100 = vor.u32 %v1099, %v1095
      %v1101 = vrot.slane %v1100, 4
      %v1103 = vshll.u32 %v206, 16
      %v1105 = vrot.slane %v1103, 5
      %v1106 = vsel %vm914, %v1101, %v1105
      %v1108 = vshrl.u32 %v207, 16
      %v1110 = vrot.slane %v1108, 4
      %v1111 = vshll.u32 %v207, 16
      %v1113 = vrot.slane %v1111, 5
      %v1114 = vor.u32 %v1110, %v1113
      %v1115 = vrot.slane %v1114, 4
      %v1117 = vshll.u32 %v208, 16
      %v1119 = vrot.slane %v1117, 5
      %v1120 = vsel %vm914, %v1115, %v1119
      %v1121 = vshrl.u32 %v208, 16
      %v1123 = vrot.slane %v1121, 4
      %v1124 = vor.u32 %v1123, %v1119
      %v1125 = vrot.slane %v1124, 4
      %v1127 = vshll.u32 %v209, 16
      %v1129 = vrot.slane %v1127, 5
      %v1130 = vsel %vm914, %v1125, %v1129
      %v1132 = vshrl.u32 %v210, 16
      %v1134 = vrot.slane %v1132, 4
      %v1135 = vshll.u32 %v210, 16
      %v1137 = vrot.slane %v1135, 5
      %v1138 = vor.u32 %v1134, %v1137
      %v1139 = vrot.slane %v1138, 4
      %v1141 = vshll.u32 %v211, 16
      %v1143 = vrot.slane %v1141, 5
      %v1144 = vsel %vm914, %v1139, %v1143
      %v1145 = vshrl.u32 %v211, 16
      %v1147 = vrot.slane %v1145, 4
      %v1148 = vor.u32 %v1147, %v1143
      %v1149 = vrot.slane %v1148, 4
      %v1151 = vshll.u32 %v212, 16
      %v1153 = vrot.slane %v1151, 5
      %v1154 = vsel %vm914, %v1149, %v1153
      %v1156 = vshrl.u32 %v213, 16
      %v1158 = vrot.slane %v1156, 4
      %v1159 = vshll.u32 %v213, 16
      %v1161 = vrot.slane %v1159, 5
      %v1162 = vor.u32 %v1158, %v1161
      %v1163 = vrot.slane %v1162, 4
      %v1165 = vshll.u32 %v214, 16
      %v1167 = vrot.slane %v1165, 5
      %v1168 = vsel %vm914, %v1163, %v1167
      %v1169 = vshrl.u32 %v214, 16
      %v1171 = vrot.slane %v1169, 4
      %v1172 = vor.u32 %v1171, %v1167
      %v1173 = vrot.slane %v1172, 4
      %v1175 = vshll.u32 %v215, 16
      %v1177 = vrot.slane %v1175, 5
      %v1178 = vsel %vm914, %v1173, %v1177
      %v1180 = vshrl.u32 %v216, 16
      %v1182 = vrot.slane %v1180, 4
      %v1183 = vshll.u32 %v216, 16
      %v1185 = vrot.slane %v1183, 5
      %v1186 = vor.u32 %v1182, %v1185
      %v1187 = vrot.slane %v1186, 4
      %v1189 = vshll.u32 %v217, 16
      %v1191 = vrot.slane %v1189, 5
      %v1192 = vsel %vm914, %v1187, %v1191
      %v1193 = vshrl.u32 %v217, 16
      %v1195 = vrot.slane %v1193, 4
      %v1196 = vor.u32 %v1195, %v1191
      %v1197 = vrot.slane %v1196, 4
      %v1199 = vshll.u32 %v218, 16
      %v1201 = vrot.slane %v1199, 5
      %v1202 = vsel %vm914, %v1197, %v1201
      %v1204 = vshrl.u32 %v219, 16
      %v1206 = vrot.slane %v1204, 4
      %v1207 = vshll.u32 %v219, 16
      %v1209 = vrot.slane %v1207, 5
      %v1210 = vor.u32 %v1206, %v1209
      %v1211 = vrot.slane %v1210, 4
      %v1213 = vshll.u32 %v220, 16
      %v1215 = vrot.slane %v1213, 5
      %v1216 = vsel %vm914, %v1211, %v1215
      %v1217 = vshrl.u32 %v220, 16
      %v1219 = vrot.slane %v1217, 4
      %v1220 = vor.u32 %v1219, %v1215
      %v1221 = vrot.slane %v1220, 4
      %v1223 = vshll.u32 %v221, 16
      %v1225 = vrot.slane %v1223, 5
      %v1226 = vsel %vm914, %v1221, %v1225
      %v1228 = vshrl.u32 %v222, 16
      %v1230 = vrot.slane %v1228, 4
      %v1231 = vshll.u32 %v222, 16
      %v1233 = vrot.slane %v1231, 5
      %v1234 = vor.u32 %v1230, %v1233
      %v1235 = vrot.slane %v1234, 4
      %v1237 = vshll.u32 %v223, 16
      %v1239 = vrot.slane %v1237, 5
      %v1240 = vsel %vm914, %v1235, %v1239
      %v1241 = vshrl.u32 %v223, 16
      %v1243 = vrot.slane %v1241, 4
      %v1244 = vor.u32 %v1243, %v1239
      %v1245 = vrot.slane %v1244, 4
      %v1247 = vshll.u32 %v224, 16
      %v1249 = vrot.slane %v1247, 5
      %v1250 = vsel %vm914, %v1245, %v1249
      %v1252 = vshrl.u32 %v225, 16
      %v1254 = vrot.slane %v1252, 4
      %v1255 = vshll.u32 %v225, 16
      %v1257 = vrot.slane %v1255, 5
      %v1258 = vor.u32 %v1254, %v1257
      %v1259 = vrot.slane %v1258, 4
      %v1261 = vshll.u32 %v226, 16
      %v1263 = vrot.slane %v1261, 5
      %v1264 = vsel %vm914, %v1259, %v1263
      %v1265 = vshrl.u32 %v226, 16
      %v1267 = vrot.slane %v1265, 4
      %v1268 = vor.u32 %v1267, %v1263
      %v1269 = vrot.slane %v1268, 4
      %v1271 = vshll.u32 %v227, 16
      %v1273 = vrot.slane %v1271, 5
      %v1274 = vsel %vm914, %v1269, %v1273
      %v1276 = vshrl.u32 %v228, 16
      %v1278 = vrot.slane %v1276, 4
      %v1279 = vshll.u32 %v228, 16
      %v1281 = vrot.slane %v1279, 5
      %v1282 = vor.u32 %v1278, %v1281
      %v1283 = vrot.slane %v1282, 4
      %v1285 = vshll.u32 %v229, 16
      %v1287 = vrot.slane %v1285, 5
      %v1288 = vsel %vm914, %v1283, %v1287
      %v1289 = vshrl.u32 %v229, 16
      %v1291 = vrot.slane %v1289, 4
      %v1292 = vor.u32 %v1291, %v1287
      %v1293 = vrot.slane %v1292, 4
      %v1295 = vshll.u32 %v230, 16
      %v1297 = vrot.slane %v1295, 5
      %v1298 = vsel %vm914, %v1293, %v1297
      %s1299 = scalar_lea.vmem %s1, 2
      %v1300 = vld [vmem:[%s1299] sm:$0x3]
      %v1301 = vunpack.c.l.b16 %v928
      %v1302 = vunpack.c.l.b16 %v938
      %v1303 = vunpack.c.l.b16 %v952
      %v1304 = vunpack.c.l.b16 %v962
      %v1305 = vunpack.c.l.b16 %v976
      %v1306 = vunpack.c.l.b16 %v986
      %v1307 = vunpack.c.l.b16 %v1000
      %v1308 = vunpack.c.l.b16 %v1010
      %v1309 = vunpack.c.l.b16 %v1024
      %v1310 = vunpack.c.l.b16 %v1034
      %v1311 = vunpack.c.l.b16 %v1048
      %v1312 = vunpack.c.l.b16 %v1058
      %v1313 = vunpack.c.l.b16 %v1072
      %v1314 = vunpack.c.l.b16 %v1082
      %v1315 = vunpack.c.l.b16 %v1096
      %v1316 = vunpack.c.l.b16 %v1106
      %v1317 = vunpack.c.l.b16 %v1120
      %v1318 = vunpack.c.l.b16 %v1130
      %v1319 = vunpack.c.l.b16 %v1144
      %v1320 = vunpack.c.l.b16 %v1154
      %v1321 = vunpack.c.l.b16 %v1168
      %v1322 = vunpack.c.l.b16 %v1178
      %v1323 = vunpack.c.l.b16 %v1192
      %v1324 = vunpack.c.l.b16 %v1202
      %v1325 = vunpack.c.l.b16 %v1216
      %v1326 = vunpack.c.l.b16 %v1226
      %v1327 = vunpack.c.l.b16 %v1240
      %v1328 = vunpack.c.l.b16 %v1250
      %v1329 = vunpack.c.l.b16 %v1264
      %v1330 = vunpack.c.l.b16 %v1274
      %v1331 = vunpack.c.l.b16 %v1288
      %v1332 = vunpack.c.l.b16 %v1298
      %v1333 = vpack.c.b16 %v1302, %v1301
      %v1334 = vpack.c.b16 %v1304, %v1303
      %v1335 = vpack.c.b16 %v1306, %v1305
      %v1336 = vpack.c.b16 %v1308, %v1307
      %v1337 = vpack.c.b16 %v1310, %v1309
      %v1338 = vpack.c.b16 %v1312, %v1311
      %v1339 = vpack.c.b16 %v1314, %v1313
      %v1340 = vpack.c.b16 %v1316, %v1315
      %v1341 = vpack.c.b16 %v1318, %v1317
      %v1342 = vpack.c.b16 %v1320, %v1319
      %v1343 = vpack.c.b16 %v1322, %v1321
      %v1344 = vpack.c.b16 %v1324, %v1323
      %v1345 = vpack.c.b16 %v1326, %v1325
      %v1346 = vpack.c.b16 %v1328, %v1327
      %v1347 = vpack.c.b16 %v1330, %v1329
      %v1348 = vpack.c.b16 %v1332, %v1331
      %v1350 = vsel %vm320, %v1333, 0
      %v1353 = vsel %vm320, %v1334, 0
      %v1356 = vsel %vm320, %v1335, 0
      %v1359 = vsel %vm320, %v1336, 0
      %v1362 = vsel %vm320, %v1337, 0
      %v1365 = vsel %vm320, %v1338, 0
      %v1368 = vsel %vm320, %v1339, 0
      %v1371 = vsel %vm320, %v1340, 0
      %v1374 = vsel %vm320, %v1341, 0
      %v1377 = vsel %vm320, %v1342, 0
      %v1380 = vsel %vm320, %v1343, 0
      %v1383 = vsel %vm320, %v1344, 0
      %v1386 = vsel %vm320, %v1345, 0
      %v1389 = vsel %vm320, %v1346, 0
      %v1392 = vsel %vm320, %v1347, 0
      %v1395 = vsel %vm320, %v1348, 0
      %v1398 = vsel %vm369, %v1300, 0
      %1400 = vmatprep.subr.bf16.mxu0 0
      %1401 = vmatpush1.bf16.msra.mxu0 %v1398
      %1402 = vmatprep.subr.bf16.mxu0 0
      %1403 = vmatpush1.bf16.msra.mxu0 0
      %1404 = vmatprep.subr.bf16.mxu0 0
      %1405 = vmatpush1.bf16.msra.mxu0 0
      %1406 = vmatprep.subr.bf16.mxu0 0
      %1407 = vmatpush1.bf16.msra.mxu0 0
      %1408 = vmatprep.subr.bf16.mxu0 0
      %1409 = vmatpush1.bf16.msra.mxu0 0
      %1410 = vmatprep.subr.bf16.mxu0 0
      %1411 = vmatpush1.bf16.msra.mxu0 0
      %1412 = vmatprep.subr.bf16.mxu0 0
      %1413 = vmatpush1.bf16.msra.mxu0 0
      %1414 = vmatprep.subr.bf16.mxu0 0
      %1415 = vmatpush1.bf16.msra.mxu0 0
      %1416 = vmatprep.subr.bf16.mxu0 0
      %1417 = vmatpush1.bf16.msra.mxu0 0
      %1418 = vmatprep.subr.bf16.mxu0 0
      %1419 = vmatpush1.bf16.msra.mxu0 0
      %1420 = vmatprep.subr.bf16.mxu0 0
      %1421 = vmatpush1.bf16.msra.mxu0 0
      %1422 = vmatprep.subr.bf16.mxu0 0
      %1423 = vmatpush1.bf16.msra.mxu0 0
      %1424 = vmatprep.subr.bf16.mxu0 0
      %1425 = vmatpush1.bf16.msra.mxu0 0
      %1426 = vmatprep.subr.bf16.mxu0 0
      %1427 = vmatpush1.bf16.msra.mxu0 0
      %1428 = vmatprep.subr.bf16.mxu0 0
      %1429 = vmatpush1.bf16.msra.mxu0 0
      %1430 = vmatprep.subr.bf16.mxu0 0
      %1431 = vmatpush1.bf16.msra.mxu0 0
      %1432 = vmatprep.mubr.bf16.mxu0 0
      %1433 = vmatmul.mubr.bf16.gmra.mrb[0].mxu0 %v1350
      %v1434 = vpop.f32.mrb[0].mxu0
      %v1435 = vadd.f32 0.0, %v1434
      %v1436 = vpop.f32.mrb[0].mxu0
      %v1437 = vpop.f32.mrb[0].mxu0
      %v1438 = vadd.f32 0.0, %v1437
      %v1439 = vpop.f32.mrb[0].mxu0
      %1440 = vmatprep.mubr.bf16.mxu0 0
      %1441 = vmatmul.mubr.bf16.gmra.mrb[0].mxu0 %v1353
      %v1442 = vpop.f32.mrb[0].mxu0
      %v1443 = vadd.f32 0.0, %v1442
      %v1444 = vpop.f32.mrb[0].mxu0
      %v1445 = vpop.f32.mrb[0].mxu0
      %v1446 = vadd.f32 0.0, %v1445
      %v1447 = vpop.f32.mrb[0].mxu0
      %1448 = vmatprep.mubr.bf16.mxu0 0
      %1449 = vmatmul.mubr.bf16.gmra.mrb[0].mxu0 %v1356
      %v1450 = vpop.f32.mrb[0].mxu0
      %v1451 = vadd.f32 0.0, %v1450
      %v1452 = vpop.f32.mrb[0].mxu0
      %v1453 = vpop.f32.mrb[0].mxu0
      %v1454 = vadd.f32 0.0, %v1453
      %v1455 = vpop.f32.mrb[0].mxu0
      %1456 = vmatprep.mubr.bf16.mxu0 0
      %1457 = vmatmul.mubr.bf16.gmra.mrb[0].mxu0 %v1359
      %v1458 = vpop.f32.mrb[0].mxu0
      %v1459 = vadd.f32 0.0, %v1458
      %v1460 = vpop.f32.mrb[0].mxu0
      %v1461 = vpop.f32.mrb[0].mxu0
      %v1462 = vadd.f32 0.0, %v1461
      %v1463 = vpop.f32.mrb[0].mxu0
      %1464 = vmatprep.mubr.bf16.mxu0 0
      %1465 = vmatmul.mubr.bf16.gmra.mrb[0].mxu0 %v1362
      %v1466 = vpop.f32.mrb[0].mxu0
      %v1467 = vadd.f32 0.0, %v1466
      %v1468 = vpop.f32.mrb[0].mxu0
      %v1469 = vpop.f32.mrb[0].mxu0
      %v1470 = vadd.f32 0.0, %v1469
      %v1471 = vpop.f32.mrb[0].mxu0
      %1472 = vmatprep.mubr.bf16.mxu0 0
      %1473 = vmatmul.mubr.bf16.gmra.mrb[0].mxu0 %v1365
      %v1474 = vpop.f32.mrb[0].mxu0
      %v1475 = vadd.f32 0.0, %v1474
      %v1476 = vpop.f32.mrb[0].mxu0
      %v1477 = vpop.f32.mrb[0].mxu0
      %v1478 = vadd.f32 0.0, %v1477
      %v1479 = vpop.f32.mrb[0].mxu0
      %1480 = vmatprep.mubr.bf16.mxu0 0
      %1481 = vmatmul.mubr.bf16.gmra.mrb[0].mxu0 %v1368
      %v1482 = vpop.f32.mrb[0].mxu0
      %v1483 = vadd.f32 0.0, %v1482
      %v1484 = vpop.f32.mrb[0].mxu0
      %v1485 = vpop.f32.mrb[0].mxu0
      %v1486 = vadd.f32 0.0, %v1485
      %v1487 = vpop.f32.mrb[0].mxu0
      %1488 = vmatprep.mubr.bf16.mxu0 0
      %1489 = vmatmul.mubr.bf16.gmra.mrb[0].mxu0 %v1371
      %v1490 = vpop.f32.mrb[0].mxu0
      %v1491 = vadd.f32 0.0, %v1490
      %v1492 = vpop.f32.mrb[0].mxu0
      %v1493 = vpop.f32.mrb[0].mxu0
      %v1494 = vadd.f32 0.0, %v1493
      %v1495 = vpop.f32.mrb[0].mxu0
      %1496 = vmatprep.mubr.bf16.mxu0 0
      %1497 = vmatmul.mubr.bf16.gmra.mrb[0].mxu0 %v1374
      %v1498 = vpop.f32.mrb[0].mxu0
      %v1499 = vadd.f32 0.0, %v1498
      %v1500 = vpop.f32.mrb[0].mxu0
      %v1501 = vpop.f32.mrb[0].mxu0
      %v1502 = vadd.f32 0.0, %v1501
      %v1503 = vpop.f32.mrb[0].mxu0
      %1504 = vmatprep.mubr.bf16.mxu0 0
      %1505 = vmatmul.mubr.bf16.gmra.mrb[0].mxu0 %v1377
      %v1506 = vpop.f32.mrb[0].mxu0
      %v1507 = vadd.f32 0.0, %v1506
      %v1508 = vpop.f32.mrb[0].mxu0
      %v1509 = vpop.f32.mrb[0].mxu0
      %v1510 = vadd.f32 0.0, %v1509
      %v1511 = vpop.f32.mrb[0].mxu0
      %1512 = vmatprep.mubr.bf16.mxu0 0
      %1513 = vmatmul.mubr.bf16.gmra.mrb[0].mxu0 %v1380
      %v1514 = vpop.f32.mrb[0].mxu0
      %v1515 = vadd.f32 0.0, %v1514
      %v1516 = vpop.f32.mrb[0].mxu0
      %v1517 = vpop.f32.mrb[0].mxu0
      %v1518 = vadd.f32 0.0, %v1517
      %v1519 = vpop.f32.mrb[0].mxu0
      %1520 = vmatprep.mubr.bf16.mxu0 0
      %1521 = vmatmul.mubr.bf16.gmra.mrb[0].mxu0 %v1383
      %v1522 = vpop.f32.mrb[0].mxu0
      %v1523 = vadd.f32 0.0, %v1522
      %v1524 = vpop.f32.mrb[0].mxu0
      %v1525 = vpop.f32.mrb[0].mxu0
      %v1526 = vadd.f32 0.0, %v1525
      %v1527 = vpop.f32.mrb[0].mxu0
      %1528 = vmatprep.mubr.bf16.mxu0 0
      %1529 = vmatmul.mubr.bf16.gmra.mrb[0].mxu0 %v1386
      %v1530 = vpop.f32.mrb[0].mxu0
      %v1531 = vadd.f32 0.0, %v1530
      %v1532 = vpop.f32.mrb[0].mxu0
      %v1533 = vpop.f32.mrb[0].mxu0
      %v1534 = vadd.f32 0.0, %v1533
      %v1535 = vpop.f32.mrb[0].mxu0
      %1536 = vmatprep.mubr.bf16.mxu0 0
      %1537 = vmatmul.mubr.bf16.gmra.mrb[0].mxu0 %v1389
      %v1538 = vpop.f32.mrb[0].mxu0
      %v1539 = vadd.f32 0.0, %v1538
      %v1540 = vpop.f32.mrb[0].mxu0
      %v1541 = vpop.f32.mrb[0].mxu0
      %v1542 = vadd.f32 0.0, %v1541
      %v1543 = vpop.f32.mrb[0].mxu0
      %1544 = vmatprep.mubr.bf16.mxu0 0
      %1545 = vmatmul.mubr.bf16.gmra.mrb[0].mxu0 %v1392
      %v1546 = vpop.f32.mrb[0].mxu0
      %v1547 = vadd.f32 0.0, %v1546
      %v1548 = vpop.f32.mrb[0].mxu0
      %v1549 = vpop.f32.mrb[0].mxu0
      %v1550 = vadd.f32 0.0, %v1549
      %v1551 = vpop.f32.mrb[0].mxu0
      %1552 = vmatprep.mubr.bf16.mxu0 0
      %1553 = vmatmul.mubr.bf16.gmra.mrb[0].mxu0 %v1395
      %v1554 = vpop.f32.mrb[0].mxu0
      %v1555 = vadd.f32 0.0, %v1554
      %v1556 = vpop.f32.mrb[0].mxu0
      %v1557 = vpop.f32.mrb[0].mxu0
      %v1558 = vadd.f32 0.0, %v1557
      %v1559 = vpop.f32.mrb[0].mxu0
      %1560 = vdwg.mxu0
      %v1561 = vadd.f32 %v880, %v1435
      %v1562 = vadd.f32 %v881, %v1438
      %v1563 = vadd.f32 %v882, %v1443
      %v1564 = vadd.f32 %v883, %v1446
      %v1565 = vadd.f32 %v884, %v1451
      %v1566 = vadd.f32 %v885, %v1454
      %v1567 = vadd.f32 %v886, %v1459
      %v1568 = vadd.f32 %v887, %v1462
      %v1569 = vadd.f32 %v888, %v1467
      %v1570 = vadd.f32 %v889, %v1470
      %v1571 = vadd.f32 %v890, %v1475
      %v1572 = vadd.f32 %v891, %v1478
      %v1573 = vadd.f32 %v892, %v1483
      %v1574 = vadd.f32 %v893, %v1486
      %v1575 = vadd.f32 %v894, %v1491
      %v1576 = vadd.f32 %v895, %v1494
      %v1577 = vadd.f32 %v896, %v1499
      %v1578 = vadd.f32 %v897, %v1502
      %v1579 = vadd.f32 %v898, %v1507
      %v1580 = vadd.f32 %v899, %v1510
      %v1581 = vadd.f32 %v900, %v1515
      %v1582 = vadd.f32 %v901, %v1518
      %v1583 = vadd.f32 %v902, %v1523
      %v1584 = vadd.f32 %v903, %v1526
      %v1585 = vadd.f32 %v904, %v1531
      %v1586 = vadd.f32 %v905, %v1534
      %v1587 = vadd.f32 %v906, %v1539
      %v1588 = vadd.f32 %v907, %v1542
      %v1589 = vadd.f32 %v908, %v1547
      %v1590 = vadd.f32 %v909, %v1550
      %v1591 = vadd.f32 %v910, %v1555
      %v1592 = vadd.f32 %v911, %v1558
      %v1594 = vshrl.u32 %v231, 16
      %v1596 = vrot.slane %v1594, 4
      %v1597 = vshll.u32 %v231, 16
      %v1599 = vrot.slane %v1597, 5
      %v1600 = vor.u32 %v1596, %v1599
      %v1601 = vrot.slane %v1600, 4
      %v1603 = vshll.u32 %v232, 16
      %v1605 = vrot.slane %v1603, 5
      %v1606 = vsel %vm914, %v1601, %v1605
      %v1607 = vshrl.u32 %v232, 16
      %v1609 = vrot.slane %v1607, 4
      %v1610 = vor.u32 %v1609, %v1605
      %v1611 = vrot.slane %v1610, 4
      %v1613 = vshll.u32 %v233, 16
      %v1615 = vrot.slane %v1613, 5
      %v1616 = vsel %vm914, %v1611, %v1615
      %s1617 = scalar_lea.vmem %s1, 8
      %v1618 = vld [vmem:[%s1617] sm:$0x3]
      %v1619 = vunpack.c.l.b16 %v1606
      %v1620 = vunpack.c.l.b16 %v1616
      %v1621 = vpack.c.b16 %v1620, %v1619
      %v1623 = vsel %vm320, %v1621, 0
      %v1626 = vsel %vm369, %v1618, 0
      %1628 = vmatprep.subr.bf16.mxu0 0
      %1629 = vmatpush1.bf16.msra.mxu0 %v1626
      %1630 = vmatprep.subr.bf16.mxu0 0
      %1631 = vmatpush1.bf16.msra.mxu0 0
      %1632 = vmatprep.subr.bf16.mxu0 0
      %1633 = vmatpush1.bf16.msra.mxu0 0
      %1634 = vmatprep.subr.bf16.mxu0 0
      %1635 = vmatpush1.bf16.msra.mxu0 0
      %1636 = vmatprep.subr.bf16.mxu0 0
      %1637 = vmatpush1.bf16.msra.mxu0 0
      %1638 = vmatprep.subr.bf16.mxu0 0
      %1639 = vmatpush1.bf16.msra.mxu0 0
      %1640 = vmatprep.subr.bf16.mxu0 0
      %1641 = vmatpush1.bf16.msra.mxu0 0
      %1642 = vmatprep.subr.bf16.mxu0 0
      %1643 = vmatpush1.bf16.msra.mxu0 0
      %1644 = vmatprep.subr.bf16.mxu0 0
      %1645 = vmatpush1.bf16.msra.mxu0 0
      %1646 = vmatprep.subr.bf16.mxu0 0
      %1647 = vmatpush1.bf16.msra.mxu0 0
      %1648 = vmatprep.subr.bf16.mxu0 0
      %1649 = vmatpush1.bf16.msra.mxu0 0
      %1650 = vmatprep.subr.bf16.mxu0 0
      %1651 = vmatpush1.bf16.msra.mxu0 0
      %1652 = vmatprep.subr.bf16.mxu0 0
      %1653 = vmatpush1.bf16.msra.mxu0 0
      %1654 = vmatprep.subr.bf16.mxu0 0
      %1655 = vmatpush1.bf16.msra.mxu0 0
      %1656 = vmatprep.subr.bf16.mxu0 0
      %1657 = vmatpush1.bf16.msra.mxu0 0
      %1658 = vmatprep.subr.bf16.mxu0 0
      %1659 = vmatpush1.bf16.msra.mxu0 0
      %1660 = vmatprep.mubr.bf16.mxu0 0
      %1661 = vmatmul.mubr.bf16.gmra.mrb[0].mxu0 %v1353
      %v1662 = vpop.f32.mrb[0].mxu0
      %v1663 = vadd.f32 0.0, %v1662
      %v1664 = vpop.f32.mrb[0].mxu0
      %v1665 = vpop.f32.mrb[0].mxu0
      %v1666 = vadd.f32 0.0, %v1665
      %v1667 = vpop.f32.mrb[0].mxu0
      %1668 = vmatprep.mubr.bf16.mxu0 0
      %1669 = vmatmul.mubr.bf16.gmra.mrb[0].mxu0 %v1356
      %v1670 = vpop.f32.mrb[0].mxu0
      %v1671 = vadd.f32 0.0, %v1670
      %v1672 = vpop.f32.mrb[0].mxu0
      %v1673 = vpop.f32.mrb[0].mxu0
      %v1674 = vadd.f32 0.0, %v1673
      %v1675 = vpop.f32.mrb[0].mxu0
      %1676 = vmatprep.mubr.bf16.mxu0 0
      %1677 = vmatmul.mubr.bf16.gmra.mrb[0].mxu0 %v1359
      %v1678 = vpop.f32.mrb[0].mxu0
      %v1679 = vadd.f32 0.0, %v1678
      %v1680 = vpop.f32.mrb[0].mxu0
      %v1681 = vpop.f32.mrb[0].mxu0
      %v1682 = vadd.f32 0.0, %v1681
      %v1683 = vpop.f32.mrb[0].mxu0
      %1684 = vmatprep.mubr.bf16.mxu0 0
      %1685 = vmatmul.mubr.bf16.gmra.mrb[0].mxu0 %v1362
      %v1686 = vpop.f32.mrb[0].mxu0
      %v1687 = vadd.f32 0.0, %v1686
      %v1688 = vpop.f32.mrb[0].mxu0
      %v1689 = vpop.f32.mrb[0].mxu0
      %v1690 = vadd.f32 0.0, %v1689
      %v1691 = vpop.f32.mrb[0].mxu0
      %1692 = vmatprep.mubr.bf16.mxu0 0
      %1693 = vmatmul.mubr.bf16.gmra.mrb[0].mxu0 %v1365
      %v1694 = vpop.f32.mrb[0].mxu0
      %v1695 = vadd.f32 0.0, %v1694
      %v1696 = vpop.f32.mrb[0].mxu0
      %v1697 = vpop.f32.mrb[0].mxu0
      %v1698 = vadd.f32 0.0, %v1697
      %v1699 = vpop.f32.mrb[0].mxu0
      %1700 = vmatprep.mubr.bf16.mxu0 0
      %1701 = vmatmul.mubr.bf16.gmra.mrb[0].mxu0 %v1368
      %v1702 = vpop.f32.mrb[0].mxu0
      %v1703 = vadd.f32 0.0, %v1702
      %v1704 = vpop.f32.mrb[0].mxu0
      %v1705 = vpop.f32.mrb[0].mxu0
      %v1706 = vadd.f32 0.0, %v1705
      %v1707 = vpop.f32.mrb[0].mxu0
      %1708 = vmatprep.mubr.bf16.mxu0 0
      %1709 = vmatmul.mubr.bf16.gmra.mrb[0].mxu0 %v1371
      %v1710 = vpop.f32.mrb[0].mxu0
      %v1711 = vadd.f32 0.0, %v1710
      %v1712 = vpop.f32.mrb[0].mxu0
      %v1713 = vpop.f32.mrb[0].mxu0
      %v1714 = vadd.f32 0.0, %v1713
      %v1715 = vpop.f32.mrb[0].mxu0
      %1716 = vmatprep.mubr.bf16.mxu0 0
      %1717 = vmatmul.mubr.bf16.gmra.mrb[0].mxu0 %v1374
      %v1718 = vpop.f32.mrb[0].mxu0
      %v1719 = vadd.f32 0.0, %v1718
      %v1720 = vpop.f32.mrb[0].mxu0
      %v1721 = vpop.f32.mrb[0].mxu0
      %v1722 = vadd.f32 0.0, %v1721
      %v1723 = vpop.f32.mrb[0].mxu0
      %1724 = vmatprep.mubr.bf16.mxu0 0
      %1725 = vmatmul.mubr.bf16.gmra.mrb[0].mxu0 %v1377
      %v1726 = vpop.f32.mrb[0].mxu0
      %v1727 = vadd.f32 0.0, %v1726
      %v1728 = vpop.f32.mrb[0].mxu0
      %v1729 = vpop.f32.mrb[0].mxu0
      %v1730 = vadd.f32 0.0, %v1729
      %v1731 = vpop.f32.mrb[0].mxu0
      %1732 = vmatprep.mubr.bf16.mxu0 0
      %1733 = vmatmul.mubr.bf16.gmra.mrb[0].mxu0 %v1380
      %v1734 = vpop.f32.mrb[0].mxu0
      %v1735 = vadd.f32 0.0, %v1734
      %v1736 = vpop.f32.mrb[0].mxu0
      %v1737 = vpop.f32.mrb[0].mxu0
      %v1738 = vadd.f32 0.0, %v1737
      %v1739 = vpop.f32.mrb[0].mxu0
      %1740 = vmatprep.mubr.bf16.mxu0 0
      %1741 = vmatmul.mubr.bf16.gmra.mrb[0].mxu0 %v1383
      %v1742 = vpop.f32.mrb[0].mxu0
      %v1743 = vadd.f32 0.0, %v1742
      %v1744 = vpop.f32.mrb[0].mxu0
      %v1745 = vpop.f32.mrb[0].mxu0
      %v1746 = vadd.f32 0.0, %v1745
      %v1747 = vpop.f32.mrb[0].mxu0
      %1748 = vmatprep.mubr.bf16.mxu0 0
      %1749 = vmatmul.mubr.bf16.gmra.mrb[0].mxu0 %v1386
      %v1750 = vpop.f32.mrb[0].mxu0
      %v1751 = vadd.f32 0.0, %v1750
      %v1752 = vpop.f32.mrb[0].mxu0
      %v1753 = vpop.f32.mrb[0].mxu0
      %v1754 = vadd.f32 0.0, %v1753
      %v1755 = vpop.f32.mrb[0].mxu0
      %1756 = vmatprep.mubr.bf16.mxu0 0
      %1757 = vmatmul.mubr.bf16.gmra.mrb[0].mxu0 %v1389
      %v1758 = vpop.f32.mrb[0].mxu0
      %v1759 = vadd.f32 0.0, %v1758
      %v1760 = vpop.f32.mrb[0].mxu0
      %v1761 = vpop.f32.mrb[0].mxu0
      %v1762 = vadd.f32 0.0, %v1761
      %v1763 = vpop.f32.mrb[0].mxu0
      %1764 = vmatprep.mubr.bf16.mxu0 0
      %1765 = vmatmul.mubr.bf16.gmra.mrb[0].mxu0 %v1392
      %v1766 = vpop.f32.mrb[0].mxu0
      %v1767 = vadd.f32 0.0, %v1766
      %v1768 = vpop.f32.mrb[0].mxu0
      %v1769 = vpop.f32.mrb[0].mxu0
      %v1770 = vadd.f32 0.0, %v1769
      %v1771 = vpop.f32.mrb[0].mxu0
      %1772 = vmatprep.mubr.bf16.mxu0 0
      %1773 = vmatmul.mubr.bf16.gmra.mrb[0].mxu0 %v1395
      %v1774 = vpop.f32.mrb[0].mxu0
      %v1775 = vadd.f32 0.0, %v1774
      %v1776 = vpop.f32.mrb[0].mxu0
      %v1777 = vpop.f32.mrb[0].mxu0
      %v1778 = vadd.f32 0.0, %v1777
      %v1779 = vpop.f32.mrb[0].mxu0
      %1780 = vmatprep.mubr.bf16.mxu0 0
      %1781 = vmatmul.mubr.bf16.gmra.mrb[0].mxu0 %v1623
      %v1782 = vpop.f32.mrb[0].mxu0
      %v1783 = vadd.f32 0.0, %v1782
      %v1784 = vpop.f32.mrb[0].mxu0
      %v1785 = vpop.f32.mrb[0].mxu0
      %v1786 = vadd.f32 0.0, %v1785
      %v1787 = vpop.f32.mrb[0].mxu0
      %1788 = vdwg.mxu0
      %v1789 = vadd.f32 %v1561, %v1663
      %v1790 = vadd.f32 %v1562, %v1666
      %v1791 = vadd.f32 %v1563, %v1671
      %v1792 = vadd.f32 %v1564, %v1674
      %v1793 = vadd.f32 %v1565, %v1679
      %v1794 = vadd.f32 %v1566, %v1682
      %v1795 = vadd.f32 %v1567, %v1687
      %v1796 = vadd.f32 %v1568, %v1690
      %v1797 = vadd.f32 %v1569, %v1695
      %v1798 = vadd.f32 %v1570, %v1698
      %v1799 = vadd.f32 %v1571, %v1703
      %v1800 = vadd.f32 %v1572, %v1706
      %v1801 = vadd.f32 %v1573, %v1711
      %v1802 = vadd.f32 %v1574, %v1714
      %v1803 = vadd.f32 %v1575, %v1719
      %v1804 = vadd.f32 %v1576, %v1722
      %v1805 = vadd.f32 %v1577, %v1727
      %v1806 = vadd.f32 %v1578, %v1730
      %v1807 = vadd.f32 %v1579, %v1735
      %v1808 = vadd.f32 %v1580, %v1738
      %v1809 = vadd.f32 %v1581, %v1743
      %v1810 = vadd.f32 %v1582, %v1746
      %v1811 = vadd.f32 %v1583, %v1751
      %v1812 = vadd.f32 %v1584, %v1754
      %v1813 = vadd.f32 %v1585, %v1759
      %v1814 = vadd.f32 %v1586, %v1762
      %v1815 = vadd.f32 %v1587, %v1767
      %v1816 = vadd.f32 %v1588, %v1770
      %v1817 = vadd.f32 %v1589, %v1775
      %v1818 = vadd.f32 %v1590, %v1778
      %v1819 = vadd.f32 %v1591, %v1783
      %v1820 = vadd.f32 %v1592, %v1786
      %v1822 = vshrl.u32 %v234, 16
      %v1824 = vrot.slane %v1822, 4
      %v1825 = vshll.u32 %v234, 16
      %v1827 = vrot.slane %v1825, 5
      %v1828 = vor.u32 %v1824, %v1827
      %v1829 = vrot.slane %v1828, 4
      %v1831 = vshll.u32 %v235, 16
      %v1833 = vrot.slane %v1831, 5
      %v1834 = vsel %vm914, %v1829, %v1833
      %v1835 = vshrl.u32 %v235, 16
      %v1837 = vrot.slane %v1835, 4
      %v1838 = vor.u32 %v1837, %v1833
      %v1839 = vrot.slane %v1838, 4
      %v1841 = vshll.u32 %v236, 16
      %v1843 = vrot.slane %v1841, 5
      %v1844 = vsel %vm914, %v1839, %v1843
      %s1845 = scalar_lea.vmem %s1, 14
      %v1846 = vld [vmem:[%s1845] sm:$0x3]
      %v1847 = vunpack.c.l.b16 %v1834
      %v1848 = vunpack.c.l.b16 %v1844
      %v1849 = vpack.c.b16 %v1848, %v1847
      %v1851 = vsel %vm320, %v1849, 0
      %v1854 = vsel %vm369, %v1846, 0
      %1856 = vmatprep.subr.bf16.mxu0 0
      %1857 = vmatpush1.bf16.msra.mxu0 %v1854
      %1858 = vmatprep.subr.bf16.mxu0 0
      %1859 = vmatpush1.bf16.msra.mxu0 0
      %1860 = vmatprep.subr.bf16.mxu0 0
      %1861 = vmatpush1.bf16.msra.mxu0 0
      %1862 = vmatprep.subr.bf16.mxu0 0
      %1863 = vmatpush1.bf16.msra.mxu0 0
      %1864 = vmatprep.subr.bf16.mxu0 0
      %1865 = vmatpush1.bf16.msra.mxu0 0
      %1866 = vmatprep.subr.bf16.mxu0 0
      %1867 = vmatpush1.bf16.msra.mxu0 0
      %1868 = vmatprep.subr.bf16.mxu0 0
      %1869 = vmatpush1.bf16.msra.mxu0 0
      %1870 = vmatprep.subr.bf16.mxu0 0
      %1871 = vmatpush1.bf16.msra.mxu0 0
      %1872 = vmatprep.subr.bf16.mxu0 0
      %1873 = vmatpush1.bf16.msra.mxu0 0
      %1874 = vmatprep.subr.bf16.mxu0 0
      %1875 = vmatpush1.bf16.msra.mxu0 0
      %1876 = vmatprep.subr.bf16.mxu0 0
      %1877 = vmatpush1.bf16.msra.mxu0 0
      %1878 = vmatprep.subr.bf16.mxu0 0
      %1879 = vmatpush1.bf16.msra.mxu0 0
      %1880 = vmatprep.subr.bf16.mxu0 0
      %1881 = vmatpush1.bf16.msra.mxu0 0
      %1882 = vmatprep.subr.bf16.mxu0 0
      %1883 = vmatpush1.bf16.msra.mxu0 0
      %1884 = vmatprep.subr.bf16.mxu0 0
      %1885 = vmatpush1.bf16.msra.mxu0 0
      %1886 = vmatprep.subr.bf16.mxu0 0
      %1887 = vmatpush1.bf16.msra.mxu0 0
      %1888 = vmatprep.mubr.bf16.mxu0 0
      %1889 = vmatmul.mubr.bf16.gmra.mrb[0].mxu0 %v1356
      %v1890 = vpop.f32.mrb[0].mxu0
      %v1891 = vadd.f32 0.0, %v1890
      %v1892 = vpop.f32.mrb[0].mxu0
      %v1893 = vpop.f32.mrb[0].mxu0
      %v1894 = vadd.f32 0.0, %v1893
      %v1895 = vpop.f32.mrb[0].mxu0
      %1896 = vmatprep.mubr.bf16.mxu0 0
      %1897 = vmatmul.mubr.bf16.gmra.mrb[0].mxu0 %v1359
      %v1898 = vpop.f32.mrb[0].mxu0
      %v1899 = vadd.f32 0.0, %v1898
      %v1900 = vpop.f32.mrb[0].mxu0
      %v1901 = vpop.f32.mrb[0].mxu0
      %v1902 = vadd.f32 0.0, %v1901
      %v1903 = vpop.f32.mrb[0].mxu0
      %1904 = vmatprep.mubr.bf16.mxu0 0
      %1905 = vmatmul.mubr.bf16.gmra.mrb[0].mxu0 %v1362
      %v1906 = vpop.f32.mrb[0].mxu0
      %v1907 = vadd.f32 0.0, %v1906
      %v1908 = vpop.f32.mrb[0].mxu0
      %v1909 = vpop.f32.mrb[0].mxu0
      %v1910 = vadd.f32 0.0, %v1909
      %v1911 = vpop.f32.mrb[0].mxu0
      %1912 = vmatprep.mubr.bf16.mxu0 0
      %1913 = vmatmul.mubr.bf16.gmra.mrb[0].mxu0 %v1365
      %v1914 = vpop.f32.mrb[0].mxu0
      %v1915 = vadd.f32 0.0, %v1914
      %v1916 = vpop.f32.mrb[0].mxu0
      %v1917 = vpop.f32.mrb[0].mxu0
      %v1918 = vadd.f32 0.0, %v1917
      %v1919 = vpop.f32.mrb[0].mxu0
      %1920 = vmatprep.mubr.bf16.mxu0 0
      %1921 = vmatmul.mubr.bf16.gmra.mrb[0].mxu0 %v1368
      %v1922 = vpop.f32.mrb[0].mxu0
      %v1923 = vadd.f32 0.0, %v1922
      %v1924 = vpop.f32.mrb[0].mxu0
      %v1925 = vpop.f32.mrb[0].mxu0
      %v1926 = vadd.f32 0.0, %v1925
      %v1927 = vpop.f32.mrb[0].mxu0
      %1928 = vmatprep.mubr.bf16.mxu0 0
      %1929 = vmatmul.mubr.bf16.gmra.mrb[0].mxu0 %v1371
      %v1930 = vpop.f32.mrb[0].mxu0
      %v1931 = vadd.f32 0.0, %v1930
      %v1932 = vpop.f32.mrb[0].mxu0
      %v1933 = vpop.f32.mrb[0].mxu0
      %v1934 = vadd.f32 0.0, %v1933
      %v1935 = vpop.f32.mrb[0].mxu0
      %1936 = vmatprep.mubr.bf16.mxu0 0
      %1937 = vmatmul.mubr.bf16.gmra.mrb[0].mxu0 %v1374
      %v1938 = vpop.f32.mrb[0].mxu0
      %v1939 = vadd.f32 0.0, %v1938
      %v1940 = vpop.f32.mrb[0].mxu0
      %v1941 = vpop.f32.mrb[0].mxu0
      %v1942 = vadd.f32 0.0, %v1941
      %v1943 = vpop.f32.mrb[0].mxu0
      %1944 = vmatprep.mubr.bf16.mxu0 0
      %1945 = vmatmul.mubr.bf16.gmra.mrb[0].mxu0 %v1377
      %v1946 = vpop.f32.mrb[0].mxu0
      %v1947 = vadd.f32 0.0, %v1946
      %v1948 = vpop.f32.mrb[0].mxu0
      %v1949 = vpop.f32.mrb[0].mxu0
      %v1950 = vadd.f32 0.0, %v1949
      %v1951 = vpop.f32.mrb[0].mxu0
      %1952 = vmatprep.mubr.bf16.mxu0 0
      %1953 = vmatmul.mubr.bf16.gmra.mrb[0].mxu0 %v1380
      %v1954 = vpop.f32.mrb[0].mxu0
      %v1955 = vadd.f32 0.0, %v1954
      %v1956 = vpop.f32.mrb[0].mxu0
      %v1957 = vpop.f32.mrb[0].mxu0
      %v1958 = vadd.f32 0.0, %v1957
      %v1959 = vpop.f32.mrb[0].mxu0
      %1960 = vmatprep.mubr.bf16.mxu0 0
      %1961 = vmatmul.mubr.bf16.gmra.mrb[0].mxu0 %v1383
      %v1962 = vpop.f32.mrb[0].mxu0
      %v1963 = vadd.f32 0.0, %v1962
      %v1964 = vpop.f32.mrb[0].mxu0
      %v1965 = vpop.f32.mrb[0].mxu0
      %v1966 = vadd.f32 0.0, %v1965
      %v1967 = vpop.f32.mrb[0].mxu0
      %1968 = vmatprep.mubr.bf16.mxu0 0
      %1969 = vmatmul.mubr.bf16.gmra.mrb[0].mxu0 %v1386
      %v1970 = vpop.f32.mrb[0].mxu0
      %v1971 = vadd.f32 0.0, %v1970
      %v1972 = vpop.f32.mrb[0].mxu0
      %v1973 = vpop.f32.mrb[0].mxu0
      %v1974 = vadd.f32 0.0, %v1973
      %v1975 = vpop.f32.mrb[0].mxu0
      %1976 = vmatprep.mubr.bf16.mxu0 0
      %1977 = vmatmul.mubr.bf16.gmra.mrb[0].mxu0 %v1389
      %v1978 = vpop.f32.mrb[0].mxu0
      %v1979 = vadd.f32 0.0, %v1978
      %v1980 = vpop.f32.mrb[0].mxu0
      %v1981 = vpop.f32.mrb[0].mxu0
      %v1982 = vadd.f32 0.0, %v1981
      %v1983 = vpop.f32.mrb[0].mxu0
      %1984 = vmatprep.mubr.bf16.mxu0 0
      %1985 = vmatmul.mubr.bf16.gmra.mrb[0].mxu0 %v1392
      %v1986 = vpop.f32.mrb[0].mxu0
      %v1987 = vadd.f32 0.0, %v1986
      %v1988 = vpop.f32.mrb[0].mxu0
      %v1989 = vpop.f32.mrb[0].mxu0
      %v1990 = vadd.f32 0.0, %v1989
      %v1991 = vpop.f32.mrb[0].mxu0
      %1992 = vmatprep.mubr.bf16.mxu0 0
      %1993 = vmatmul.mubr.bf16.gmra.mrb[0].mxu0 %v1395
      %v1994 = vpop.f32.mrb[0].mxu0
      %v1995 = vadd.f32 0.0, %v1994
      %v1996 = vpop.f32.mrb[0].mxu0
      %v1997 = vpop.f32.mrb[0].mxu0
      %v1998 = vadd.f32 0.0, %v1997
      %v1999 = vpop.f32.mrb[0].mxu0
      %2000 = vmatprep.mubr.bf16.mxu0 0
      %2001 = vmatmul.mubr.bf16.gmra.mrb[0].mxu0 %v1623
      %v2002 = vpop.f32.mrb[0].mxu0
      %v2003 = vadd.f32 0.0, %v2002
      %v2004 = vpop.f32.mrb[0].mxu0
      %v2005 = vpop.f32.mrb[0].mxu0
      %v2006 = vadd.f32 0.0, %v2005
      %v2007 = vpop.f32.mrb[0].mxu0
      %2008 = vmatprep.mubr.bf16.mxu0 0
      %2009 = vmatmul.mubr.bf16.gmra.mrb[0].mxu0 %v1851
      %v2010 = vpop.f32.mrb[0].mxu0
      %v2011 = vadd.f32 0.0, %v2010
      %v2012 = vpop.f32.mrb[0].mxu0
      %v2013 = vpop.f32.mrb[0].mxu0
      %v2014 = vadd.f32 0.0, %v2013
      %v2015 = vpop.f32.mrb[0].mxu0
      %2016 = vdwg.mxu0
      %v2017 = vadd.f32 %v1789, %v1891
      %v2018 = vadd.f32 %v1790, %v1894
      %v2019 = vadd.f32 %v1791, %v1899
      %v2020 = vadd.f32 %v1792, %v1902
      %v2021 = vadd.f32 %v1793, %v1907
      %v2022 = vadd.f32 %v1794, %v1910
      %v2023 = vadd.f32 %v1795, %v1915
      %v2024 = vadd.f32 %v1796, %v1918
      %v2025 = vadd.f32 %v1797, %v1923
      %v2026 = vadd.f32 %v1798, %v1926
      %v2027 = vadd.f32 %v1799, %v1931
      %v2028 = vadd.f32 %v1800, %v1934
      %v2029 = vadd.f32 %v1801, %v1939
      %v2030 = vadd.f32 %v1802, %v1942
      %v2031 = vadd.f32 %v1803, %v1947
      %v2032 = vadd.f32 %v1804, %v1950
      %v2033 = vadd.f32 %v1805, %v1955
      %v2034 = vadd.f32 %v1806, %v1958
      %v2035 = vadd.f32 %v1807, %v1963
      %v2036 = vadd.f32 %v1808, %v1966
      %v2037 = vadd.f32 %v1809, %v1971
      %v2038 = vadd.f32 %v1810, %v1974
      %v2039 = vadd.f32 %v1811, %v1979
      %v2040 = vadd.f32 %v1812, %v1982
      %v2041 = vadd.f32 %v1813, %v1987
      %v2042 = vadd.f32 %v1814, %v1990
      %v2043 = vadd.f32 %v1815, %v1995
      %v2044 = vadd.f32 %v1816, %v1998
      %v2045 = vadd.f32 %v1817, %v2003
      %v2046 = vadd.f32 %v1818, %v2006
      %v2047 = vadd.f32 %v1819, %v2011
      %v2048 = vadd.f32 %v1820, %v2014
      %vm2065 = vcmask 1042432
      %vm2066 = vcmask 1046532
      %vm2067 = vmor %vm2065, %vm2066
      %v2068 = vrot.slane %v183, 5
      %v2069 = vrot.slane %v2068, 4
      %v2070 = vrot.slane %v184, 5
      %v2071 = vsel %vm2067, %v2069, %v2070
      %v2072 = vrot.slane %v2070, 4
      %v2073 = vrot.slane %v185, 5
      %v2074 = vsel %vm2067, %v2072, %v2073
      %v2075 = vrot.slane %v186, 5
      %v2076 = vrot.slane %v2075, 4
      %v2077 = vrot.slane %v187, 5
      %v2078 = vsel %vm2067, %v2076, %v2077
      %v2079 = vrot.slane %v2077, 4
      %v2080 = vrot.slane %v188, 5
      %v2081 = vsel %vm2067, %v2079, %v2080
      %v2082 = vrot.slane %v189, 5
      %v2083 = vrot.slane %v2082, 4
      %v2084 = vrot.slane %v190, 5
      %v2085 = vsel %vm2067, %v2083, %v2084
      %v2086 = vrot.slane %v2084, 4
      %v2087 = vrot.slane %v191, 5
      %v2088 = vsel %vm2067, %v2086, %v2087
      %v2089 = vrot.slane %v192, 5
      %v2090 = vrot.slane %v2089, 4
      %v2091 = vrot.slane %v193, 5
      %v2092 = vsel %vm2067, %v2090, %v2091
      %v2093 = vrot.slane %v2091, 4
      %v2094 = vrot.slane %v194, 5
      %v2095 = vsel %vm2067, %v2093, %v2094
      %v2096 = vrot.slane %v195, 5
      %v2097 = vrot.slane %v2096, 4
      %v2098 = vrot.slane %v196, 5
      %v2099 = vsel %vm2067, %v2097, %v2098
      %v2100 = vrot.slane %v2098, 4
      %v2101 = vrot.slane %v197, 5
      %v2102 = vsel %vm2067, %v2100, %v2101
      %v2103 = vrot.slane %v198, 5
      %v2104 = vrot.slane %v2103, 4
      %v2105 = vrot.slane %v199, 5
      %v2106 = vsel %vm2067, %v2104, %v2105
      %v2107 = vrot.slane %v2105, 4
      %v2108 = vrot.slane %v200, 5
      %v2109 = vsel %vm2067, %v2107, %v2108
      %v2110 = vrot.slane %v201, 5
      %v2111 = vrot.slane %v2110, 4
      %v2112 = vrot.slane %v202, 5
      %v2113 = vsel %vm2067, %v2111, %v2112
      %v2114 = vrot.slane %v2112, 4
      %v2115 = vrot.slane %v203, 5
      %v2116 = vsel %vm2067, %v2114, %v2115
      %v2117 = vrot.slane %v204, 5
      %v2118 = vrot.slane %v2117, 4
      %v2119 = vrot.slane %v205, 5
      %v2120 = vsel %vm2067, %v2118, %v2119
      %v2121 = vrot.slane %v2119, 4
      %v2122 = vrot.slane %v206, 5
      %v2123 = vsel %vm2067, %v2121, %v2122
      %v2124 = vrot.slane %v207, 5
      %v2125 = vrot.slane %v2124, 4
      %v2126 = vrot.slane %v208, 5
      %v2127 = vsel %vm2067, %v2125, %v2126
      %v2128 = vrot.slane %v2126, 4
      %v2129 = vrot.slane %v209, 5
      %v2130 = vsel %vm2067, %v2128, %v2129
      %v2131 = vrot.slane %v210, 5
      %v2132 = vrot.slane %v2131, 4
      %v2133 = vrot.slane %v211, 5
      %v2134 = vsel %vm2067, %v2132, %v2133
      %v2135 = vrot.slane %v2133, 4
      %v2136 = vrot.slane %v212, 5
      %v2137 = vsel %vm2067, %v2135, %v2136
      %v2138 = vrot.slane %v213, 5
      %v2139 = vrot.slane %v2138, 4
      %v2140 = vrot.slane %v214, 5
      %v2141 = vsel %vm2067, %v2139, %v2140
      %v2142 = vrot.slane %v2140, 4
      %v2143 = vrot.slane %v215, 5
      %v2144 = vsel %vm2067, %v2142, %v2143
      %v2145 = vrot.slane %v216, 5
      %v2146 = vrot.slane %v2145, 4
      %v2147 = vrot.slane %v217, 5
      %v2148 = vsel %vm2067, %v2146, %v2147
      %v2149 = vrot.slane %v2147, 4
      %v2150 = vrot.slane %v218, 5
      %v2151 = vsel %vm2067, %v2149, %v2150
      %v2152 = vrot.slane %v219, 5
      %v2153 = vrot.slane %v2152, 4
      %v2154 = vrot.slane %v220, 5
      %v2155 = vsel %vm2067, %v2153, %v2154
      %v2156 = vrot.slane %v2154, 4
      %v2157 = vrot.slane %v221, 5
      %v2158 = vsel %vm2067, %v2156, %v2157
      %v2159 = vrot.slane %v222, 5
      %v2160 = vrot.slane %v2159, 4
      %v2161 = vrot.slane %v223, 5
      %v2162 = vsel %vm2067, %v2160, %v2161
      %v2163 = vrot.slane %v2161, 4
      %v2164 = vrot.slane %v224, 5
      %v2165 = vsel %vm2067, %v2163, %v2164
      %v2166 = vrot.slane %v225, 5
      %v2167 = vrot.slane %v2166, 4
      %v2168 = vrot.slane %v226, 5
      %v2169 = vsel %vm2067, %v2167, %v2168
      %v2170 = vrot.slane %v2168, 4
      %v2171 = vrot.slane %v227, 5
      %v2172 = vsel %vm2067, %v2170, %v2171
      %v2173 = vrot.slane %v228, 5
      %v2174 = vrot.slane %v2173, 4
      %v2175 = vrot.slane %v229, 5
      %v2176 = vsel %vm2067, %v2174, %v2175
      %v2177 = vrot.slane %v2175, 4
      %v2178 = vrot.slane %v230, 5
      %v2179 = vsel %vm2067, %v2177, %v2178
      %s2180 = scalar_lea.vmem %s1, 4
      %v2181 = vld [vmem:[%s2180] sm:$0x3]
      %v2182 = vunpack.c.l.b16 %v2071
      %v2183 = vunpack.c.l.b16 %v2074
      %v2184 = vunpack.c.l.b16 %v2078
      %v2185 = vunpack.c.l.b16 %v2081
      %v2186 = vunpack.c.l.b16 %v2085
      %v2187 = vunpack.c.l.b16 %v2088
      %v2188 = vunpack.c.l.b16 %v2092
      %v2189 = vunpack.c.l.b16 %v2095
      %v2190 = vunpack.c.l.b16 %v2099
      %v2191 = vunpack.c.l.b16 %v2102
      %v2192 = vunpack.c.l.b16 %v2106
      %v2193 = vunpack.c.l.b16 %v2109
      %v2194 = vunpack.c.l.b16 %v2113
      %v2195 = vunpack.c.l.b16 %v2116
      %v2196 = vunpack.c.l.b16 %v2120
      %v2197 = vunpack.c.l.b16 %v2123
      %v2198 = vunpack.c.l.b16 %v2127
      %v2199 = vunpack.c.l.b16 %v2130
      %v2200 = vunpack.c.l.b16 %v2134
      %v2201 = vunpack.c.l.b16 %v2137
      %v2202 = vunpack.c.l.b16 %v2141
      %v2203 = vunpack.c.l.b16 %v2144
      %v2204 = vunpack.c.l.b16 %v2148
      %v2205 = vunpack.c.l.b16 %v2151
      %v2206 = vunpack.c.l.b16 %v2155
      %v2207 = vunpack.c.l.b16 %v2158
      %v2208 = vunpack.c.l.b16 %v2162
      %v2209 = vunpack.c.l.b16 %v2165
      %v2210 = vunpack.c.l.b16 %v2169
      %v2211 = vunpack.c.l.b16 %v2172
      %v2212 = vunpack.c.l.b16 %v2176
      %v2213 = vunpack.c.l.b16 %v2179
      %v2214 = vpack.c.b16 %v2183, %v2182
      %v2215 = vpack.c.b16 %v2185, %v2184
      %v2216 = vpack.c.b16 %v2187, %v2186
      %v2217 = vpack.c.b16 %v2189, %v2188
      %v2218 = vpack.c.b16 %v2191, %v2190
      %v2219 = vpack.c.b16 %v2193, %v2192
      %v2220 = vpack.c.b16 %v2195, %v2194
      %v2221 = vpack.c.b16 %v2197, %v2196
      %v2222 = vpack.c.b16 %v2199, %v2198
      %v2223 = vpack.c.b16 %v2201, %v2200
      %v2224 = vpack.c.b16 %v2203, %v2202
      %v2225 = vpack.c.b16 %v2205, %v2204
      %v2226 = vpack.c.b16 %v2207, %v2206
      %v2227 = vpack.c.b16 %v2209, %v2208
      %v2228 = vpack.c.b16 %v2211, %v2210
      %v2229 = vpack.c.b16 %v2213, %v2212
      %v2231 = vsel %vm320, %v2214, 0
      %v2234 = vsel %vm320, %v2215, 0
      %v2237 = vsel %vm320, %v2216, 0
      %v2240 = vsel %vm320, %v2217, 0
      %v2243 = vsel %vm320, %v2218, 0
      %v2246 = vsel %vm320, %v2219, 0
      %v2249 = vsel %vm320, %v2220, 0
      %v2252 = vsel %vm320, %v2221, 0
      %v2255 = vsel %vm320, %v2222, 0
      %v2258 = vsel %vm320, %v2223, 0
      %v2261 = vsel %vm320, %v2224, 0
      %v2264 = vsel %vm320, %v2225, 0
      %v2267 = vsel %vm320, %v2226, 0
      %v2270 = vsel %vm320, %v2227, 0
      %v2273 = vsel %vm320, %v2228, 0
      %v2276 = vsel %vm320, %v2229, 0
      %v2279 = vsel %vm369, %v2181, 0
      %2281 = vmatprep.subr.bf16.mxu0 0
      %2282 = vmatpush1.bf16.msra.mxu0 %v2279
      %2283 = vmatprep.subr.bf16.mxu0 0
      %2284 = vmatpush1.bf16.msra.mxu0 0
      %2285 = vmatprep.subr.bf16.mxu0 0
      %2286 = vmatpush1.bf16.msra.mxu0 0
      %2287 = vmatprep.subr.bf16.mxu0 0
      %2288 = vmatpush1.bf16.msra.mxu0 0
      %2289 = vmatprep.subr.bf16.mxu0 0
      %2290 = vmatpush1.bf16.msra.mxu0 0
      %2291 = vmatprep.subr.bf16.mxu0 0
      %2292 = vmatpush1.bf16.msra.mxu0 0
      %2293 = vmatprep.subr.bf16.mxu0 0
      %2294 = vmatpush1.bf16.msra.mxu0 0
      %2295 = vmatprep.subr.bf16.mxu0 0
      %2296 = vmatpush1.bf16.msra.mxu0 0
      %2297 = vmatprep.subr.bf16.mxu0 0
      %2298 = vmatpush1.bf16.msra.mxu0 0
      %2299 = vmatprep.subr.bf16.mxu0 0
      %2300 = vmatpush1.bf16.msra.mxu0 0
      %2301 = vmatprep.subr.bf16.mxu0 0
      %2302 = vmatpush1.bf16.msra.mxu0 0
      %2303 = vmatprep.subr.bf16.mxu0 0
      %2304 = vmatpush1.bf16.msra.mxu0 0
      %2305 = vmatprep.subr.bf16.mxu0 0
      %2306 = vmatpush1.bf16.msra.mxu0 0
      %2307 = vmatprep.subr.bf16.mxu0 0
      %2308 = vmatpush1.bf16.msra.mxu0 0
      %2309 = vmatprep.subr.bf16.mxu0 0
      %2310 = vmatpush1.bf16.msra.mxu0 0
      %2311 = vmatprep.subr.bf16.mxu0 0
      %2312 = vmatpush1.bf16.msra.mxu0 0
      %2313 = vmatprep.mubr.bf16.mxu0 0
      %2314 = vmatmul.mubr.bf16.gmra.mrb[0].mxu0 %v2231
      %v2315 = vpop.f32.mrb[0].mxu0
      %v2316 = vadd.f32 0.0, %v2315
      %v2317 = vpop.f32.mrb[0].mxu0
      %v2318 = vpop.f32.mrb[0].mxu0
      %v2319 = vadd.f32 0.0, %v2318
      %v2320 = vpop.f32.mrb[0].mxu0
      %2321 = vmatprep.mubr.bf16.mxu0 0
      %2322 = vmatmul.mubr.bf16.gmra.mrb[0].mxu0 %v2234
      %v2323 = vpop.f32.mrb[0].mxu0
      %v2324 = vadd.f32 0.0, %v2323
      %v2325 = vpop.f32.mrb[0].mxu0
      %v2326 = vpop.f32.mrb[0].mxu0
      %v2327 = vadd.f32 0.0, %v2326
      %v2328 = vpop.f32.mrb[0].mxu0
      %2329 = vmatprep.mubr.bf16.mxu0 0
      %2330 = vmatmul.mubr.bf16.gmra.mrb[0].mxu0 %v2237
      %v2331 = vpop.f32.mrb[0].mxu0
      %v2332 = vadd.f32 0.0, %v2331
      %v2333 = vpop.f32.mrb[0].mxu0
      %v2334 = vpop.f32.mrb[0].mxu0
      %v2335 = vadd.f32 0.0, %v2334
      %v2336 = vpop.f32.mrb[0].mxu0
      %2337 = vmatprep.mubr.bf16.mxu0 0
      %2338 = vmatmul.mubr.bf16.gmra.mrb[0].mxu0 %v2240
      %v2339 = vpop.f32.mrb[0].mxu0
      %v2340 = vadd.f32 0.0, %v2339
      %v2341 = vpop.f32.mrb[0].mxu0
      %v2342 = vpop.f32.mrb[0].mxu0
      %v2343 = vadd.f32 0.0, %v2342
      %v2344 = vpop.f32.mrb[0].mxu0
      %2345 = vmatprep.mubr.bf16.mxu0 0
      %2346 = vmatmul.mubr.bf16.gmra.mrb[0].mxu0 %v2243
      %v2347 = vpop.f32.mrb[0].mxu0
      %v2348 = vadd.f32 0.0, %v2347
      %v2349 = vpop.f32.mrb[0].mxu0
      %v2350 = vpop.f32.mrb[0].mxu0
      %v2351 = vadd.f32 0.0, %v2350
      %v2352 = vpop.f32.mrb[0].mxu0
      %2353 = vmatprep.mubr.bf16.mxu0 0
      %2354 = vmatmul.mubr.bf16.gmra.mrb[0].mxu0 %v2246
      %v2355 = vpop.f32.mrb[0].mxu0
      %v2356 = vadd.f32 0.0, %v2355
      %v2357 = vpop.f32.mrb[0].mxu0
      %v2358 = vpop.f32.mrb[0].mxu0
      %v2359 = vadd.f32 0.0, %v2358
      %v2360 = vpop.f32.mrb[0].mxu0
      %2361 = vmatprep.mubr.bf16.mxu0 0
      %2362 = vmatmul.mubr.bf16.gmra.mrb[0].mxu0 %v2249
      %v2363 = vpop.f32.mrb[0].mxu0
      %v2364 = vadd.f32 0.0, %v2363
      %v2365 = vpop.f32.mrb[0].mxu0
      %v2366 = vpop.f32.mrb[0].mxu0
      %v2367 = vadd.f32 0.0, %v2366
      %v2368 = vpop.f32.mrb[0].mxu0
      %2369 = vmatprep.mubr.bf16.mxu0 0
      %2370 = vmatmul.mubr.bf16.gmra.mrb[0].mxu0 %v2252
      %v2371 = vpop.f32.mrb[0].mxu0
      %v2372 = vadd.f32 0.0, %v2371
      %v2373 = vpop.f32.mrb[0].mxu0
      %v2374 = vpop.f32.mrb[0].mxu0
      %v2375 = vadd.f32 0.0, %v2374
      %v2376 = vpop.f32.mrb[0].mxu0
      %2377 = vmatprep.mubr.bf16.mxu0 0
      %2378 = vmatmul.mubr.bf16.gmra.mrb[0].mxu0 %v2255
      %v2379 = vpop.f32.mrb[0].mxu0
      %v2380 = vadd.f32 0.0, %v2379
      %v2381 = vpop.f32.mrb[0].mxu0
      %v2382 = vpop.f32.mrb[0].mxu0
      %v2383 = vadd.f32 0.0, %v2382
      %v2384 = vpop.f32.mrb[0].mxu0
      %2385 = vmatprep.mubr.bf16.mxu0 0
      %2386 = vmatmul.mubr.bf16.gmra.mrb[0].mxu0 %v2258
      %v2387 = vpop.f32.mrb[0].mxu0
      %v2388 = vadd.f32 0.0, %v2387
      %v2389 = vpop.f32.mrb[0].mxu0
      %v2390 = vpop.f32.mrb[0].mxu0
      %v2391 = vadd.f32 0.0, %v2390
      %v2392 = vpop.f32.mrb[0].mxu0
      %2393 = vmatprep.mubr.bf16.mxu0 0
      %2394 = vmatmul.mubr.bf16.gmra.mrb[0].mxu0 %v2261
      %v2395 = vpop.f32.mrb[0].mxu0
      %v2396 = vadd.f32 0.0, %v2395
      %v2397 = vpop.f32.mrb[0].mxu0
      %v2398 = vpop.f32.mrb[0].mxu0
      %v2399 = vadd.f32 0.0, %v2398
      %v2400 = vpop.f32.mrb[0].mxu0
      %2401 = vmatprep.mubr.bf16.mxu0 0
      %2402 = vmatmul.mubr.bf16.gmra.mrb[0].mxu0 %v2264
      %v2403 = vpop.f32.mrb[0].mxu0
      %v2404 = vadd.f32 0.0, %v2403
      %v2405 = vpop.f32.mrb[0].mxu0
      %v2406 = vpop.f32.mrb[0].mxu0
      %v2407 = vadd.f32 0.0, %v2406
      %v2408 = vpop.f32.mrb[0].mxu0
      %2409 = vmatprep.mubr.bf16.mxu0 0
      %2410 = vmatmul.mubr.bf16.gmra.mrb[0].mxu0 %v2267
      %v2411 = vpop.f32.mrb[0].mxu0
      %v2412 = vadd.f32 0.0, %v2411
      %v2413 = vpop.f32.mrb[0].mxu0
      %v2414 = vpop.f32.mrb[0].mxu0
      %v2415 = vadd.f32 0.0, %v2414
      %v2416 = vpop.f32.mrb[0].mxu0
      %2417 = vmatprep.mubr.bf16.mxu0 0
      %2418 = vmatmul.mubr.bf16.gmra.mrb[0].mxu0 %v2270
      %v2419 = vpop.f32.mrb[0].mxu0
      %v2420 = vadd.f32 0.0, %v2419
      %v2421 = vpop.f32.mrb[0].mxu0
      %v2422 = vpop.f32.mrb[0].mxu0
      %v2423 = vadd.f32 0.0, %v2422
      %v2424 = vpop.f32.mrb[0].mxu0
      %2425 = vmatprep.mubr.bf16.mxu0 0
      %2426 = vmatmul.mubr.bf16.gmra.mrb[0].mxu0 %v2273
      %v2427 = vpop.f32.mrb[0].mxu0
      %v2428 = vadd.f32 0.0, %v2427
      %v2429 = vpop.f32.mrb[0].mxu0
      %v2430 = vpop.f32.mrb[0].mxu0
      %v2431 = vadd.f32 0.0, %v2430
      %v2432 = vpop.f32.mrb[0].mxu0
      %2433 = vmatprep.mubr.bf16.mxu0 0
      %2434 = vmatmul.mubr.bf16.gmra.mrb[0].mxu0 %v2276
      %v2435 = vpop.f32.mrb[0].mxu0
      %v2436 = vadd.f32 0.0, %v2435
      %v2437 = vpop.f32.mrb[0].mxu0
      %v2438 = vpop.f32.mrb[0].mxu0
      %v2439 = vadd.f32 0.0, %v2438
      %v2440 = vpop.f32.mrb[0].mxu0
      %2441 = vdwg.mxu0
      %v2442 = vadd.f32 %v2017, %v2316
      %v2443 = vadd.f32 %v2018, %v2319
      %v2444 = vadd.f32 %v2019, %v2324
      %v2445 = vadd.f32 %v2020, %v2327
      %v2446 = vadd.f32 %v2021, %v2332
      %v2447 = vadd.f32 %v2022, %v2335
      %v2448 = vadd.f32 %v2023, %v2340
      %v2449 = vadd.f32 %v2024, %v2343
      %v2450 = vadd.f32 %v2025, %v2348
      %v2451 = vadd.f32 %v2026, %v2351
      %v2452 = vadd.f32 %v2027, %v2356
      %v2453 = vadd.f32 %v2028, %v2359
      %v2454 = vadd.f32 %v2029, %v2364
      %v2455 = vadd.f32 %v2030, %v2367
      %v2456 = vadd.f32 %v2031, %v2372
      %v2457 = vadd.f32 %v2032, %v2375
      %v2458 = vadd.f32 %v2033, %v2380
      %v2459 = vadd.f32 %v2034, %v2383
      %v2460 = vadd.f32 %v2035, %v2388
      %v2461 = vadd.f32 %v2036, %v2391
      %v2462 = vadd.f32 %v2037, %v2396
      %v2463 = vadd.f32 %v2038, %v2399
      %v2464 = vadd.f32 %v2039, %v2404
      %v2465 = vadd.f32 %v2040, %v2407
      %v2466 = vadd.f32 %v2041, %v2412
      %v2467 = vadd.f32 %v2042, %v2415
      %v2468 = vadd.f32 %v2043, %v2420
      %v2469 = vadd.f32 %v2044, %v2423
      %v2470 = vadd.f32 %v2045, %v2428
      %v2471 = vadd.f32 %v2046, %v2431
      %v2472 = vadd.f32 %v2047, %v2436
      %v2473 = vadd.f32 %v2048, %v2439
      %v2475 = vrot.slane %v231, 5
      %v2476 = vrot.slane %v2475, 4
      %v2477 = vrot.slane %v232, 5
      %v2478 = vsel %vm2067, %v2476, %v2477
      %v2479 = vrot.slane %v2477, 4
      %v2480 = vrot.slane %v233, 5
      %v2481 = vsel %vm2067, %v2479, %v2480
      %s2482 = scalar_lea.vmem %s1, 10
      %v2483 = vld [vmem:[%s2482] sm:$0x3]
      %v2484 = vunpack.c.l.b16 %v2478
      %v2485 = vunpack.c.l.b16 %v2481
      %v2486 = vpack.c.b16 %v2485, %v2484
      %v2488 = vsel %vm320, %v2486, 0
      %v2491 = vsel %vm369, %v2483, 0
      %2493 = vmatprep.subr.bf16.mxu0 0
      %2494 = vmatpush1.bf16.msra.mxu0 %v2491
      %2495 = vmatprep.subr.bf16.mxu0 0
      %2496 = vmatpush1.bf16.msra.mxu0 0
      %2497 = vmatprep.subr.bf16.mxu0 0
      %2498 = vmatpush1.bf16.msra.mxu0 0
      %2499 = vmatprep.subr.bf16.mxu0 0
      %2500 = vmatpush1.bf16.msra.mxu0 0
      %2501 = vmatprep.subr.bf16.mxu0 0
      %2502 = vmatpush1.bf16.msra.mxu0 0
      %2503 = vmatprep.subr.bf16.mxu0 0
      %2504 = vmatpush1.bf16.msra.mxu0 0
      %2505 = vmatprep.subr.bf16.mxu0 0
      %2506 = vmatpush1.bf16.msra.mxu0 0
      %2507 = vmatprep.subr.bf16.mxu0 0
      %2508 = vmatpush1.bf16.msra.mxu0 0
      %2509 = vmatprep.subr.bf16.mxu0 0
      %2510 = vmatpush1.bf16.msra.mxu0 0
      %2511 = vmatprep.subr.bf16.mxu0 0
      %2512 = vmatpush1.bf16.msra.mxu0 0
      %2513 = vmatprep.subr.bf16.mxu0 0
      %2514 = vmatpush1.bf16.msra.mxu0 0
      %2515 = vmatprep.subr.bf16.mxu0 0
      %2516 = vmatpush1.bf16.msra.mxu0 0
      %2517 = vmatprep.subr.bf16.mxu0 0
      %2518 = vmatpush1.bf16.msra.mxu0 0
      %2519 = vmatprep.subr.bf16.mxu0 0
      %2520 = vmatpush1.bf16.msra.mxu0 0
      %2521 = vmatprep.subr.bf16.mxu0 0
      %2522 = vmatpush1.bf16.msra.mxu0 0
      %2523 = vmatprep.subr.bf16.mxu0 0
      %2524 = vmatpush1.bf16.msra.mxu0 0
      %2525 = vmatprep.mubr.bf16.mxu0 0
      %2526 = vmatmul.mubr.bf16.gmra.mrb[0].mxu0 %v2234
      %v2527 = vpop.f32.mrb[0].mxu0
      %v2528 = vadd.f32 0.0, %v2527
      %v2529 = vpop.f32.mrb[0].mxu0
      %v2530 = vpop.f32.mrb[0].mxu0
      %v2531 = vadd.f32 0.0, %v2530
      %v2532 = vpop.f32.mrb[0].mxu0
      %2533 = vmatprep.mubr.bf16.mxu0 0
      %2534 = vmatmul.mubr.bf16.gmra.mrb[0].mxu0 %v2237
      %v2535 = vpop.f32.mrb[0].mxu0
      %v2536 = vadd.f32 0.0, %v2535
      %v2537 = vpop.f32.mrb[0].mxu0
      %v2538 = vpop.f32.mrb[0].mxu0
      %v2539 = vadd.f32 0.0, %v2538
      %v2540 = vpop.f32.mrb[0].mxu0
      %2541 = vmatprep.mubr.bf16.mxu0 0
      %2542 = vmatmul.mubr.bf16.gmra.mrb[0].mxu0 %v2240
      %v2543 = vpop.f32.mrb[0].mxu0
      %v2544 = vadd.f32 0.0, %v2543
      %v2545 = vpop.f32.mrb[0].mxu0
      %v2546 = vpop.f32.mrb[0].mxu0
      %v2547 = vadd.f32 0.0, %v2546
      %v2548 = vpop.f32.mrb[0].mxu0
      %2549 = vmatprep.mubr.bf16.mxu0 0
      %2550 = vmatmul.mubr.bf16.gmra.mrb[0].mxu0 %v2243
      %v2551 = vpop.f32.mrb[0].mxu0
      %v2552 = vadd.f32 0.0, %v2551
      %v2553 = vpop.f32.mrb[0].mxu0
      %v2554 = vpop.f32.mrb[0].mxu0
      %v2555 = vadd.f32 0.0, %v2554
      %v2556 = vpop.f32.mrb[0].mxu0
      %2557 = vmatprep.mubr.bf16.mxu0 0
      %2558 = vmatmul.mubr.bf16.gmra.mrb[0].mxu0 %v2246
      %v2559 = vpop.f32.mrb[0].mxu0
      %v2560 = vadd.f32 0.0, %v2559
      %v2561 = vpop.f32.mrb[0].mxu0
      %v2562 = vpop.f32.mrb[0].mxu0
      %v2563 = vadd.f32 0.0, %v2562
      %v2564 = vpop.f32.mrb[0].mxu0
      %2565 = vmatprep.mubr.bf16.mxu0 0
      %2566 = vmatmul.mubr.bf16.gmra.mrb[0].mxu0 %v2249
      %v2567 = vpop.f32.mrb[0].mxu0
      %v2568 = vadd.f32 0.0, %v2567
      %v2569 = vpop.f32.mrb[0].mxu0
      %v2570 = vpop.f32.mrb[0].mxu0
      %v2571 = vadd.f32 0.0, %v2570
      %v2572 = vpop.f32.mrb[0].mxu0
      %2573 = vmatprep.mubr.bf16.mxu0 0
      %2574 = vmatmul.mubr.bf16.gmra.mrb[0].mxu0 %v2252
      %v2575 = vpop.f32.mrb[0].mxu0
      %v2576 = vadd.f32 0.0, %v2575
      %v2577 = vpop.f32.mrb[0].mxu0
      %v2578 = vpop.f32.mrb[0].mxu0
      %v2579 = vadd.f32 0.0, %v2578
      %v2580 = vpop.f32.mrb[0].mxu0
      %2581 = vmatprep.mubr.bf16.mxu0 0
      %2582 = vmatmul.mubr.bf16.gmra.mrb[0].mxu0 %v2255
      %v2583 = vpop.f32.mrb[0].mxu0
      %v2584 = vadd.f32 0.0, %v2583
      %v2585 = vpop.f32.mrb[0].mxu0
      %v2586 = vpop.f32.mrb[0].mxu0
      %v2587 = vadd.f32 0.0, %v2586
      %v2588 = vpop.f32.mrb[0].mxu0
      %2589 = vmatprep.mubr.bf16.mxu0 0
      %2590 = vmatmul.mubr.bf16.gmra.mrb[0].mxu0 %v2258
      %v2591 = vpop.f32.mrb[0].mxu0
      %v2592 = vadd.f32 0.0, %v2591
      %v2593 = vpop.f32.mrb[0].mxu0
      %v2594 = vpop.f32.mrb[0].mxu0
      %v2595 = vadd.f32 0.0, %v2594
      %v2596 = vpop.f32.mrb[0].mxu0
      %2597 = vmatprep.mubr.bf16.mxu0 0
      %2598 = vmatmul.mubr.bf16.gmra.mrb[0].mxu0 %v2261
      %v2599 = vpop.f32.mrb[0].mxu0
      %v2600 = vadd.f32 0.0, %v2599
      %v2601 = vpop.f32.mrb[0].mxu0
      %v2602 = vpop.f32.mrb[0].mxu0
      %v2603 = vadd.f32 0.0, %v2602
      %v2604 = vpop.f32.mrb[0].mxu0
      %2605 = vmatprep.mubr.bf16.mxu0 0
      %2606 = vmatmul.mubr.bf16.gmra.mrb[0].mxu0 %v2264
      %v2607 = vpop.f32.mrb[0].mxu0
      %v2608 = vadd.f32 0.0, %v2607
      %v2609 = vpop.f32.mrb[0].mxu0
      %v2610 = vpop.f32.mrb[0].mxu0
      %v2611 = vadd.f32 0.0, %v2610
      %v2612 = vpop.f32.mrb[0].mxu0
      %2613 = vmatprep.mubr.bf16.mxu0 0
      %2614 = vmatmul.mubr.bf16.gmra.mrb[0].mxu0 %v2267
      %v2615 = vpop.f32.mrb[0].mxu0
      %v2616 = vadd.f32 0.0, %v2615
      %v2617 = vpop.f32.mrb[0].mxu0
      %v2618 = vpop.f32.mrb[0].mxu0
      %v2619 = vadd.f32 0.0, %v2618
      %v2620 = vpop.f32.mrb[0].mxu0
      %2621 = vmatprep.mubr.bf16.mxu0 0
      %2622 = vmatmul.mubr.bf16.gmra.mrb[0].mxu0 %v2270
      %v2623 = vpop.f32.mrb[0].mxu0
      %v2624 = vadd.f32 0.0, %v2623
      %v2625 = vpop.f32.mrb[0].mxu0
      %v2626 = vpop.f32.mrb[0].mxu0
      %v2627 = vadd.f32 0.0, %v2626
      %v2628 = vpop.f32.mrb[0].mxu0
      %2629 = vmatprep.mubr.bf16.mxu0 0
      %2630 = vmatmul.mubr.bf16.gmra.mrb[0].mxu0 %v2273
      %v2631 = vpop.f32.mrb[0].mxu0
      %v2632 = vadd.f32 0.0, %v2631
      %v2633 = vpop.f32.mrb[0].mxu0
      %v2634 = vpop.f32.mrb[0].mxu0
      %v2635 = vadd.f32 0.0, %v2634
      %v2636 = vpop.f32.mrb[0].mxu0
      %2637 = vmatprep.mubr.bf16.mxu0 0
      %2638 = vmatmul.mubr.bf16.gmra.mrb[0].mxu0 %v2276
      %v2639 = vpop.f32.mrb[0].mxu0
      %v2640 = vadd.f32 0.0, %v2639
      %v2641 = vpop.f32.mrb[0].mxu0
      %v2642 = vpop.f32.mrb[0].mxu0
      %v2643 = vadd.f32 0.0, %v2642
      %v2644 = vpop.f32.mrb[0].mxu0
      %2645 = vmatprep.mubr.bf16.mxu0 0
      %2646 = vmatmul.mubr.bf16.gmra.mrb[0].mxu0 %v2488
      %v2647 = vpop.f32.mrb[0].mxu0
      %v2648 = vadd.f32 0.0, %v2647
      %v2649 = vpop.f32.mrb[0].mxu0
      %v2650 = vpop.f32.mrb[0].mxu0
      %v2651 = vadd.f32 0.0, %v2650
      %v2652 = vpop.f32.mrb[0].mxu0
      %2653 = vdwg.mxu0
      %v2654 = vadd.f32 %v2442, %v2528
      %v2655 = vadd.f32 %v2443, %v2531
      %v2656 = vadd.f32 %v2444, %v2536
      %v2657 = vadd.f32 %v2445, %v2539
      %v2658 = vadd.f32 %v2446, %v2544
      %v2659 = vadd.f32 %v2447, %v2547
      %v2660 = vadd.f32 %v2448, %v2552
      %v2661 = vadd.f32 %v2449, %v2555
      %v2662 = vadd.f32 %v2450, %v2560
      %v2663 = vadd.f32 %v2451, %v2563
      %v2664 = vadd.f32 %v2452, %v2568
      %v2665 = vadd.f32 %v2453, %v2571
      %v2666 = vadd.f32 %v2454, %v2576
      %v2667 = vadd.f32 %v2455, %v2579
      %v2668 = vadd.f32 %v2456, %v2584
      %v2669 = vadd.f32 %v2457, %v2587
      %v2670 = vadd.f32 %v2458, %v2592
      %v2671 = vadd.f32 %v2459, %v2595
      %v2672 = vadd.f32 %v2460, %v2600
      %v2673 = vadd.f32 %v2461, %v2603
      %v2674 = vadd.f32 %v2462, %v2608
      %v2675 = vadd.f32 %v2463, %v2611
      %v2676 = vadd.f32 %v2464, %v2616
      %v2677 = vadd.f32 %v2465, %v2619
      %v2678 = vadd.f32 %v2466, %v2624
      %v2679 = vadd.f32 %v2467, %v2627
      %v2680 = vadd.f32 %v2468, %v2632
      %v2681 = vadd.f32 %v2469, %v2635
      %v2682 = vadd.f32 %v2470, %v2640
      %v2683 = vadd.f32 %v2471, %v2643
      %v2684 = vadd.f32 %v2472, %v2648
      %v2685 = vadd.f32 %v2473, %v2651
      %v2687 = vrot.slane %v234, 5
      %v2688 = vrot.slane %v2687, 4
      %v2689 = vrot.slane %v235, 5
      %v2690 = vsel %vm2067, %v2688, %v2689
      %v2691 = vrot.slane %v2689, 4
      %v2692 = vrot.slane %v236, 5
      %v2693 = vsel %vm2067, %v2691, %v2692
      %s2694 = scalar_lea.vmem %s1, 16
      %v2695 = vld [vmem:[%s2694] sm:$0x3]
      %v2696 = vunpack.c.l.b16 %v2690
      %v2697 = vunpack.c.l.b16 %v2693
      %v2698 = vpack.c.b16 %v2697, %v2696
      %v2700 = vsel %vm320, %v2698, 0
      %v2703 = vsel %vm369, %v2695, 0
      %2705 = vmatprep.subr.bf16.mxu0 0
      %2706 = vmatpush1.bf16.msra.mxu0 %v2703
      %2707 = vmatprep.subr.bf16.mxu0 0
      %2708 = vmatpush1.bf16.msra.mxu0 0
      %2709 = vmatprep.subr.bf16.mxu0 0
      %2710 = vmatpush1.bf16.msra.mxu0 0
      %2711 = vmatprep.subr.bf16.mxu0 0
      %2712 = vmatpush1.bf16.msra.mxu0 0
      %2713 = vmatprep.subr.bf16.mxu0 0
      %2714 = vmatpush1.bf16.msra.mxu0 0
      %2715 = vmatprep.subr.bf16.mxu0 0
      %2716 = vmatpush1.bf16.msra.mxu0 0
      %2717 = vmatprep.subr.bf16.mxu0 0
      %2718 = vmatpush1.bf16.msra.mxu0 0
      %2719 = vmatprep.subr.bf16.mxu0 0
      %2720 = vmatpush1.bf16.msra.mxu0 0
      %2721 = vmatprep.subr.bf16.mxu0 0
      %2722 = vmatpush1.bf16.msra.mxu0 0
      %2723 = vmatprep.subr.bf16.mxu0 0
      %2724 = vmatpush1.bf16.msra.mxu0 0
      %2725 = vmatprep.subr.bf16.mxu0 0
      %2726 = vmatpush1.bf16.msra.mxu0 0
      %2727 = vmatprep.subr.bf16.mxu0 0
      %2728 = vmatpush1.bf16.msra.mxu0 0
      %2729 = vmatprep.subr.bf16.mxu0 0
      %2730 = vmatpush1.bf16.msra.mxu0 0
      %2731 = vmatprep.subr.bf16.mxu0 0
      %2732 = vmatpush1.bf16.msra.mxu0 0
      %2733 = vmatprep.subr.bf16.mxu0 0
      %2734 = vmatpush1.bf16.msra.mxu0 0
      %2735 = vmatprep.subr.bf16.mxu0 0
      %2736 = vmatpush1.bf16.msra.mxu0 0
      %2737 = vmatprep.mubr.bf16.mxu0 0
      %2738 = vmatmul.mubr.bf16.gmra.mrb[0].mxu0 %v2237
      %v2739 = vpop.f32.mrb[0].mxu0
      %v2740 = vadd.f32 0.0, %v2739
      %v2741 = vpop.f32.mrb[0].mxu0
      %v2742 = vpop.f32.mrb[0].mxu0
      %v2743 = vadd.f32 0.0, %v2742
      %v2744 = vpop.f32.mrb[0].mxu0
      %2745 = vmatprep.mubr.bf16.mxu0 0
      %2746 = vmatmul.mubr.bf16.gmra.mrb[0].mxu0 %v2240
      %v2747 = vpop.f32.mrb[0].mxu0
      %v2748 = vadd.f32 0.0, %v2747
      %v2749 = vpop.f32.mrb[0].mxu0
      %v2750 = vpop.f32.mrb[0].mxu0
      %v2751 = vadd.f32 0.0, %v2750
      %v2752 = vpop.f32.mrb[0].mxu0
      %2753 = vmatprep.mubr.bf16.mxu0 0
      %2754 = vmatmul.mubr.bf16.gmra.mrb[0].mxu0 %v2243
      %v2755 = vpop.f32.mrb[0].mxu0
      %v2756 = vadd.f32 0.0, %v2755
      %v2757 = vpop.f32.mrb[0].mxu0
      %v2758 = vpop.f32.mrb[0].mxu0
      %v2759 = vadd.f32 0.0, %v2758
      %v2760 = vpop.f32.mrb[0].mxu0
      %2761 = vmatprep.mubr.bf16.mxu0 0
      %2762 = vmatmul.mubr.bf16.gmra.mrb[0].mxu0 %v2246
      %v2763 = vpop.f32.mrb[0].mxu0
      %v2764 = vadd.f32 0.0, %v2763
      %v2765 = vpop.f32.mrb[0].mxu0
      %v2766 = vpop.f32.mrb[0].mxu0
      %v2767 = vadd.f32 0.0, %v2766
      %v2768 = vpop.f32.mrb[0].mxu0
      %2769 = vmatprep.mubr.bf16.mxu0 0
      %2770 = vmatmul.mubr.bf16.gmra.mrb[0].mxu0 %v2249
      %v2771 = vpop.f32.mrb[0].mxu0
      %v2772 = vadd.f32 0.0, %v2771
      %v2773 = vpop.f32.mrb[0].mxu0
      %v2774 = vpop.f32.mrb[0].mxu0
      %v2775 = vadd.f32 0.0, %v2774
      %v2776 = vpop.f32.mrb[0].mxu0
      %2777 = vmatprep.mubr.bf16.mxu0 0
      %2778 = vmatmul.mubr.bf16.gmra.mrb[0].mxu0 %v2252
      %v2779 = vpop.f32.mrb[0].mxu0
      %v2780 = vadd.f32 0.0, %v2779
      %v2781 = vpop.f32.mrb[0].mxu0
      %v2782 = vpop.f32.mrb[0].mxu0
      %v2783 = vadd.f32 0.0, %v2782
      %v2784 = vpop.f32.mrb[0].mxu0
      %2785 = vmatprep.mubr.bf16.mxu0 0
      %2786 = vmatmul.mubr.bf16.gmra.mrb[0].mxu0 %v2255
      %v2787 = vpop.f32.mrb[0].mxu0
      %v2788 = vadd.f32 0.0, %v2787
      %v2789 = vpop.f32.mrb[0].mxu0
      %v2790 = vpop.f32.mrb[0].mxu0
      %v2791 = vadd.f32 0.0, %v2790
      %v2792 = vpop.f32.mrb[0].mxu0
      %2793 = vmatprep.mubr.bf16.mxu0 0
      %2794 = vmatmul.mubr.bf16.gmra.mrb[0].mxu0 %v2258
      %v2795 = vpop.f32.mrb[0].mxu0
      %v2796 = vadd.f32 0.0, %v2795
      %v2797 = vpop.f32.mrb[0].mxu0
      %v2798 = vpop.f32.mrb[0].mxu0
      %v2799 = vadd.f32 0.0, %v2798
      %v2800 = vpop.f32.mrb[0].mxu0
      %2801 = vmatprep.mubr.bf16.mxu0 0
      %2802 = vmatmul.mubr.bf16.gmra.mrb[0].mxu0 %v2261
      %v2803 = vpop.f32.mrb[0].mxu0
      %v2804 = vadd.f32 0.0, %v2803
      %v2805 = vpop.f32.mrb[0].mxu0
      %v2806 = vpop.f32.mrb[0].mxu0
      %v2807 = vadd.f32 0.0, %v2806
      %v2808 = vpop.f32.mrb[0].mxu0
      %2809 = vmatprep.mubr.bf16.mxu0 0
      %2810 = vmatmul.mubr.bf16.gmra.mrb[0].mxu0 %v2264
      %v2811 = vpop.f32.mrb[0].mxu0
      %v2812 = vadd.f32 0.0, %v2811
      %v2813 = vpop.f32.mrb[0].mxu0
      %v2814 = vpop.f32.mrb[0].mxu0
      %v2815 = vadd.f32 0.0, %v2814
      %v2816 = vpop.f32.mrb[0].mxu0
      %2817 = vmatprep.mubr.bf16.mxu0 0
      %2818 = vmatmul.mubr.bf16.gmra.mrb[0].mxu0 %v2267
      %v2819 = vpop.f32.mrb[0].mxu0
      %v2820 = vadd.f32 0.0, %v2819
      %v2821 = vpop.f32.mrb[0].mxu0
      %v2822 = vpop.f32.mrb[0].mxu0
      %v2823 = vadd.f32 0.0, %v2822
      %v2824 = vpop.f32.mrb[0].mxu0
      %2825 = vmatprep.mubr.bf16.mxu0 0
      %2826 = vmatmul.mubr.bf16.gmra.mrb[0].mxu0 %v2270
      %v2827 = vpop.f32.mrb[0].mxu0
      %v2828 = vadd.f32 0.0, %v2827
      %v2829 = vpop.f32.mrb[0].mxu0
      %v2830 = vpop.f32.mrb[0].mxu0
      %v2831 = vadd.f32 0.0, %v2830
      %v2832 = vpop.f32.mrb[0].mxu0
      %2833 = vmatprep.mubr.bf16.mxu0 0
      %2834 = vmatmul.mubr.bf16.gmra.mrb[0].mxu0 %v2273
      %v2835 = vpop.f32.mrb[0].mxu0
      %v2836 = vadd.f32 0.0, %v2835
      %v2837 = vpop.f32.mrb[0].mxu0
      %v2838 = vpop.f32.mrb[0].mxu0
      %v2839 = vadd.f32 0.0, %v2838
      %v2840 = vpop.f32.mrb[0].mxu0
      %2841 = vmatprep.mubr.bf16.mxu0 0
      %2842 = vmatmul.mubr.bf16.gmra.mrb[0].mxu0 %v2276
      %v2843 = vpop.f32.mrb[0].mxu0
      %v2844 = vadd.f32 0.0, %v2843
      %v2845 = vpop.f32.mrb[0].mxu0
      %v2846 = vpop.f32.mrb[0].mxu0
      %v2847 = vadd.f32 0.0, %v2846
      %v2848 = vpop.f32.mrb[0].mxu0
      %2849 = vmatprep.mubr.bf16.mxu0 0
      %2850 = vmatmul.mubr.bf16.gmra.mrb[0].mxu0 %v2488
      %v2851 = vpop.f32.mrb[0].mxu0
      %v2852 = vadd.f32 0.0, %v2851
      %v2853 = vpop.f32.mrb[0].mxu0
      %v2854 = vpop.f32.mrb[0].mxu0
      %v2855 = vadd.f32 0.0, %v2854
      %v2856 = vpop.f32.mrb[0].mxu0
      %2857 = vmatprep.mubr.bf16.mxu0 0
      %2858 = vmatmul.mubr.bf16.gmra.mrb[0].mxu0 %v2700
      %v2859 = vpop.f32.mrb[0].mxu0
      %v2860 = vadd.f32 0.0, %v2859
      %v2861 = vpop.f32.mrb[0].mxu0
      %v2862 = vpop.f32.mrb[0].mxu0
      %v2863 = vadd.f32 0.0, %v2862
      %v2864 = vpop.f32.mrb[0].mxu0
      %2865 = vdwg.mxu0
      %v2866 = vadd.f32 %v2654, %v2740
      %v2867 = vadd.f32 %v2655, %v2743
      %v2868 = vadd.f32 %v2656, %v2748
      %v2869 = vadd.f32 %v2657, %v2751
      %v2870 = vadd.f32 %v2658, %v2756
      %v2871 = vadd.f32 %v2659, %v2759
      %v2872 = vadd.f32 %v2660, %v2764
      %v2873 = vadd.f32 %v2661, %v2767
      %v2874 = vadd.f32 %v2662, %v2772
      %v2875 = vadd.f32 %v2663, %v2775
      %v2876 = vadd.f32 %v2664, %v2780
      %v2877 = vadd.f32 %v2665, %v2783
      %v2878 = vadd.f32 %v2666, %v2788
      %v2879 = vadd.f32 %v2667, %v2791
      %v2880 = vadd.f32 %v2668, %v2796
      %v2881 = vadd.f32 %v2669, %v2799
      %v2882 = vadd.f32 %v2670, %v2804
      %v2883 = vadd.f32 %v2671, %v2807
      %v2884 = vadd.f32 %v2672, %v2812
      %v2885 = vadd.f32 %v2673, %v2815
      %v2886 = vadd.f32 %v2674, %v2820
      %v2887 = vadd.f32 %v2675, %v2823
      %v2888 = vadd.f32 %v2676, %v2828
      %v2889 = vadd.f32 %v2677, %v2831
      %v2890 = vadd.f32 %v2678, %v2836
      %v2891 = vadd.f32 %v2679, %v2839
      %v2892 = vadd.f32 %v2680, %v2844
      %v2893 = vadd.f32 %v2681, %v2847
      %v2894 = vadd.f32 %v2682, %v2852
      %v2895 = vadd.f32 %v2683, %v2855
      %v2896 = vadd.f32 %v2684, %v2860
      %v2897 = vadd.f32 %v2685, %v2863
      %v2898 = vpack.c.bf16 %v2867, %v2866
      %v2899 = vpack.c.bf16 %v2869, %v2868
      %v2900 = vpack.c.bf16 %v2871, %v2870
      %v2901 = vpack.c.bf16 %v2873, %v2872
      %v2902 = vpack.c.bf16 %v2875, %v2874
      %v2903 = vpack.c.bf16 %v2877, %v2876
      %v2904 = vpack.c.bf16 %v2879, %v2878
      %v2905 = vpack.c.bf16 %v2881, %v2880
      %v2906 = vpack.c.bf16 %v2883, %v2882
      %v2907 = vpack.c.bf16 %v2885, %v2884
      %v2908 = vpack.c.bf16 %v2887, %v2886
      %v2909 = vpack.c.bf16 %v2889, %v2888
      %v2910 = vpack.c.bf16 %v2891, %v2890
      %v2911 = vpack.c.bf16 %v2893, %v2892
      %v2912 = vpack.c.bf16 %v2895, %v2894
      %v2913 = vpack.c.bf16 %v2897, %v2896
      %v2930 = vunpack.c.l.b16 %v2898
      %v2931 = vunpack.c.h.b16 %v2898
      %v2932 = vunpack.c.l.b16 %v2899
      %v2933 = vunpack.c.h.b16 %v2899
      %v2934 = vunpack.c.l.b16 %v2900
      %v2935 = vunpack.c.h.b16 %v2900
      %v2936 = vunpack.c.l.b16 %v2901
      %v2937 = vunpack.c.h.b16 %v2901
      %v2938 = vunpack.c.l.b16 %v2902
      %v2939 = vunpack.c.h.b16 %v2902
      %v2940 = vunpack.c.l.b16 %v2903
      %v2941 = vunpack.c.h.b16 %v2903
      %v2942 = vunpack.c.l.b16 %v2904
      %v2943 = vunpack.c.h.b16 %v2904
      %v2944 = vunpack.c.l.b16 %v2905
      %v2945 = vunpack.c.h.b16 %v2905
      %v2946 = vunpack.c.l.b16 %v2906
      %v2947 = vunpack.c.h.b16 %v2906
      %v2948 = vunpack.c.l.b16 %v2907
      %v2949 = vunpack.c.h.b16 %v2907
      %v2950 = vunpack.c.l.b16 %v2908
      %v2951 = vunpack.c.h.b16 %v2908
      %v2952 = vunpack.c.l.b16 %v2909
      %v2953 = vunpack.c.h.b16 %v2909
      %v2954 = vunpack.c.l.b16 %v2910
      %v2955 = vunpack.c.h.b16 %v2910
      %v2956 = vunpack.c.l.b16 %v2911
      %v2957 = vunpack.c.h.b16 %v2911
      %v2958 = vunpack.c.l.b16 %v2912
      %v2959 = vunpack.c.h.b16 %v2912
      %v2960 = vunpack.c.l.b16 %v2913
      %v2961 = vunpack.c.h.b16 %v2913
      %v2962 = vpack.c.b16 %v2930, %v2930
      %v2963 = vpack.c.b16 %v2931, %v2931
      %v2964 = vpack.c.b16 %v2932, %v2932
      %v2965 = vpack.c.b16 %v2933, %v2933
      %v2966 = vpack.c.b16 %v2934, %v2934
      %v2967 = vpack.c.b16 %v2935, %v2935
      %v2968 = vpack.c.b16 %v2936, %v2936
      %v2969 = vpack.c.b16 %v2937, %v2937
      %v2970 = vpack.c.b16 %v2938, %v2938
      %v2971 = vpack.c.b16 %v2939, %v2939
      %v2972 = vpack.c.b16 %v2940, %v2940
      %v2973 = vpack.c.b16 %v2941, %v2941
      %v2974 = vpack.c.b16 %v2942, %v2942
      %v2975 = vpack.c.b16 %v2943, %v2943
      %v2976 = vpack.c.b16 %v2944, %v2944
      %v2977 = vpack.c.b16 %v2945, %v2945
      %v2978 = vpack.c.b16 %v2946, %v2946
      %v2979 = vpack.c.b16 %v2947, %v2947
      %v2980 = vpack.c.b16 %v2948, %v2948
      %v2981 = vpack.c.b16 %v2949, %v2949
      %v2982 = vpack.c.b16 %v2950, %v2950
      %v2983 = vpack.c.b16 %v2951, %v2951
      %v2984 = vpack.c.b16 %v2952, %v2952
      %v2985 = vpack.c.b16 %v2953, %v2953
      %v2986 = vpack.c.b16 %v2954, %v2954
      %v2987 = vpack.c.b16 %v2955, %v2955
      %v2988 = vpack.c.b16 %v2956, %v2956
      %v2989 = vpack.c.b16 %v2957, %v2957
      %v2990 = vpack.c.b16 %v2958, %v2958
      %v2991 = vpack.c.b16 %v2959, %v2959
      %v2992 = vpack.c.b16 %v2960, %v2960
      %v2993 = vpack.c.b16 %v2961, %v2961
      %3026 = vst [vmem:[%s177] sm:$0xf] %v2962
      %3027 = vst [vmem:[%s177 + $0x4] sm:$0xf] %v2963
      %3028 = vst [vmem:[%s177 + $0x8] sm:$0xf] %v2964
      %3029 = vst [vmem:[%s177 + $0xc] sm:$0xf] %v2965
      %3030 = vst [vmem:[%s177 + $0x10] sm:$0xf] %v2966
      %3031 = vst [vmem:[%s177 + $0x14] sm:$0xf] %v2967
      %3032 = vst [vmem:[%s177 + $0x18] sm:$0xf] %v2968
      %3033 = vst [vmem:[%s177 + $0x1c] sm:$0xf] %v2969
      %3034 = vst [vmem:[%s177 + $0x20] sm:$0xf] %v2970
      %3035 = vst [vmem:[%s177 + $0x24] sm:$0xf] %v2971
      %3036 = vst [vmem:[%s177 + $0x28] sm:$0xf] %v2972
      %3037 = vst [vmem:[%s177 + $0x2c] sm:$0xf] %v2973
      %3038 = vst [vmem:[%s177 + $0x30] sm:$0xf] %v2974
      %3039 = vst [vmem:[%s177 + $0x34] sm:$0xf] %v2975
      %3040 = vst [vmem:[%s177 + $0x38] sm:$0xf] %v2976
      %3041 = vst [vmem:[%s177 + $0x3c] sm:$0xf] %v2977
      %3042 = vst [vmem:[%s177 + $0x40] sm:$0xf] %v2978
      %3043 = vst [vmem:[%s177 + $0x44] sm:$0xf] %v2979
      %3044 = vst [vmem:[%s177 + $0x48] sm:$0xf] %v2980
      %3045 = vst [vmem:[%s177 + $0x4c] sm:$0xf] %v2981
      %3046 = vst [vmem:[%s177 + $0x50] sm:$0xf] %v2982
      %3047 = vst [vmem:[%s177 + $0x54] sm:$0xf] %v2983
      %3048 = vst [vmem:[%s177 + $0x58] sm:$0xf] %v2984
      %3049 = vst [vmem:[%s177 + $0x5c] sm:$0xf] %v2985
      %3050 = vst [vmem:[%s177 + $0x60] sm:$0xf] %v2986
      %3051 = vst [vmem:[%s177 + $0x64] sm:$0xf] %v2987
      %3052 = vst [vmem:[%s177 + $0x68] sm:$0xf] %v2988
      %3053 = vst [vmem:[%s177 + $0x6c] sm:$0xf] %v2989
      %3054 = vst [vmem:[%s177 + $0x70] sm:$0xf] %v2990
      %3055 = vst [vmem:[%s177 + $0x74] sm:$0xf] %v2991
      %3056 = vst [vmem:[%s177 + $0x78] sm:$0xf] %v2992
      %3057 = vst [vmem:[%s177 + $0x7c] sm:$0xf] %v2993
      %v3058 = vadd.f32 %v2866, %v2867
      %v3059 = vadd.f32 %v3058, %v2868
      %v3060 = vadd.f32 %v3059, %v2869
      %v3061 = vadd.f32 %v3060, %v2870
      %v3062 = vadd.f32 %v3061, %v2871
      %v3063 = vadd.f32 %v3062, %v2872
      %v3064 = vadd.f32 %v3063, %v2873
      %v3065 = vadd.f32 %v3064, %v2874
      %v3066 = vadd.f32 %v3065, %v2875
      %v3067 = vadd.f32 %v3066, %v2876
      %v3068 = vadd.f32 %v3067, %v2877
      %v3069 = vadd.f32 %v3068, %v2878
      %v3070 = vadd.f32 %v3069, %v2879
      %v3071 = vadd.f32 %v3070, %v2880
      %v3072 = vadd.f32 %v3071, %v2881
      %v3073 = vadd.f32 %v3072, %v2882
      %v3074 = vadd.f32 %v3073, %v2883
      %v3075 = vadd.f32 %v3074, %v2884
      %v3076 = vadd.f32 %v3075, %v2885
      %v3077 = vadd.f32 %v3076, %v2886
      %v3078 = vadd.f32 %v3077, %v2887
      %v3079 = vadd.f32 %v3078, %v2888
      %v3080 = vadd.f32 %v3079, %v2889
      %v3081 = vadd.f32 %v3080, %v2890
      %v3082 = vadd.f32 %v3081, %v2891
      %v3083 = vadd.f32 %v3082, %v2892
      %v3084 = vadd.f32 %v3083, %v2893
      %v3085 = vadd.f32 %v3084, %v2894
      %v3086 = vadd.f32 %v3085, %v2895
      %v3087 = vadd.f32 %v3086, %v2896
      %v3088 = vadd.f32 %v3087, %v2897
      %v3089 = vrot.slane %v3088, 4
      %v3090 = vadd.f32 %v3088, %v3089
      %v3091 = vrot.slane %v3090, 2
      %v3092 = vadd.f32 %v3090, %v3091
      %v3093 = vrot.slane %v3092, 1
      %v3094 = vadd.f32 %v3092, %v3093
      %v3095 = vmul.f32 %v2866, %v2866
      %v3096 = vmul.f32 %v2867, %v2867
      %v3097 = vmul.f32 %v2868, %v2868
      %v3098 = vmul.f32 %v2869, %v2869
      %v3099 = vmul.f32 %v2870, %v2870
      %v3100 = vmul.f32 %v2871, %v2871
      %v3101 = vmul.f32 %v2872, %v2872
      %v3102 = vmul.f32 %v2873, %v2873
      %v3103 = vmul.f32 %v2874, %v2874
      %v3104 = vmul.f32 %v2875, %v2875
      %v3105 = vmul.f32 %v2876, %v2876
      %v3106 = vmul.f32 %v2877, %v2877
      %v3107 = vmul.f32 %v2878, %v2878
      %v3108 = vmul.f32 %v2879, %v2879
      %v3109 = vmul.f32 %v2880, %v2880
      %v3110 = vmul.f32 %v2881, %v2881
      %v3111 = vmul.f32 %v2882, %v2882
      %v3112 = vmul.f32 %v2883, %v2883
      %v3113 = vmul.f32 %v2884, %v2884
      %v3114 = vmul.f32 %v2885, %v2885
      %v3115 = vmul.f32 %v2886, %v2886
      %v3116 = vmul.f32 %v2887, %v2887
      %v3117 = vmul.f32 %v2888, %v2888
      %v3118 = vmul.f32 %v2889, %v2889
      %v3119 = vmul.f32 %v2890, %v2890
      %v3120 = vmul.f32 %v2891, %v2891
      %v3121 = vmul.f32 %v2892, %v2892
      %v3122 = vmul.f32 %v2893, %v2893
      %v3123 = vmul.f32 %v2894, %v2894
      %v3124 = vmul.f32 %v2895, %v2895
      %v3125 = vmul.f32 %v2896, %v2896
      %v3126 = vmul.f32 %v2897, %v2897
      %v3127 = vadd.f32 %v3095, %v3096
      %v3128 = vadd.f32 %v3127, %v3097
      %v3129 = vadd.f32 %v3128, %v3098
      %v3130 = vadd.f32 %v3129, %v3099
      %v3131 = vadd.f32 %v3130, %v3100
      %v3132 = vadd.f32 %v3131, %v3101
      %v3133 = vadd.f32 %v3132, %v3102
      %v3134 = vadd.f32 %v3133, %v3103
      %v3135 = vadd.f32 %v3134, %v3104
      %v3136 = vadd.f32 %v3135, %v3105
      %v3137 = vadd.f32 %v3136, %v3106
      %v3138 = vadd.f32 %v3137, %v3107
      %v3139 = vadd.f32 %v3138, %v3108
      %v3140 = vadd.f32 %v3139, %v3109
      %v3141 = vadd.f32 %v3140, %v3110
      %v3142 = vadd.f32 %v3141, %v3111
      %v3143 = vadd.f32 %v3142, %v3112
      %v3144 = vadd.f32 %v3143, %v3113
      %v3145 = vadd.f32 %v3144, %v3114
      %v3146 = vadd.f32 %v3145, %v3115
      %v3147 = vadd.f32 %v3146, %v3116
      %v3148 = vadd.f32 %v3147, %v3117
      %v3149 = vadd.f32 %v3148, %v3118
      %v3150 = vadd.f32 %v3149, %v3119
      %v3151 = vadd.f32 %v3150, %v3120
      %v3152 = vadd.f32 %v3151, %v3121
      %v3153 = vadd.f32 %v3152, %v3122
      %v3154 = vadd.f32 %v3153, %v3123
      %v3155 = vadd.f32 %v3154, %v3124
      %v3156 = vadd.f32 %v3155, %v3125
      %v3157 = vadd.f32 %v3156, %v3126
      %v3158 = vrot.slane %v3157, 4
      %v3159 = vadd.f32 %v3157, %v3158
      %v3160 = vrot.slane %v3159, 2
      %v3161 = vadd.f32 %v3159, %v3160
      %v3162 = vrot.slane %v3161, 1
      %v3163 = vadd.f32 %v3161, %v3162
      %vm3164 = vcmask 1040384
      %v3165 = vsel %vm3164, %v3094, %v3163
      %3166 = vst [vmem:[%s181] sm:$0x3] %v3165
      %p3167 = scmp.lt.s32.totalorder %s15, 1
      %s3168 = scalar_select %p3167, %s15, 1
      %s3169 = smul.addr %s3168, 32
      %s3170 = smul.addr %s3169, 4
      %s3171 = scalar_lea.vmem %s2, %s3170
      %p3172 = scmp.lt.s32.totalorder %s15, 1
      %s3173 = scalar_select %p3172, %s15, 1
      %s3174 = smul.addr %s3173, 2
      %s3175 = scalar_lea.vmem %s3, %s3174
      // Predicated region
      $region29: #{conv_block.2} parent=27 // pred_check
        %p3176 = pneg %p80
      $region30: #{conv_block.2} parent=27 // pred_check_branch
        %3178 = sbr.rel (%p3176) target = $region32
      $region31: #{conv_block.2} parent=27 // pred_region
        _
      $region32: #{conv_block.2} parent=27 // pred_fallthru
        _
      // Predicated region
      $region33: #{conv_block.2} parent=27 // pred_check
        %p3179 = pneg %p106
      $region34: #{conv_block.2} parent=27 // pred_check_branch
        %3181 = sbr.rel (%p3179) target = $region36
      $region35: #{conv_block.2} parent=27 // pred_region
        _
      $region36: #{conv_block.2} parent=27 // pred_fallthru
        _
    $region28: #{conv_block.2} parent=5 // pred_fallthru
      _
    %p3182 = scmp.le.s32.totalorder 2, %s10
    // Predicated region
    $region37: #{conv_block.2} parent=5 // pred_check
      %p3183 = pneg %p3182
    $region38: #{conv_block.2} parent=5 // pred_check_branch
      %3185 = sbr.rel (%p3183) target = $region40
    $region39: #{conv_block.2} parent=5 // pred_region
      %s3186 = ssub.s32 %s10, 2
      // Predicated region
      $region41: #{conv_block.2} parent=39 // pred_check
        %p3187 = pneg %p86
      $region42: #{conv_block.2} parent=39 // pred_check_branch
        %3189 = sbr.rel (%p3187) target = $region44
      $region43: #{conv_block.2} parent=39 // pred_region
        %p3190 = scmp.lt.s32.totalorder %s16, 1
        %s3191 = scalar_select %p3190, %s16, 1
        %s3192 = smul.addr %s3191, 32
        %s3193 = smul.addr %s3192, 4
        %s3194 = scalar_lea.vmem %s2, %s3193
      $region44: #{conv_block.2} parent=39 // pred_fallthru
        _
      // Predicated region
      $region45: #{conv_block.2} parent=39 // pred_check
        %p3195 = pneg %p112
      $region46: #{conv_block.2} parent=39 // pred_check_branch
        %3197 = sbr.rel (%p3195) target = $region48
      $region47: #{conv_block.2} parent=39 // pred_region
        %p3198 = scmp.lt.s32.totalorder %s16, 1
        %s3199 = scalar_select %p3198, %s16, 1
        %s3200 = smul.addr %s3199, 2
        %s3201 = scalar_lea.vmem %s3, %s3200
      $region48: #{conv_block.2} parent=39 // pred_fallthru
        _
    $region40: #{conv_block.2} parent=5 // pred_fallthru
      _
  $region6: #{conv_block.2} parent=0 // loop_footer
    %s14 = sadd.s32 1, %s10
  $region7: #{conv_block.2} parent=0 // loop_footer_branch
    %9 = sbr.rel target = $region3
  $region8: #{conv_block.2} parent=0 // loop_exit
    _

</llo_original>
